<compile_context>
chip_gen: v7x
topology: tpu7x:2x2x1
jax: 0.10.0
libtpu: 0.0.40
codegen_flags: <defaults>
</compile_context>

<pallas_src>
import functools
import math

import jax
import jax.numpy as jnp
from jax import lax
from jax.experimental import pallas as pl
from jax.experimental.pallas import tpu as pltpu


# ----------------------------------------------------------------------------
# Fused Pallas kernel: conv-GEMM (all pool offsets) + pool + bias + ReLU + linear
# ----------------------------------------------------------------------------
def _fused_forward_kernel(x_ref, tw_ref, cb_ref, w2_ref, lb_ref, o_ref, *, g, pp):
    """BT images per grid step.

    x_ref : (BT, CHW_PAD)       raw flattened images (zero padded lanes/rows)
    tw_ref: (CHW_PAD, PP*g)     conv-as-Toeplitz weight, cols = (q, co, poh, pow)
    cb_ref: (1, g)              conv bias broadcast over (poh, pow)
    w2_ref: (g, NPAD)           final linear weight (lane padded)
    lb_ref: (1, NPAD)           final linear bias  (lane padded)
    o_ref : (BT, NPAD)
    """
    # Conv2d evaluated at every 2x2 pool-window offset q in ONE lane-dense GEMM.
    conv = jnp.dot(x_ref[...], tw_ref[...], preferred_element_type=jnp.float32)

    # MaxPool2d(pool): max over the PP pool-window offsets — static, 128-aligned
    # column slices of the GEMM result (pure vreg selection, no relayout).
    pooled = conv[:, 0:g]
    for q in range(1, pp):
        pooled = jnp.maximum(pooled, conv[:, q * g:(q + 1) * g])

    # Conv bias + ReLU(cutoff=0).  The bias is identical across the pool window
    # and ReLU is monotone, so applying them after the max is exact.
    act = jnp.maximum(pooled + cb_ref[...], jnp.float32(0.0))       # (BT, g) f32

    # Flatten (column order already matches NCHW) + Linear: one GEMM + bias.
    out = jnp.dot(act.astype(w2_ref.dtype), w2_ref[...],
                  preferred_element_type=jnp.float32) + lb_ref[...]
    o_ref[...] = out


# ----------------------------------------------------------------------------
# Wrapper-side weight prep: conv (with zero padding) as a Toeplitz matrix
# ----------------------------------------------------------------------------
def _build_conv_toeplitz(conv_w, cfg):
    """Returns T of shape (Cin*H*W, PP*Cout*POH*POW) such that for a flattened
    image row x (NCHW order), (x @ T)[(q, co, poh, pow)] is the conv output at
    (oh, ow) = (poh*pool + ph, pow*pool + pw) with q = (ph, pw), bias excluded.
    Zero padding of the conv input is absorbed into T (out-of-range taps -> 0).
    In deployment this is weight prep done once; under jit with constant params
    it is constant-folded."""
    Cin, H = cfg["in_channels"], cfg["in_size"]
    W = cfg["in_size"]
    K, S, P = cfg["kernel_size"], cfg["stride"], cfg["padding"]
    Cout, pool = cfg["conv_out_channels"], cfg["pool_size"]
    POH = POW = cfg["pool_out_size"]
    w = conv_w.astype(jnp.float32)

    kk = jnp.arange(K)

    def match(n_out, n_in, off):
        # (n_out, K, n_in) one-hot: in_idx == (out_idx*pool + off)*S + k - P
        tgt = (jnp.arange(n_out)[:, None] * pool + off) * S + kk[None, :] - P
        return (jnp.arange(n_in)[None, None, :] == tgt[:, :, None]).astype(jnp.float32)

    blocks = []
    for ph in range(pool):
        rm = match(POH, H, ph)                      # (POH, K, H)
        for pw in range(pool):
            cm = match(POW, W, pw)                  # (POW, K, W)
            # tq[ci, ih, iw, co, poh, pow] = sum_{kh,kw} w[co,ci,kh,kw]*rm*cm
            tq = jnp.einsum("ocrs,pri,qsj->cijopq", w, rm, cm)
            blocks.append(tq.reshape(Cin * H * W, Cout * POH * POW))
    return jnp.concatenate(blocks, axis=1)          # cols: (q, co, poh, pow)


# ----------------------------------------------------------------------------
# Model forward
# ----------------------------------------------------------------------------
def main_forward(x, params, cfg, *, mxu_dtype=jnp.float32, bt_max=128):
    """Forward pass equivalent to Main.forward (default nonidealities).

    x: (B, Cin, H, W) float32 (NCHW, same as PyTorch).
    Returns (B, feature_count) float32.
    mxu_dtype: dtype of the MXU operands (jnp.float32 or jnp.bfloat16).  All
    element-wise math and accumulation stays in float32.
    """
    B, Cin, H, W = x.shape
    Cout = cfg["conv_out_channels"]
    pool = cfg["pool_size"]
    POH = POW = cfg["pool_out_size"]
    PP = pool * pool
    PSP = POH * POW
    G = Cout * PSP                                   # flattened pooled features (512)
    NF = cfg["feature_count"]
    NPAD = max(128, -(-NF // 128) * 128)             # lane-dense padded feature count
    CHW = Cin * H * W
    CHW_PAD = -(-CHW // 128) * 128                   # lane-dense contraction dim

    cdt = jnp.dtype(mxu_dtype)

    # ---- weight prep (wrapper-side; tiny / constant-foldable) ---------------
    tw = _build_conv_toeplitz(params["conv_w"], cfg)                 # (CHW, PP*G)
    tw = jnp.pad(tw, ((0, CHW_PAD - CHW), (0, 0))).astype(cdt)
    cb = jnp.repeat(params["conv_b"].astype(jnp.float32), PSP)[None, :]        # (1, G)
    w2 = jnp.pad(params["lin_w"].astype(jnp.float32).T,
                 ((0, 0), (0, NPAD - NF))).astype(cdt)               # (G, NPAD)
    lb = jnp.pad(params["lin_b"].astype(jnp.float32), (0, NPAD - NF))[None, :]

    # ---- batch tiling --------------------------------------------------------
    # BT images per grid step (multiple of 16 sublanes: valid for f32 and bf16).
    BT = min(bt_max, -(-B // 16) * 16)
    B_pad = -(-B // BT) * BT
    x2 = x.reshape(B, CHW).astype(cdt)               # raw images, no im2col
    x2 = jnp.pad(x2, ((0, B_pad - B), (0, CHW_PAD - CHW)))
    nsteps = B_pad // BT

    itemsize = cdt.itemsize
    cost = pl.CostEstimate(
        flops=2 * B_pad * (CHW_PAD * PP * G + G * NPAD),
        transcendentals=0,
        bytes_accessed=int(x2.size * itemsize + tw.size * itemsize
                           + w2.size * itemsize + (cb.size + lb.size) * 4
                           + B_pad * NPAD * 4),
    )

    out = pl.pallas_call(
        functools.partial(_fused_forward_kernel, g=G, pp=PP),
        out_shape=jax.ShapeDtypeStruct((B_pad, NPAD), jnp.float32),
        grid=(nsteps,),
        in_specs=[
            pl.BlockSpec((BT, CHW_PAD), lambda i: (i, 0)),           # raw images (streamed)
            pl.BlockSpec((CHW_PAD, PP * G), lambda i: (0, 0)),       # conv Toeplitz (resident)
            pl.BlockSpec((1, G), lambda i: (0, 0)),                  # conv bias
            pl.BlockSpec((G, NPAD), lambda i: (0, 0)),               # linear weight (resident)
            pl.BlockSpec((1, NPAD), lambda i: (0, 0)),               # linear bias
        ],
        out_specs=pl.BlockSpec((BT, NPAD), lambda i: (i, 0)),
        compiler_params=pltpu.CompilerParams(
            dimension_semantics=("parallel",),        # shard batch tiles across v7x cores
            vmem_limit_bytes=40 * 1024 * 1024,        # resident weights + double buffers
        ),
        cost_estimate=cost,
    )(x2, tw, cb, w2, lb)

    return out[:B, :NF]


# ----------------------------------------------------------------------------
# Pure-JAX reference (for a sanity check)
# ----------------------------------------------------------------------------
def reference_forward(x, params, cfg):
    conv = lax.conv_general_dilated(
        x, params["conv_w"],
        window_strides=(cfg["stride"], cfg["stride"]),
        padding=[(cfg["padding"], cfg["padding"])] * 2,
        dimension_numbers=("NCHW", "OIHW", "NCHW"),
    ) + params["conv_b"][None, :, None, None]
    conv = jnp.maximum(conv, 0.0)
    p = cfg["pool_size"]
    B, C, Hh, Ww = conv.shape
    pooled = conv.reshape(B, C, Hh // p, p, Ww // p, p).max(axis=(3, 5))
    flat = pooled.reshape(B, -1)
    return flat @ params["lin_w"].T + params["lin_b"]


# ----------------------------------------------------------------------------
# Main
# ----------------------------------------------------------------------------
if __name__ == "__main__":
    # FullModelParams: in_size=16, in_channels=4, conv_out_channels=8,
    # kernel_size=3, stride=1, padding=1, pool_size=2, feature_count=10,
    # additional_layers=None
    cfg = dict(
        in_size=16, in_channels=4, conv_out_channels=8,
        kernel_size=3, stride=1, padding=1, pool_size=2, feature_count=10,
    )
    conv_out_size, rem = divmod(
        cfg["in_size"] + cfg["stride"] + 2 * cfg["padding"] - cfg["kernel_size"], cfg["stride"]
    )
    assert rem == 0
    pool_out_size, rem = divmod(conv_out_size, cfg["pool_size"])
    assert rem == 0
    cfg["conv_out_size"] = conv_out_size
    cfg["pool_out_size"] = pool_out_size
    final_size = pool_out_size ** 2 * cfg["conv_out_channels"]  # 8*8*8 = 512

    B = 2
    key = jax.random.PRNGKey(0)
    k_x, k_cw, k_cb, k_lw, k_lb = jax.random.split(key, 5)

    x = jax.random.normal(k_x, (B, cfg["in_channels"], cfg["in_size"], cfg["in_size"]),
                          dtype=jnp.float32)

    # Deterministic parameter init (shapes per the module's __init__; kaiming-style scale).
    fan_in_conv = cfg["in_channels"] * cfg["kernel_size"] ** 2
    conv_bound = 1.0 / math.sqrt(fan_in_conv)
    lin_bound = 1.0 / math.sqrt(final_size)
    params = {
        "conv_w": jax.random.uniform(
            k_cw,
            (cfg["conv_out_channels"], cfg["in_channels"], cfg["kernel_size"], cfg["kernel_size"]),
            minval=-conv_bound, maxval=conv_bound, dtype=jnp.float32),
        "conv_b": jax.random.uniform(
            k_cb, (cfg["conv_out_channels"],), minval=-conv_bound, maxval=conv_bound,
            dtype=jnp.float32),
        "lin_w": jax.random.uniform(
            k_lw, (cfg["feature_count"], final_size), minval=-lin_bound, maxval=lin_bound,
            dtype=jnp.float32),
        "lin_b": jax.random.uniform(
            k_lb, (cfg["feature_count"],), minval=-lin_bound, maxval=lin_bound,
            dtype=jnp.float32),
    }

    ref = reference_forward(x, params, cfg)

    # f32 MXU operands — strict check.
    out = jax.jit(lambda xx: main_forward(xx, params, cfg))(x)
    out = jax.block_until_ready(out)
    assert out.shape == (B, cfg["feature_count"])
    assert jnp.allclose(out, ref, rtol=1e-3, atol=1e-3)

    # bf16 MXU operands (v6e/v7x recommendation), f32 accumulation — loose check.
    out_bf16 = jax.jit(lambda xx: main_forward(xx, params, cfg, mxu_dtype=jnp.bfloat16))(x)
    out_bf16 = jax.block_until_ready(out_bf16)
    assert jnp.allclose(out_bf16, ref, rtol=5e-2, atol=5e-2)

    print("KERNEL_OK")
</pallas_src>

<mosaic_0001>
module attributes {stable_mosaic.version = 11 : i64} {
  func.func @_fused_forward_kernel(%arg0: i32, %arg1: memref<16x1024xf32, #tpu.memory_space<vmem>>, %arg2: memref<1024x2048xf32, #tpu.memory_space<vmem>>, %arg3: memref<1x512xf32, #tpu.memory_space<vmem>>, %arg4: memref<512x128xf32, #tpu.memory_space<vmem>>, %arg5: memref<1x128xf32, #tpu.memory_space<vmem>>, %arg6: memref<16x128xf32, #tpu.memory_space<vmem>>) attributes {dimension_semantics = [#tpu.dimension_semantics<parallel>], iteration_bounds = array<i64: 1>, scalar_prefetch = 0 : i64, scratch_operands = 0 : i64, tpu.core_type = #tpu.core_type<tc>, window_params = [{transform_indices = @transform_0, window_bounds = array<i64: 16, 1024>}, {pipeline_mode = #tpu.pipeline_mode<synchronous>, transform_indices = @transform_1, window_bounds = array<i64: 1024, 2048>}, {pipeline_mode = #tpu.pipeline_mode<synchronous>, transform_indices = @transform_2, window_bounds = array<i64: 1, 512>}, {pipeline_mode = #tpu.pipeline_mode<synchronous>, transform_indices = @transform_3, window_bounds = array<i64: 512, 128>}, {pipeline_mode = #tpu.pipeline_mode<synchronous>, transform_indices = @transform_4, window_bounds = array<i64: 1, 128>}, {transform_indices = @transform_5, window_bounds = array<i64: 16, 128>}]} {
    %c0 = arith.constant 0 : index
    %c0_0 = arith.constant 0 : index
    %0 = vector.load %arg1[%c0, %c0_0] : memref<16x1024xf32, #tpu.memory_space<vmem>>, vector<16x1024xf32>
    %c0_1 = arith.constant 0 : index
    %c0_2 = arith.constant 0 : index
    %1 = vector.load %arg2[%c0_1, %c0_2] : memref<1024x2048xf32, #tpu.memory_space<vmem>>, vector<1024x2048xf32>
    %cst = arith.constant dense<0.000000e+00> : vector<16x2048xf32>
    %2 = tpu.matmul %0, %1, %cst {dimension_numbers = #tpu.dot_dimension_numbers<[1], [0], [0], [1], [0, 0, 1, 1], [], []>} : vector<16x1024xf32>, vector<1024x2048xf32>, vector<16x2048xf32> -> vector<16x2048xf32>
    %3 = vector.extract_strided_slice %2 {offsets = [0, 0], sizes = [16, 512], strides = [1, 1]} : vector<16x2048xf32> to vector<16x512xf32>
    %4 = vector.extract_strided_slice %2 {offsets = [0, 512], sizes = [16, 512], strides = [1, 1]} : vector<16x2048xf32> to vector<16x512xf32>
    %5 = arith.maximumf %3, %4 : vector<16x512xf32>
    %6 = vector.extract_strided_slice %2 {offsets = [0, 1024], sizes = [16, 512], strides = [1, 1]} : vector<16x2048xf32> to vector<16x512xf32>
    %7 = arith.maximumf %5, %6 : vector<16x512xf32>
    %8 = vector.extract_strided_slice %2 {offsets = [0, 1536], sizes = [16, 512], strides = [1, 1]} : vector<16x2048xf32> to vector<16x512xf32>
    %9 = arith.maximumf %7, %8 : vector<16x512xf32>
    %c0_3 = arith.constant 0 : index
    %c0_4 = arith.constant 0 : index
    %10 = vector.load %arg3[%c0_3, %c0_4] : memref<1x512xf32, #tpu.memory_space<vmem>>, vector<1x512xf32>
    %11 = vector.broadcast %10 : vector<1x512xf32> to vector<16x512xf32>
    %12 = arith.addf %9, %11 : vector<16x512xf32>
    %cst_5 = arith.constant 0.000000e+00 : f32
    %13 = vector.broadcast %cst_5 : f32 to vector<16x512xf32>
    %14 = arith.maximumf %12, %13 : vector<16x512xf32>
    %c0_6 = arith.constant 0 : index
    %c0_7 = arith.constant 0 : index
    %15 = vector.load %arg4[%c0_6, %c0_7] : memref<512x128xf32, #tpu.memory_space<vmem>>, vector<512x128xf32>
    %cst_8 = arith.constant dense<0.000000e+00> : vector<16x128xf32>
    %16 = tpu.matmul %14, %15, %cst_8 {dimension_numbers = #tpu.dot_dimension_numbers<[1], [0], [0], [1], [0, 0, 1, 1], [], []>} : vector<16x512xf32>, vector<512x128xf32>, vector<16x128xf32> -> vector<16x128xf32>
    %c0_9 = arith.constant 0 : index
    %c0_10 = arith.constant 0 : index
    %17 = vector.load %arg5[%c0_9, %c0_10] : memref<1x128xf32, #tpu.memory_space<vmem>>, vector<1x128xf32>
    %18 = vector.broadcast %17 : vector<1x128xf32> to vector<16x128xf32>
    %19 = arith.addf %16, %18 : vector<16x128xf32>
    %c0_11 = arith.constant 0 : index
    %c0_12 = arith.constant 0 : index
    %20 = vector.load %arg6[%c0_11, %c0_12] : memref<16x128xf32, #tpu.memory_space<vmem>>, vector<16x128xf32>
    tpu.vector_store %arg6[%c0_11, %c0_12], %19 {strides = array<i32>} : memref<16x128xf32, #tpu.memory_space<vmem>>, vector<16x128xf32>,
    return
  }
  func.func @transform_0(%arg0: i32) -> (i32, i32) {
    %c0_i32 = arith.constant 0 : i32
    %c0_i32_0 = arith.constant 0 : i32
    return %arg0, %c0_i32 : i32, i32
  }
  func.func @transform_1(%arg0: i32) -> (i32, i32) {
    %c0_i32 = arith.constant 0 : i32
    %c0_i32_0 = arith.constant 0 : i32
    %c0_i32_1 = arith.constant 0 : i32
    return %c0_i32, %c0_i32_0 : i32, i32
  }
  func.func @transform_2(%arg0: i32) -> (i32, i32) {
    %c0_i32 = arith.constant 0 : i32
    %c0_i32_0 = arith.constant 0 : i32
    %c0_i32_1 = arith.constant 0 : i32
    return %c0_i32, %c0_i32_0 : i32, i32
  }
  func.func @transform_3(%arg0: i32) -> (i32, i32) {
    %c0_i32 = arith.constant 0 : i32
    %c0_i32_0 = arith.constant 0 : i32
    %c0_i32_1 = arith.constant 0 : i32
    return %c0_i32, %c0_i32_0 : i32, i32
  }
  func.func @transform_4(%arg0: i32) -> (i32, i32) {
    %c0_i32 = arith.constant 0 : i32
    %c0_i32_0 = arith.constant 0 : i32
    %c0_i32_1 = arith.constant 0 : i32
    return %c0_i32, %c0_i32_0 : i32, i32
  }
  func.func @transform_5(%arg0: i32) -> (i32, i32) {
    %c0_i32 = arith.constant 0 : i32
    %c0_i32_0 = arith.constant 0 : i32
    return %arg0, %c0_i32 : i32, i32
  }
}

</mosaic_0001>

<llo_original>
// kernel: _lambda_.1
$region0: #{_lambda_.1}
  #allocation0 [shape = 'u32[]', space=smem, size = 0x4, offset = 0x4, fixed_abs, tag = 'smem constant byte address 0x4 - core index']
  #allocation1 [shape = 'u32[144,128]{1,0:T(1,128)}', space=vmem, size = 0x12000, scoped, tag = 'internal scratch']
  %s0 = inlined_call_operand.vmem [shape: f32[16,1024], index: 0, kind: input, shape index: {}]
  %s1 = inlined_call_operand.vmem [shape: f32[1024,2048], index: 1, kind: input, shape index: {}]
  %s2 = inlined_call_operand.vmem [shape: f32[1,512], index: 2, kind: input, shape index: {}]
  %s3 = inlined_call_operand.vmem [shape: f32[512,128], index: 3, kind: input, shape index: {}]
  %s4 = inlined_call_operand.vmem [shape: f32[1,128], index: 4, kind: input, shape index: {}]
  %s5 = inlined_call_operand.vmem [shape: f32[16,128], index: 5, kind: output, shape index: {}]
  %s6 = sld [smem:[#allocation0]]
  $region30: #{_lambda_.1} parent=0
    _
  %s8 = ssub.s32 1, %s6
  %s9 = scalar_select 0, %s8, %s6
  // Predicated region
  $region2: #{_lambda_.1} parent=0 // pred_check
    _
  $region3: #{_lambda_.1} parent=0 // pred_check_branch
    %11 = sbr.rel (0) target = $region5
  $region4: #{_lambda_.1} parent=0 // pred_region
    _
  $region5: #{_lambda_.1} parent=0 // pred_fallthru
    _
  // Predicated region
  $region6: #{_lambda_.1} parent=0 // pred_check
    _
  $region7: #{_lambda_.1} parent=0 // pred_check_branch
    %13 = sbr.rel (0) target = $region9
  $region8: #{_lambda_.1} parent=0 // pred_region
    _
  $region9: #{_lambda_.1} parent=0 // pred_fallthru
    _
  // Predicated region
  $region10: #{_lambda_.1} parent=0 // pred_check
    _
  $region11: #{_lambda_.1} parent=0 // pred_check_branch
    %15 = sbr.rel (0) target = $region13
  $region12: #{_lambda_.1} parent=0 // pred_region
    _
  $region13: #{_lambda_.1} parent=0 // pred_fallthru
    _
  // Predicated region
  $region14: #{_lambda_.1} parent=0 // pred_check
    _
  $region15: #{_lambda_.1} parent=0 // pred_check_branch
    %17 = sbr.rel (0) target = $region17
  $region16: #{_lambda_.1} parent=0 // pred_region
    _
  $region17: #{_lambda_.1} parent=0 // pred_fallthru
    _
  // Predicated region
  $region18: #{_lambda_.1} parent=0 // pred_check
    _
  $region19: #{_lambda_.1} parent=0 // pred_check_branch
    %19 = sbr.rel (0) target = $region21
  $region20: #{_lambda_.1} parent=0 // pred_region
    _
  $region21: #{_lambda_.1} parent=0 // pred_fallthru
    _
  %v20 = vld [vmem:[%s0] sm:$0xff]
  %v21 = vld [vmem:[%s0 + $0x8] sm:$0xff]
  %v22 = vld [vmem:[%s0 + $0x10] sm:$0xff]
  %v23 = vld [vmem:[%s0 + $0x18] sm:$0xff]
  %v24 = vld [vmem:[%s0 + $0x20] sm:$0xff]
  %v25 = vld [vmem:[%s0 + $0x28] sm:$0xff]
  %v26 = vld [vmem:[%s0 + $0x30] sm:$0xff]
  %v27 = vld [vmem:[%s0 + $0x38] sm:$0xff]
  %v28 = vld [vmem:[%s0 + $0x40] sm:$0xff]
  %v29 = vld [vmem:[%s0 + $0x48] sm:$0xff]
  %v30 = vld [vmem:[%s0 + $0x50] sm:$0xff]
  %v31 = vld [vmem:[%s0 + $0x58] sm:$0xff]
  %v32 = vld [vmem:[%s0 + $0x60] sm:$0xff]
  %v33 = vld [vmem:[%s0 + $0x68] sm:$0xff]
  %v34 = vld [vmem:[%s0 + $0x70] sm:$0xff]
  %v35 = vld [vmem:[%s0 + $0x78] sm:$0xff]
  %v36 = vld [vmem:[%s1] sm:$0xff]
  %v37 = vld [vmem:[%s1 + $0x8] sm:$0xff]
  %v38 = vld [vmem:[%s1 + $0x10] sm:$0xff]
  %v39 = vld [vmem:[%s1 + $0x18] sm:$0xff]
  %v40 = vld [vmem:[%s1 + $0x20] sm:$0xff]
  %v41 = vld [vmem:[%s1 + $0x28] sm:$0xff]
  %v42 = vld [vmem:[%s1 + $0x30] sm:$0xff]
  %v43 = vld [vmem:[%s1 + $0x38] sm:$0xff]
  %v44 = vld [vmem:[%s1 + $0x40] sm:$0xff]
  %v45 = vld [vmem:[%s1 + $0x48] sm:$0xff]
  %v46 = vld [vmem:[%s1 + $0x50] sm:$0xff]
  %v47 = vld [vmem:[%s1 + $0x58] sm:$0xff]
  %v48 = vld [vmem:[%s1 + $0x60] sm:$0xff]
  %v49 = vld [vmem:[%s1 + $0x68] sm:$0xff]
  %v50 = vld [vmem:[%s1 + $0x70] sm:$0xff]
  %v51 = vld [vmem:[%s1 + $0x78] sm:$0xff]
  %v52 = vld [vmem:[%s1 + $0x80] sm:$0xff]
  %v53 = vld [vmem:[%s1 + $0x88] sm:$0xff]
  %v54 = vld [vmem:[%s1 + $0x90] sm:$0xff]
  %v55 = vld [vmem:[%s1 + $0x98] sm:$0xff]
  %v56 = vld [vmem:[%s1 + $0xa0] sm:$0xff]
  %v57 = vld [vmem:[%s1 + $0xa8] sm:$0xff]
  %v58 = vld [vmem:[%s1 + $0xb0] sm:$0xff]
  %v59 = vld [vmem:[%s1 + $0xb8] sm:$0xff]
  %v60 = vld [vmem:[%s1 + $0xc0] sm:$0xff]
  %v61 = vld [vmem:[%s1 + $0xc8] sm:$0xff]
  %v62 = vld [vmem:[%s1 + $0xd0] sm:$0xff]
  %v63 = vld [vmem:[%s1 + $0xd8] sm:$0xff]
  %v64 = vld [vmem:[%s1 + $0xe0] sm:$0xff]
  %v65 = vld [vmem:[%s1 + $0xe8] sm:$0xff]
  %v66 = vld [vmem:[%s1 + $0xf0] sm:$0xff]
  %v67 = vld [vmem:[%s1 + $0xf8] sm:$0xff]
  %v68 = vld [vmem:[%s1 + $0x100] sm:$0xff]
  %v69 = vld [vmem:[%s1 + $0x108] sm:$0xff]
  %v70 = vld [vmem:[%s1 + $0x110] sm:$0xff]
  %v71 = vld [vmem:[%s1 + $0x118] sm:$0xff]
  %v72 = vld [vmem:[%s1 + $0x120] sm:$0xff]
  %v73 = vld [vmem:[%s1 + $0x128] sm:$0xff]
  %v74 = vld [vmem:[%s1 + $0x130] sm:$0xff]
  %v75 = vld [vmem:[%s1 + $0x138] sm:$0xff]
  %v76 = vld [vmem:[%s1 + $0x140] sm:$0xff]
  %v77 = vld [vmem:[%s1 + $0x148] sm:$0xff]
  %v78 = vld [vmem:[%s1 + $0x150] sm:$0xff]
  %v79 = vld [vmem:[%s1 + $0x158] sm:$0xff]
  %v80 = vld [vmem:[%s1 + $0x160] sm:$0xff]
  %v81 = vld [vmem:[%s1 + $0x168] sm:$0xff]
  %v82 = vld [vmem:[%s1 + $0x170] sm:$0xff]
  %v83 = vld [vmem:[%s1 + $0x178] sm:$0xff]
  %v84 = vld [vmem:[%s1 + $0x180] sm:$0xff]
  %v85 = vld [vmem:[%s1 + $0x188] sm:$0xff]
  %v86 = vld [vmem:[%s1 + $0x190] sm:$0xff]
  %v87 = vld [vmem:[%s1 + $0x198] sm:$0xff]
  %v88 = vld [vmem:[%s1 + $0x1a0] sm:$0xff]
  %v89 = vld [vmem:[%s1 + $0x1a8] sm:$0xff]
  %v90 = vld [vmem:[%s1 + $0x1b0] sm:$0xff]
  %v91 = vld [vmem:[%s1 + $0x1b8] sm:$0xff]
  %v92 = vld [vmem:[%s1 + $0x1c0] sm:$0xff]
  %v93 = vld [vmem:[%s1 + $0x1c8] sm:$0xff]
  %v94 = vld [vmem:[%s1 + $0x1d0] sm:$0xff]
  %v95 = vld [vmem:[%s1 + $0x1d8] sm:$0xff]
  %v96 = vld [vmem:[%s1 + $0x1e0] sm:$0xff]
  %v97 = vld [vmem:[%s1 + $0x1e8] sm:$0xff]
  %v98 = vld [vmem:[%s1 + $0x1f0] sm:$0xff]
  %v99 = vld [vmem:[%s1 + $0x1f8] sm:$0xff]
  %v100 = vld [vmem:[%s1 + $0x200] sm:$0xff]
  %v101 = vld [vmem:[%s1 + $0x208] sm:$0xff]
  %v102 = vld [vmem:[%s1 + $0x210] sm:$0xff]
  %v103 = vld [vmem:[%s1 + $0x218] sm:$0xff]
  %v104 = vld [vmem:[%s1 + $0x220] sm:$0xff]
  %v105 = vld [vmem:[%s1 + $0x228] sm:$0xff]
  %v106 = vld [vmem:[%s1 + $0x230] sm:$0xff]
  %v107 = vld [vmem:[%s1 + $0x238] sm:$0xff]
  %v108 = vld [vmem:[%s1 + $0x240] sm:$0xff]
  %v109 = vld [vmem:[%s1 + $0x248] sm:$0xff]
  %v110 = vld [vmem:[%s1 + $0x250] sm:$0xff]
  %v111 = vld [vmem:[%s1 + $0x258] sm:$0xff]
  %v112 = vld [vmem:[%s1 + $0x260] sm:$0xff]
  %v113 = vld [vmem:[%s1 + $0x268] sm:$0xff]
  %v114 = vld [vmem:[%s1 + $0x270] sm:$0xff]
  %v115 = vld [vmem:[%s1 + $0x278] sm:$0xff]
  %v116 = vld [vmem:[%s1 + $0x280] sm:$0xff]
  %v117 = vld [vmem:[%s1 + $0x288] sm:$0xff]
  %v118 = vld [vmem:[%s1 + $0x290] sm:$0xff]
  %v119 = vld [vmem:[%s1 + $0x298] sm:$0xff]
  %v120 = vld [vmem:[%s1 + $0x2a0] sm:$0xff]
  %v121 = vld [vmem:[%s1 + $0x2a8] sm:$0xff]
  %v122 = vld [vmem:[%s1 + $0x2b0] sm:$0xff]
  %v123 = vld [vmem:[%s1 + $0x2b8] sm:$0xff]
  %v124 = vld [vmem:[%s1 + $0x2c0] sm:$0xff]
  %v125 = vld [vmem:[%s1 + $0x2c8] sm:$0xff]
  %v126 = vld [vmem:[%s1 + $0x2d0] sm:$0xff]
  %v127 = vld [vmem:[%s1 + $0x2d8] sm:$0xff]
  %v128 = vld [vmem:[%s1 + $0x2e0] sm:$0xff]
  %v129 = vld [vmem:[%s1 + $0x2e8] sm:$0xff]
  %v130 = vld [vmem:[%s1 + $0x2f0] sm:$0xff]
  %v131 = vld [vmem:[%s1 + $0x2f8] sm:$0xff]
  %v132 = vld [vmem:[%s1 + $0x300] sm:$0xff]
  %v133 = vld [vmem:[%s1 + $0x308] sm:$0xff]
  %v134 = vld [vmem:[%s1 + $0x310] sm:$0xff]
  %v135 = vld [vmem:[%s1 + $0x318] sm:$0xff]
  %v136 = vld [vmem:[%s1 + $0x320] sm:$0xff]
  %v137 = vld [vmem:[%s1 + $0x328] sm:$0xff]
  %v138 = vld [vmem:[%s1 + $0x330] sm:$0xff]
  %v139 = vld [vmem:[%s1 + $0x338] sm:$0xff]
  %v140 = vld [vmem:[%s1 + $0x340] sm:$0xff]
  %v141 = vld [vmem:[%s1 + $0x348] sm:$0xff]
  %v142 = vld [vmem:[%s1 + $0x350] sm:$0xff]
  %v143 = vld [vmem:[%s1 + $0x358] sm:$0xff]
  %v144 = vld [vmem:[%s1 + $0x360] sm:$0xff]
  %v145 = vld [vmem:[%s1 + $0x368] sm:$0xff]
  %v146 = vld [vmem:[%s1 + $0x370] sm:$0xff]
  %v147 = vld [vmem:[%s1 + $0x378] sm:$0xff]
  %v148 = vld [vmem:[%s1 + $0x380] sm:$0xff]
  %v149 = vld [vmem:[%s1 + $0x388] sm:$0xff]
  %v150 = vld [vmem:[%s1 + $0x390] sm:$0xff]
  %v151 = vld [vmem:[%s1 + $0x398] sm:$0xff]
  %v152 = vld [vmem:[%s1 + $0x3a0] sm:$0xff]
  %v153 = vld [vmem:[%s1 + $0x3a8] sm:$0xff]
  %v154 = vld [vmem:[%s1 + $0x3b0] sm:$0xff]
  %v155 = vld [vmem:[%s1 + $0x3b8] sm:$0xff]
  %v156 = vld [vmem:[%s1 + $0x3c0] sm:$0xff]
  %v157 = vld [vmem:[%s1 + $0x3c8] sm:$0xff]
  %v158 = vld [vmem:[%s1 + $0x3d0] sm:$0xff]
  %v159 = vld [vmem:[%s1 + $0x3d8] sm:$0xff]
  %v160 = vld [vmem:[%s1 + $0x3e0] sm:$0xff]
  %v161 = vld [vmem:[%s1 + $0x3e8] sm:$0xff]
  %v162 = vld [vmem:[%s1 + $0x3f0] sm:$0xff]
  %v163 = vld [vmem:[%s1 + $0x3f8] sm:$0xff]
  %v164 = vld [vmem:[%s1 + $0x400] sm:$0xff]
  %v165 = vld [vmem:[%s1 + $0x408] sm:$0xff]
  %v166 = vld [vmem:[%s1 + $0x410] sm:$0xff]
  %v167 = vld [vmem:[%s1 + $0x418] sm:$0xff]
  %v168 = vld [vmem:[%s1 + $0x420] sm:$0xff]
  %v169 = vld [vmem:[%s1 + $0x428] sm:$0xff]
  %v170 = vld [vmem:[%s1 + $0x430] sm:$0xff]
  %v171 = vld [vmem:[%s1 + $0x438] sm:$0xff]
  %v172 = vld [vmem:[%s1 + $0x440] sm:$0xff]
  %v173 = vld [vmem:[%s1 + $0x448] sm:$0xff]
  %v174 = vld [vmem:[%s1 + $0x450] sm:$0xff]
  %v175 = vld [vmem:[%s1 + $0x458] sm:$0xff]
  %v176 = vld [vmem:[%s1 + $0x460] sm:$0xff]
  %v177 = vld [vmem:[%s1 + $0x468] sm:$0xff]
  %v178 = vld [vmem:[%s1 + $0x470] sm:$0xff]
  %v179 = vld [vmem:[%s1 + $0x478] sm:$0xff]
  %v180 = vld [vmem:[%s1 + $0x480] sm:$0xff]
  %v181 = vld [vmem:[%s1 + $0x488] sm:$0xff]
  %v182 = vld [vmem:[%s1 + $0x490] sm:$0xff]
  %v183 = vld [vmem:[%s1 + $0x498] sm:$0xff]
  %v184 = vld [vmem:[%s1 + $0x4a0] sm:$0xff]
  %v185 = vld [vmem:[%s1 + $0x4a8] sm:$0xff]
  %v186 = vld [vmem:[%s1 + $0x4b0] sm:$0xff]
  %v187 = vld [vmem:[%s1 + $0x4b8] sm:$0xff]
  %v188 = vld [vmem:[%s1 + $0x4c0] sm:$0xff]
  %v189 = vld [vmem:[%s1 + $0x4c8] sm:$0xff]
  %v190 = vld [vmem:[%s1 + $0x4d0] sm:$0xff]
  %v191 = vld [vmem:[%s1 + $0x4d8] sm:$0xff]
  %v192 = vld [vmem:[%s1 + $0x4e0] sm:$0xff]
  %v193 = vld [vmem:[%s1 + $0x4e8] sm:$0xff]
  %v194 = vld [vmem:[%s1 + $0x4f0] sm:$0xff]
  %v195 = vld [vmem:[%s1 + $0x4f8] sm:$0xff]
  %v196 = vld [vmem:[%s1 + $0x500] sm:$0xff]
  %v197 = vld [vmem:[%s1 + $0x508] sm:$0xff]
  %v198 = vld [vmem:[%s1 + $0x510] sm:$0xff]
  %v199 = vld [vmem:[%s1 + $0x518] sm:$0xff]
  %v200 = vld [vmem:[%s1 + $0x520] sm:$0xff]
  %v201 = vld [vmem:[%s1 + $0x528] sm:$0xff]
  %v202 = vld [vmem:[%s1 + $0x530] sm:$0xff]
  %v203 = vld [vmem:[%s1 + $0x538] sm:$0xff]
  %v204 = vld [vmem:[%s1 + $0x540] sm:$0xff]
  %v205 = vld [vmem:[%s1 + $0x548] sm:$0xff]
  %v206 = vld [vmem:[%s1 + $0x550] sm:$0xff]
  %v207 = vld [vmem:[%s1 + $0x558] sm:$0xff]
  %v208 = vld [vmem:[%s1 + $0x560] sm:$0xff]
  %v209 = vld [vmem:[%s1 + $0x568] sm:$0xff]
  %v210 = vld [vmem:[%s1 + $0x570] sm:$0xff]
  %v211 = vld [vmem:[%s1 + $0x578] sm:$0xff]
  %v212 = vld [vmem:[%s1 + $0x580] sm:$0xff]
  %v213 = vld [vmem:[%s1 + $0x588] sm:$0xff]
  %v214 = vld [vmem:[%s1 + $0x590] sm:$0xff]
  %v215 = vld [vmem:[%s1 + $0x598] sm:$0xff]
  %v216 = vld [vmem:[%s1 + $0x5a0] sm:$0xff]
  %v217 = vld [vmem:[%s1 + $0x5a8] sm:$0xff]
  %v218 = vld [vmem:[%s1 + $0x5b0] sm:$0xff]
  %v219 = vld [vmem:[%s1 + $0x5b8] sm:$0xff]
  %v220 = vld [vmem:[%s1 + $0x5c0] sm:$0xff]
  %v221 = vld [vmem:[%s1 + $0x5c8] sm:$0xff]
  %v222 = vld [vmem:[%s1 + $0x5d0] sm:$0xff]
  %v223 = vld [vmem:[%s1 + $0x5d8] sm:$0xff]
  %v224 = vld [vmem:[%s1 + $0x5e0] sm:$0xff]
  %v225 = vld [vmem:[%s1 + $0x5e8] sm:$0xff]
  %v226 = vld [vmem:[%s1 + $0x5f0] sm:$0xff]
  %v227 = vld [vmem:[%s1 + $0x5f8] sm:$0xff]
  %v228 = vld [vmem:[%s1 + $0x600] sm:$0xff]
  %v229 = vld [vmem:[%s1 + $0x608] sm:$0xff]
  %v230 = vld [vmem:[%s1 + $0x610] sm:$0xff]
  %v231 = vld [vmem:[%s1 + $0x618] sm:$0xff]
  %v232 = vld [vmem:[%s1 + $0x620] sm:$0xff]
  %v233 = vld [vmem:[%s1 + $0x628] sm:$0xff]
  %v234 = vld [vmem:[%s1 + $0x630] sm:$0xff]
  %v235 = vld [vmem:[%s1 + $0x638] sm:$0xff]
  %v236 = vld [vmem:[%s1 + $0x640] sm:$0xff]
  %v237 = vld [vmem:[%s1 + $0x648] sm:$0xff]
  %v238 = vld [vmem:[%s1 + $0x650] sm:$0xff]
  %v239 = vld [vmem:[%s1 + $0x658] sm:$0xff]
  %v240 = vld [vmem:[%s1 + $0x660] sm:$0xff]
  %v241 = vld [vmem:[%s1 + $0x668] sm:$0xff]
  %v242 = vld [vmem:[%s1 + $0x670] sm:$0xff]
  %v243 = vld [vmem:[%s1 + $0x678] sm:$0xff]
  %v244 = vld [vmem:[%s1 + $0x680] sm:$0xff]
  %v245 = vld [vmem:[%s1 + $0x688] sm:$0xff]
  %v246 = vld [vmem:[%s1 + $0x690] sm:$0xff]
  %v247 = vld [vmem:[%s1 + $0x698] sm:$0xff]
  %v248 = vld [vmem:[%s1 + $0x6a0] sm:$0xff]
  %v249 = vld [vmem:[%s1 + $0x6a8] sm:$0xff]
  %v250 = vld [vmem:[%s1 + $0x6b0] sm:$0xff]
  %v251 = vld [vmem:[%s1 + $0x6b8] sm:$0xff]
  %v252 = vld [vmem:[%s1 + $0x6c0] sm:$0xff]
  %v253 = vld [vmem:[%s1 + $0x6c8] sm:$0xff]
  %v254 = vld [vmem:[%s1 + $0x6d0] sm:$0xff]
  %v255 = vld [vmem:[%s1 + $0x6d8] sm:$0xff]
  %v256 = vld [vmem:[%s1 + $0x6e0] sm:$0xff]
  %v257 = vld [vmem:[%s1 + $0x6e8] sm:$0xff]
  %v258 = vld [vmem:[%s1 + $0x6f0] sm:$0xff]
  %v259 = vld [vmem:[%s1 + $0x6f8] sm:$0xff]
  %v260 = vld [vmem:[%s1 + $0x700] sm:$0xff]
  %v261 = vld [vmem:[%s1 + $0x708] sm:$0xff]
  %v262 = vld [vmem:[%s1 + $0x710] sm:$0xff]
  %v263 = vld [vmem:[%s1 + $0x718] sm:$0xff]
  %v264 = vld [vmem:[%s1 + $0x720] sm:$0xff]
  %v265 = vld [vmem:[%s1 + $0x728] sm:$0xff]
  %v266 = vld [vmem:[%s1 + $0x730] sm:$0xff]
  %v267 = vld [vmem:[%s1 + $0x738] sm:$0xff]
  %v268 = vld [vmem:[%s1 + $0x740] sm:$0xff]
  %v269 = vld [vmem:[%s1 + $0x748] sm:$0xff]
  %v270 = vld [vmem:[%s1 + $0x750] sm:$0xff]
  %v271 = vld [vmem:[%s1 + $0x758] sm:$0xff]
  %v272 = vld [vmem:[%s1 + $0x760] sm:$0xff]
  %v273 = vld [vmem:[%s1 + $0x768] sm:$0xff]
  %v274 = vld [vmem:[%s1 + $0x770] sm:$0xff]
  %v275 = vld [vmem:[%s1 + $0x778] sm:$0xff]
  %v276 = vld [vmem:[%s1 + $0x780] sm:$0xff]
  %v277 = vld [vmem:[%s1 + $0x788] sm:$0xff]
  %v278 = vld [vmem:[%s1 + $0x790] sm:$0xff]
  %v279 = vld [vmem:[%s1 + $0x798] sm:$0xff]
  %v280 = vld [vmem:[%s1 + $0x7a0] sm:$0xff]
  %v281 = vld [vmem:[%s1 + $0x7a8] sm:$0xff]
  %v282 = vld [vmem:[%s1 + $0x7b0] sm:$0xff]
  %v283 = vld [vmem:[%s1 + $0x7b8] sm:$0xff]
  %v284 = vld [vmem:[%s1 + $0x7c0] sm:$0xff]
  %v285 = vld [vmem:[%s1 + $0x7c8] sm:$0xff]
  %v286 = vld [vmem:[%s1 + $0x7d0] sm:$0xff]
  %v287 = vld [vmem:[%s1 + $0x7d8] sm:$0xff]
  %v288 = vld [vmem:[%s1 + $0x7e0] sm:$0xff]
  %v289 = vld [vmem:[%s1 + $0x7e8] sm:$0xff]
  %v290 = vld [vmem:[%s1 + $0x7f0] sm:$0xff]
  %v291 = vld [vmem:[%s1 + $0x7f8] sm:$0xff]
  %v292 = vld [vmem:[%s1 + $0x800] sm:$0xff]
  %v293 = vld [vmem:[%s1 + $0x808] sm:$0xff]
  %v294 = vld [vmem:[%s1 + $0x810] sm:$0xff]
  %v295 = vld [vmem:[%s1 + $0x818] sm:$0xff]
  %v296 = vld [vmem:[%s1 + $0x820] sm:$0xff]
  %v297 = vld [vmem:[%s1 + $0x828] sm:$0xff]
  %v298 = vld [vmem:[%s1 + $0x830] sm:$0xff]
  %v299 = vld [vmem:[%s1 + $0x838] sm:$0xff]
  %v300 = vld [vmem:[%s1 + $0x840] sm:$0xff]
  %v301 = vld [vmem:[%s1 + $0x848] sm:$0xff]
  %v302 = vld [vmem:[%s1 + $0x850] sm:$0xff]
  %v303 = vld [vmem:[%s1 + $0x858] sm:$0xff]
  %v304 = vld [vmem:[%s1 + $0x860] sm:$0xff]
  %v305 = vld [vmem:[%s1 + $0x868] sm:$0xff]
  %v306 = vld [vmem:[%s1 + $0x870] sm:$0xff]
  %v307 = vld [vmem:[%s1 + $0x878] sm:$0xff]
  %v308 = vld [vmem:[%s1 + $0x880] sm:$0xff]
  %v309 = vld [vmem:[%s1 + $0x888] sm:$0xff]
  %v310 = vld [vmem:[%s1 + $0x890] sm:$0xff]
  %v311 = vld [vmem:[%s1 + $0x898] sm:$0xff]
  %v312 = vld [vmem:[%s1 + $0x8a0] sm:$0xff]
  %v313 = vld [vmem:[%s1 + $0x8a8] sm:$0xff]
  %v314 = vld [vmem:[%s1 + $0x8b0] sm:$0xff]
  %v315 = vld [vmem:[%s1 + $0x8b8] sm:$0xff]
  %v316 = vld [vmem:[%s1 + $0x8c0] sm:$0xff]
  %v317 = vld [vmem:[%s1 + $0x8c8] sm:$0xff]
  %v318 = vld [vmem:[%s1 + $0x8d0] sm:$0xff]
  %v319 = vld [vmem:[%s1 + $0x8d8] sm:$0xff]
  %v320 = vld [vmem:[%s1 + $0x8e0] sm:$0xff]
  %v321 = vld [vmem:[%s1 + $0x8e8] sm:$0xff]
  %v322 = vld [vmem:[%s1 + $0x8f0] sm:$0xff]
  %v323 = vld [vmem:[%s1 + $0x8f8] sm:$0xff]
  %v324 = vld [vmem:[%s1 + $0x900] sm:$0xff]
  %v325 = vld [vmem:[%s1 + $0x908] sm:$0xff]
  %v326 = vld [vmem:[%s1 + $0x910] sm:$0xff]
  %v327 = vld [vmem:[%s1 + $0x918] sm:$0xff]
  %v328 = vld [vmem:[%s1 + $0x920] sm:$0xff]
  %v329 = vld [vmem:[%s1 + $0x928] sm:$0xff]
  %v330 = vld [vmem:[%s1 + $0x930] sm:$0xff]
  %v331 = vld [vmem:[%s1 + $0x938] sm:$0xff]
  %v332 = vld [vmem:[%s1 + $0x940] sm:$0xff]
  %v333 = vld [vmem:[%s1 + $0x948] sm:$0xff]
  %v334 = vld [vmem:[%s1 + $0x950] sm:$0xff]
  %v335 = vld [vmem:[%s1 + $0x958] sm:$0xff]
  %v336 = vld [vmem:[%s1 + $0x960] sm:$0xff]
  %v337 = vld [vmem:[%s1 + $0x968] sm:$0xff]
  %v338 = vld [vmem:[%s1 + $0x970] sm:$0xff]
  %v339 = vld [vmem:[%s1 + $0x978] sm:$0xff]
  %v340 = vld [vmem:[%s1 + $0x980] sm:$0xff]
  %v341 = vld [vmem:[%s1 + $0x988] sm:$0xff]
  %v342 = vld [vmem:[%s1 + $0x990] sm:$0xff]
  %v343 = vld [vmem:[%s1 + $0x998] sm:$0xff]
  %v344 = vld [vmem:[%s1 + $0x9a0] sm:$0xff]
  %v345 = vld [vmem:[%s1 + $0x9a8] sm:$0xff]
  %v346 = vld [vmem:[%s1 + $0x9b0] sm:$0xff]
  %v347 = vld [vmem:[%s1 + $0x9b8] sm:$0xff]
  %v348 = vld [vmem:[%s1 + $0x9c0] sm:$0xff]
  %v349 = vld [vmem:[%s1 + $0x9c8] sm:$0xff]
  %v350 = vld [vmem:[%s1 + $0x9d0] sm:$0xff]
  %v351 = vld [vmem:[%s1 + $0x9d8] sm:$0xff]
  %v352 = vld [vmem:[%s1 + $0x9e0] sm:$0xff]
  %v353 = vld [vmem:[%s1 + $0x9e8] sm:$0xff]
  %v354 = vld [vmem:[%s1 + $0x9f0] sm:$0xff]
  %v355 = vld [vmem:[%s1 + $0x9f8] sm:$0xff]
  %v356 = vld [vmem:[%s1 + $0xa00] sm:$0xff]
  %v357 = vld [vmem:[%s1 + $0xa08] sm:$0xff]
  %v358 = vld [vmem:[%s1 + $0xa10] sm:$0xff]
  %v359 = vld [vmem:[%s1 + $0xa18] sm:$0xff]
  %v360 = vld [vmem:[%s1 + $0xa20] sm:$0xff]
  %v361 = vld [vmem:[%s1 + $0xa28] sm:$0xff]
  %v362 = vld [vmem:[%s1 + $0xa30] sm:$0xff]
  %v363 = vld [vmem:[%s1 + $0xa38] sm:$0xff]
  %v364 = vld [vmem:[%s1 + $0xa40] sm:$0xff]
  %v365 = vld [vmem:[%s1 + $0xa48] sm:$0xff]
  %v366 = vld [vmem:[%s1 + $0xa50] sm:$0xff]
  %v367 = vld [vmem:[%s1 + $0xa58] sm:$0xff]
  %v368 = vld [vmem:[%s1 + $0xa60] sm:$0xff]
  %v369 = vld [vmem:[%s1 + $0xa68] sm:$0xff]
  %v370 = vld [vmem:[%s1 + $0xa70] sm:$0xff]
  %v371 = vld [vmem:[%s1 + $0xa78] sm:$0xff]
  %v372 = vld [vmem:[%s1 + $0xa80] sm:$0xff]
  %v373 = vld [vmem:[%s1 + $0xa88] sm:$0xff]
  %v374 = vld [vmem:[%s1 + $0xa90] sm:$0xff]
  %v375 = vld [vmem:[%s1 + $0xa98] sm:$0xff]
  %v376 = vld [vmem:[%s1 + $0xaa0] sm:$0xff]
  %v377 = vld [vmem:[%s1 + $0xaa8] sm:$0xff]
  %v378 = vld [vmem:[%s1 + $0xab0] sm:$0xff]
  %v379 = vld [vmem:[%s1 + $0xab8] sm:$0xff]
  %v380 = vld [vmem:[%s1 + $0xac0] sm:$0xff]
  %v381 = vld [vmem:[%s1 + $0xac8] sm:$0xff]
  %v382 = vld [vmem:[%s1 + $0xad0] sm:$0xff]
  %v383 = vld [vmem:[%s1 + $0xad8] sm:$0xff]
  %v384 = vld [vmem:[%s1 + $0xae0] sm:$0xff]
  %v385 = vld [vmem:[%s1 + $0xae8] sm:$0xff]
  %v386 = vld [vmem:[%s1 + $0xaf0] sm:$0xff]
  %v387 = vld [vmem:[%s1 + $0xaf8] sm:$0xff]
  %v388 = vld [vmem:[%s1 + $0xb00] sm:$0xff]
  %v389 = vld [vmem:[%s1 + $0xb08] sm:$0xff]
  %v390 = vld [vmem:[%s1 + $0xb10] sm:$0xff]
  %v391 = vld [vmem:[%s1 + $0xb18] sm:$0xff]
  %v392 = vld [vmem:[%s1 + $0xb20] sm:$0xff]
  %v393 = vld [vmem:[%s1 + $0xb28] sm:$0xff]
  %v394 = vld [vmem:[%s1 + $0xb30] sm:$0xff]
  %v395 = vld [vmem:[%s1 + $0xb38] sm:$0xff]
  %v396 = vld [vmem:[%s1 + $0xb40] sm:$0xff]
  %v397 = vld [vmem:[%s1 + $0xb48] sm:$0xff]
  %v398 = vld [vmem:[%s1 + $0xb50] sm:$0xff]
  %v399 = vld [vmem:[%s1 + $0xb58] sm:$0xff]
  %v400 = vld [vmem:[%s1 + $0xb60] sm:$0xff]
  %v401 = vld [vmem:[%s1 + $0xb68] sm:$0xff]
  %v402 = vld [vmem:[%s1 + $0xb70] sm:$0xff]
  %v403 = vld [vmem:[%s1 + $0xb78] sm:$0xff]
  %v404 = vld [vmem:[%s1 + $0xb80] sm:$0xff]
  %v405 = vld [vmem:[%s1 + $0xb88] sm:$0xff]
  %v406 = vld [vmem:[%s1 + $0xb90] sm:$0xff]
  %v407 = vld [vmem:[%s1 + $0xb98] sm:$0xff]
  %v408 = vld [vmem:[%s1 + $0xba0] sm:$0xff]
  %v409 = vld [vmem:[%s1 + $0xba8] sm:$0xff]
  %v410 = vld [vmem:[%s1 + $0xbb0] sm:$0xff]
  %v411 = vld [vmem:[%s1 + $0xbb8] sm:$0xff]
  %v412 = vld [vmem:[%s1 + $0xbc0] sm:$0xff]
  %v413 = vld [vmem:[%s1 + $0xbc8] sm:$0xff]
  %v414 = vld [vmem:[%s1 + $0xbd0] sm:$0xff]
  %v415 = vld [vmem:[%s1 + $0xbd8] sm:$0xff]
  %v416 = vld [vmem:[%s1 + $0xbe0] sm:$0xff]
  %v417 = vld [vmem:[%s1 + $0xbe8] sm:$0xff]
  %v418 = vld [vmem:[%s1 + $0xbf0] sm:$0xff]
  %v419 = vld [vmem:[%s1 + $0xbf8] sm:$0xff]
  %v420 = vld [vmem:[%s1 + $0xc00] sm:$0xff]
  %v421 = vld [vmem:[%s1 + $0xc08] sm:$0xff]
  %v422 = vld [vmem:[%s1 + $0xc10] sm:$0xff]
  %v423 = vld [vmem:[%s1 + $0xc18] sm:$0xff]
  %v424 = vld [vmem:[%s1 + $0xc20] sm:$0xff]
  %v425 = vld [vmem:[%s1 + $0xc28] sm:$0xff]
  %v426 = vld [vmem:[%s1 + $0xc30] sm:$0xff]
  %v427 = vld [vmem:[%s1 + $0xc38] sm:$0xff]
  %v428 = vld [vmem:[%s1 + $0xc40] sm:$0xff]
  %v429 = vld [vmem:[%s1 + $0xc48] sm:$0xff]
  %v430 = vld [vmem:[%s1 + $0xc50] sm:$0xff]
  %v431 = vld [vmem:[%s1 + $0xc58] sm:$0xff]
  %v432 = vld [vmem:[%s1 + $0xc60] sm:$0xff]
  %v433 = vld [vmem:[%s1 + $0xc68] sm:$0xff]
  %v434 = vld [vmem:[%s1 + $0xc70] sm:$0xff]
  %v435 = vld [vmem:[%s1 + $0xc78] sm:$0xff]
  %v436 = vld [vmem:[%s1 + $0xc80] sm:$0xff]
  %v437 = vld [vmem:[%s1 + $0xc88] sm:$0xff]
  %v438 = vld [vmem:[%s1 + $0xc90] sm:$0xff]
  %v439 = vld [vmem:[%s1 + $0xc98] sm:$0xff]
  %v440 = vld [vmem:[%s1 + $0xca0] sm:$0xff]
  %v441 = vld [vmem:[%s1 + $0xca8] sm:$0xff]
  %v442 = vld [vmem:[%s1 + $0xcb0] sm:$0xff]
  %v443 = vld [vmem:[%s1 + $0xcb8] sm:$0xff]
  %v444 = vld [vmem:[%s1 + $0xcc0] sm:$0xff]
  %v445 = vld [vmem:[%s1 + $0xcc8] sm:$0xff]
  %v446 = vld [vmem:[%s1 + $0xcd0] sm:$0xff]
  %v447 = vld [vmem:[%s1 + $0xcd8] sm:$0xff]
  %v448 = vld [vmem:[%s1 + $0xce0] sm:$0xff]
  %v449 = vld [vmem:[%s1 + $0xce8] sm:$0xff]
  %v450 = vld [vmem:[%s1 + $0xcf0] sm:$0xff]
  %v451 = vld [vmem:[%s1 + $0xcf8] sm:$0xff]
  %v452 = vld [vmem:[%s1 + $0xd00] sm:$0xff]
  %v453 = vld [vmem:[%s1 + $0xd08] sm:$0xff]
  %v454 = vld [vmem:[%s1 + $0xd10] sm:$0xff]
  %v455 = vld [vmem:[%s1 + $0xd18] sm:$0xff]
  %v456 = vld [vmem:[%s1 + $0xd20] sm:$0xff]
  %v457 = vld [vmem:[%s1 + $0xd28] sm:$0xff]
  %v458 = vld [vmem:[%s1 + $0xd30] sm:$0xff]
  %v459 = vld [vmem:[%s1 + $0xd38] sm:$0xff]
  %v460 = vld [vmem:[%s1 + $0xd40] sm:$0xff]
  %v461 = vld [vmem:[%s1 + $0xd48] sm:$0xff]
  %v462 = vld [vmem:[%s1 + $0xd50] sm:$0xff]
  %v463 = vld [vmem:[%s1 + $0xd58] sm:$0xff]
  %v464 = vld [vmem:[%s1 + $0xd60] sm:$0xff]
  %v465 = vld [vmem:[%s1 + $0xd68] sm:$0xff]
  %v466 = vld [vmem:[%s1 + $0xd70] sm:$0xff]
  %v467 = vld [vmem:[%s1 + $0xd78] sm:$0xff]
  %v468 = vld [vmem:[%s1 + $0xd80] sm:$0xff]
  %v469 = vld [vmem:[%s1 + $0xd88] sm:$0xff]
  %v470 = vld [vmem:[%s1 + $0xd90] sm:$0xff]
  %v471 = vld [vmem:[%s1 + $0xd98] sm:$0xff]
  %v472 = vld [vmem:[%s1 + $0xda0] sm:$0xff]
  %v473 = vld [vmem:[%s1 + $0xda8] sm:$0xff]
  %v474 = vld [vmem:[%s1 + $0xdb0] sm:$0xff]
  %v475 = vld [vmem:[%s1 + $0xdb8] sm:$0xff]
  %v476 = vld [vmem:[%s1 + $0xdc0] sm:$0xff]
  %v477 = vld [vmem:[%s1 + $0xdc8] sm:$0xff]
  %v478 = vld [vmem:[%s1 + $0xdd0] sm:$0xff]
  %v479 = vld [vmem:[%s1 + $0xdd8] sm:$0xff]
  %v480 = vld [vmem:[%s1 + $0xde0] sm:$0xff]
  %v481 = vld [vmem:[%s1 + $0xde8] sm:$0xff]
  %v482 = vld [vmem:[%s1 + $0xdf0] sm:$0xff]
  %v483 = vld [vmem:[%s1 + $0xdf8] sm:$0xff]
  %v484 = vld [vmem:[%s1 + $0xe00] sm:$0xff]
  %v485 = vld [vmem:[%s1 + $0xe08] sm:$0xff]
  %v486 = vld [vmem:[%s1 + $0xe10] sm:$0xff]
  %v487 = vld [vmem:[%s1 + $0xe18] sm:$0xff]
  %v488 = vld [vmem:[%s1 + $0xe20] sm:$0xff]
  %v489 = vld [vmem:[%s1 + $0xe28] sm:$0xff]
  %v490 = vld [vmem:[%s1 + $0xe30] sm:$0xff]
  %v491 = vld [vmem:[%s1 + $0xe38] sm:$0xff]
  %v492 = vld [vmem:[%s1 + $0xe40] sm:$0xff]
  %v493 = vld [vmem:[%s1 + $0xe48] sm:$0xff]
  %v494 = vld [vmem:[%s1 + $0xe50] sm:$0xff]
  %v495 = vld [vmem:[%s1 + $0xe58] sm:$0xff]
  %v496 = vld [vmem:[%s1 + $0xe60] sm:$0xff]
  %v497 = vld [vmem:[%s1 + $0xe68] sm:$0xff]
  %v498 = vld [vmem:[%s1 + $0xe70] sm:$0xff]
  %v499 = vld [vmem:[%s1 + $0xe78] sm:$0xff]
  %v500 = vld [vmem:[%s1 + $0xe80] sm:$0xff]
  %v501 = vld [vmem:[%s1 + $0xe88] sm:$0xff]
  %v502 = vld [vmem:[%s1 + $0xe90] sm:$0xff]
  %v503 = vld [vmem:[%s1 + $0xe98] sm:$0xff]
  %v504 = vld [vmem:[%s1 + $0xea0] sm:$0xff]
  %v505 = vld [vmem:[%s1 + $0xea8] sm:$0xff]
  %v506 = vld [vmem:[%s1 + $0xeb0] sm:$0xff]
  %v507 = vld [vmem:[%s1 + $0xeb8] sm:$0xff]
  %v508 = vld [vmem:[%s1 + $0xec0] sm:$0xff]
  %v509 = vld [vmem:[%s1 + $0xec8] sm:$0xff]
  %v510 = vld [vmem:[%s1 + $0xed0] sm:$0xff]
  %v511 = vld [vmem:[%s1 + $0xed8] sm:$0xff]
  %v512 = vld [vmem:[%s1 + $0xee0] sm:$0xff]
  %v513 = vld [vmem:[%s1 + $0xee8] sm:$0xff]
  %v514 = vld [vmem:[%s1 + $0xef0] sm:$0xff]
  %v515 = vld [vmem:[%s1 + $0xef8] sm:$0xff]
  %v516 = vld [vmem:[%s1 + $0xf00] sm:$0xff]
  %v517 = vld [vmem:[%s1 + $0xf08] sm:$0xff]
  %v518 = vld [vmem:[%s1 + $0xf10] sm:$0xff]
  %v519 = vld [vmem:[%s1 + $0xf18] sm:$0xff]
  %v520 = vld [vmem:[%s1 + $0xf20] sm:$0xff]
  %v521 = vld [vmem:[%s1 + $0xf28] sm:$0xff]
  %v522 = vld [vmem:[%s1 + $0xf30] sm:$0xff]
  %v523 = vld [vmem:[%s1 + $0xf38] sm:$0xff]
  %v524 = vld [vmem:[%s1 + $0xf40] sm:$0xff]
  %v525 = vld [vmem:[%s1 + $0xf48] sm:$0xff]
  %v526 = vld [vmem:[%s1 + $0xf50] sm:$0xff]
  %v527 = vld [vmem:[%s1 + $0xf58] sm:$0xff]
  %v528 = vld [vmem:[%s1 + $0xf60] sm:$0xff]
  %v529 = vld [vmem:[%s1 + $0xf68] sm:$0xff]
  %v530 = vld [vmem:[%s1 + $0xf70] sm:$0xff]
  %v531 = vld [vmem:[%s1 + $0xf78] sm:$0xff]
  %v532 = vld [vmem:[%s1 + $0xf80] sm:$0xff]
  %v533 = vld [vmem:[%s1 + $0xf88] sm:$0xff]
  %v534 = vld [vmem:[%s1 + $0xf90] sm:$0xff]
  %v535 = vld [vmem:[%s1 + $0xf98] sm:$0xff]
  %v536 = vld [vmem:[%s1 + $0xfa0] sm:$0xff]
  %v537 = vld [vmem:[%s1 + $0xfa8] sm:$0xff]
  %v538 = vld [vmem:[%s1 + $0xfb0] sm:$0xff]
  %v539 = vld [vmem:[%s1 + $0xfb8] sm:$0xff]
  %v540 = vld [vmem:[%s1 + $0xfc0] sm:$0xff]
  %v541 = vld [vmem:[%s1 + $0xfc8] sm:$0xff]
  %v542 = vld [vmem:[%s1 + $0xfd0] sm:$0xff]
  %v543 = vld [vmem:[%s1 + $0xfd8] sm:$0xff]
  %v544 = vld [vmem:[%s1 + $0xfe0] sm:$0xff]
  %v545 = vld [vmem:[%s1 + $0xfe8] sm:$0xff]
  %v546 = vld [vmem:[%s1 + $0xff0] sm:$0xff]
  %v547 = vld [vmem:[%s1 + $0xff8] sm:$0xff]
  %v548 = vld [vmem:[%s1 + $0x1000] sm:$0xff]
  %v549 = vld [vmem:[%s1 + $0x1008] sm:$0xff]
  %v550 = vld [vmem:[%s1 + $0x1010] sm:$0xff]
  %v551 = vld [vmem:[%s1 + $0x1018] sm:$0xff]
  %v552 = vld [vmem:[%s1 + $0x1020] sm:$0xff]
  %v553 = vld [vmem:[%s1 + $0x1028] sm:$0xff]
  %v554 = vld [vmem:[%s1 + $0x1030] sm:$0xff]
  %v555 = vld [vmem:[%s1 + $0x1038] sm:$0xff]
  %v556 = vld [vmem:[%s1 + $0x1040] sm:$0xff]
  %v557 = vld [vmem:[%s1 + $0x1048] sm:$0xff]
  %v558 = vld [vmem:[%s1 + $0x1050] sm:$0xff]
  %v559 = vld [vmem:[%s1 + $0x1058] sm:$0xff]
  %v560 = vld [vmem:[%s1 + $0x1060] sm:$0xff]
  %v561 = vld [vmem:[%s1 + $0x1068] sm:$0xff]
  %v562 = vld [vmem:[%s1 + $0x1070] sm:$0xff]
  %v563 = vld [vmem:[%s1 + $0x1078] sm:$0xff]
  %v564 = vld [vmem:[%s1 + $0x1080] sm:$0xff]
  %v565 = vld [vmem:[%s1 + $0x1088] sm:$0xff]
  %v566 = vld [vmem:[%s1 + $0x1090] sm:$0xff]
  %v567 = vld [vmem:[%s1 + $0x1098] sm:$0xff]
  %v568 = vld [vmem:[%s1 + $0x10a0] sm:$0xff]
  %v569 = vld [vmem:[%s1 + $0x10a8] sm:$0xff]
  %v570 = vld [vmem:[%s1 + $0x10b0] sm:$0xff]
  %v571 = vld [vmem:[%s1 + $0x10b8] sm:$0xff]
  %v572 = vld [vmem:[%s1 + $0x10c0] sm:$0xff]
  %v573 = vld [vmem:[%s1 + $0x10c8] sm:$0xff]
  %v574 = vld [vmem:[%s1 + $0x10d0] sm:$0xff]
  %v575 = vld [vmem:[%s1 + $0x10d8] sm:$0xff]
  %v576 = vld [vmem:[%s1 + $0x10e0] sm:$0xff]
  %v577 = vld [vmem:[%s1 + $0x10e8] sm:$0xff]
  %v578 = vld [vmem:[%s1 + $0x10f0] sm:$0xff]
  %v579 = vld [vmem:[%s1 + $0x10f8] sm:$0xff]
  %v580 = vld [vmem:[%s1 + $0x1100] sm:$0xff]
  %v581 = vld [vmem:[%s1 + $0x1108] sm:$0xff]
  %v582 = vld [vmem:[%s1 + $0x1110] sm:$0xff]
  %v583 = vld [vmem:[%s1 + $0x1118] sm:$0xff]
  %v584 = vld [vmem:[%s1 + $0x1120] sm:$0xff]
  %v585 = vld [vmem:[%s1 + $0x1128] sm:$0xff]
  %v586 = vld [vmem:[%s1 + $0x1130] sm:$0xff]
  %v587 = vld [vmem:[%s1 + $0x1138] sm:$0xff]
  %v588 = vld [vmem:[%s1 + $0x1140] sm:$0xff]
  %v589 = vld [vmem:[%s1 + $0x1148] sm:$0xff]
  %v590 = vld [vmem:[%s1 + $0x1150] sm:$0xff]
  %v591 = vld [vmem:[%s1 + $0x1158] sm:$0xff]
  %v592 = vld [vmem:[%s1 + $0x1160] sm:$0xff]
  %v593 = vld [vmem:[%s1 + $0x1168] sm:$0xff]
  %v594 = vld [vmem:[%s1 + $0x1170] sm:$0xff]
  %v595 = vld [vmem:[%s1 + $0x1178] sm:$0xff]
  %v596 = vld [vmem:[%s1 + $0x1180] sm:$0xff]
  %v597 = vld [vmem:[%s1 + $0x1188] sm:$0xff]
  %v598 = vld [vmem:[%s1 + $0x1190] sm:$0xff]
  %v599 = vld [vmem:[%s1 + $0x1198] sm:$0xff]
  %v600 = vld [vmem:[%s1 + $0x11a0] sm:$0xff]
  %v601 = vld [vmem:[%s1 + $0x11a8] sm:$0xff]
  %v602 = vld [vmem:[%s1 + $0x11b0] sm:$0xff]
  %v603 = vld [vmem:[%s1 + $0x11b8] sm:$0xff]
  %v604 = vld [vmem:[%s1 + $0x11c0] sm:$0xff]
  %v605 = vld [vmem:[%s1 + $0x11c8] sm:$0xff]
  %v606 = vld [vmem:[%s1 + $0x11d0] sm:$0xff]
  %v607 = vld [vmem:[%s1 + $0x11d8] sm:$0xff]
  %v608 = vld [vmem:[%s1 + $0x11e0] sm:$0xff]
  %v609 = vld [vmem:[%s1 + $0x11e8] sm:$0xff]
  %v610 = vld [vmem:[%s1 + $0x11f0] sm:$0xff]
  %v611 = vld [vmem:[%s1 + $0x11f8] sm:$0xff]
  %v612 = vld [vmem:[%s1 + $0x1200] sm:$0xff]
  %v613 = vld [vmem:[%s1 + $0x1208] sm:$0xff]
  %v614 = vld [vmem:[%s1 + $0x1210] sm:$0xff]
  %v615 = vld [vmem:[%s1 + $0x1218] sm:$0xff]
  %v616 = vld [vmem:[%s1 + $0x1220] sm:$0xff]
  %v617 = vld [vmem:[%s1 + $0x1228] sm:$0xff]
  %v618 = vld [vmem:[%s1 + $0x1230] sm:$0xff]
  %v619 = vld [vmem:[%s1 + $0x1238] sm:$0xff]
  %v620 = vld [vmem:[%s1 + $0x1240] sm:$0xff]
  %v621 = vld [vmem:[%s1 + $0x1248] sm:$0xff]
  %v622 = vld [vmem:[%s1 + $0x1250] sm:$0xff]
  %v623 = vld [vmem:[%s1 + $0x1258] sm:$0xff]
  %v624 = vld [vmem:[%s1 + $0x1260] sm:$0xff]
  %v625 = vld [vmem:[%s1 + $0x1268] sm:$0xff]
  %v626 = vld [vmem:[%s1 + $0x1270] sm:$0xff]
  %v627 = vld [vmem:[%s1 + $0x1278] sm:$0xff]
  %v628 = vld [vmem:[%s1 + $0x1280] sm:$0xff]
  %v629 = vld [vmem:[%s1 + $0x1288] sm:$0xff]
  %v630 = vld [vmem:[%s1 + $0x1290] sm:$0xff]
  %v631 = vld [vmem:[%s1 + $0x1298] sm:$0xff]
  %v632 = vld [vmem:[%s1 + $0x12a0] sm:$0xff]
  %v633 = vld [vmem:[%s1 + $0x12a8] sm:$0xff]
  %v634 = vld [vmem:[%s1 + $0x12b0] sm:$0xff]
  %v635 = vld [vmem:[%s1 + $0x12b8] sm:$0xff]
  %v636 = vld [vmem:[%s1 + $0x12c0] sm:$0xff]
  %v637 = vld [vmem:[%s1 + $0x12c8] sm:$0xff]
  %v638 = vld [vmem:[%s1 + $0x12d0] sm:$0xff]
  %v639 = vld [vmem:[%s1 + $0x12d8] sm:$0xff]
  %v640 = vld [vmem:[%s1 + $0x12e0] sm:$0xff]
  %v641 = vld [vmem:[%s1 + $0x12e8] sm:$0xff]
  %v642 = vld [vmem:[%s1 + $0x12f0] sm:$0xff]
  %v643 = vld [vmem:[%s1 + $0x12f8] sm:$0xff]
  %v644 = vld [vmem:[%s1 + $0x1300] sm:$0xff]
  %v645 = vld [vmem:[%s1 + $0x1308] sm:$0xff]
  %v646 = vld [vmem:[%s1 + $0x1310] sm:$0xff]
  %v647 = vld [vmem:[%s1 + $0x1318] sm:$0xff]
  %v648 = vld [vmem:[%s1 + $0x1320] sm:$0xff]
  %v649 = vld [vmem:[%s1 + $0x1328] sm:$0xff]
  %v650 = vld [vmem:[%s1 + $0x1330] sm:$0xff]
  %v651 = vld [vmem:[%s1 + $0x1338] sm:$0xff]
  %v652 = vld [vmem:[%s1 + $0x1340] sm:$0xff]
  %v653 = vld [vmem:[%s1 + $0x1348] sm:$0xff]
  %v654 = vld [vmem:[%s1 + $0x1350] sm:$0xff]
  %v655 = vld [vmem:[%s1 + $0x1358] sm:$0xff]
  %v656 = vld [vmem:[%s1 + $0x1360] sm:$0xff]
  %v657 = vld [vmem:[%s1 + $0x1368] sm:$0xff]
  %v658 = vld [vmem:[%s1 + $0x1370] sm:$0xff]
  %v659 = vld [vmem:[%s1 + $0x1378] sm:$0xff]
  %v660 = vld [vmem:[%s1 + $0x1380] sm:$0xff]
  %v661 = vld [vmem:[%s1 + $0x1388] sm:$0xff]
  %v662 = vld [vmem:[%s1 + $0x1390] sm:$0xff]
  %v663 = vld [vmem:[%s1 + $0x1398] sm:$0xff]
  %v664 = vld [vmem:[%s1 + $0x13a0] sm:$0xff]
  %v665 = vld [vmem:[%s1 + $0x13a8] sm:$0xff]
  %v666 = vld [vmem:[%s1 + $0x13b0] sm:$0xff]
  %v667 = vld [vmem:[%s1 + $0x13b8] sm:$0xff]
  %v668 = vld [vmem:[%s1 + $0x13c0] sm:$0xff]
  %v669 = vld [vmem:[%s1 + $0x13c8] sm:$0xff]
  %v670 = vld [vmem:[%s1 + $0x13d0] sm:$0xff]
  %v671 = vld [vmem:[%s1 + $0x13d8] sm:$0xff]
  %v672 = vld [vmem:[%s1 + $0x13e0] sm:$0xff]
  %v673 = vld [vmem:[%s1 + $0x13e8] sm:$0xff]
  %v674 = vld [vmem:[%s1 + $0x13f0] sm:$0xff]
  %v675 = vld [vmem:[%s1 + $0x13f8] sm:$0xff]
  %v676 = vld [vmem:[%s1 + $0x1400] sm:$0xff]
  %v677 = vld [vmem:[%s1 + $0x1408] sm:$0xff]
  %v678 = vld [vmem:[%s1 + $0x1410] sm:$0xff]
  %v679 = vld [vmem:[%s1 + $0x1418] sm:$0xff]
  %v680 = vld [vmem:[%s1 + $0x1420] sm:$0xff]
  %v681 = vld [vmem:[%s1 + $0x1428] sm:$0xff]
  %v682 = vld [vmem:[%s1 + $0x1430] sm:$0xff]
  %v683 = vld [vmem:[%s1 + $0x1438] sm:$0xff]
  %v684 = vld [vmem:[%s1 + $0x1440] sm:$0xff]
  %v685 = vld [vmem:[%s1 + $0x1448] sm:$0xff]
  %v686 = vld [vmem:[%s1 + $0x1450] sm:$0xff]
  %v687 = vld [vmem:[%s1 + $0x1458] sm:$0xff]
  %v688 = vld [vmem:[%s1 + $0x1460] sm:$0xff]
  %v689 = vld [vmem:[%s1 + $0x1468] sm:$0xff]
  %v690 = vld [vmem:[%s1 + $0x1470] sm:$0xff]
  %v691 = vld [vmem:[%s1 + $0x1478] sm:$0xff]
  %v692 = vld [vmem:[%s1 + $0x1480] sm:$0xff]
  %v693 = vld [vmem:[%s1 + $0x1488] sm:$0xff]
  %v694 = vld [vmem:[%s1 + $0x1490] sm:$0xff]
  %v695 = vld [vmem:[%s1 + $0x1498] sm:$0xff]
  %v696 = vld [vmem:[%s1 + $0x14a0] sm:$0xff]
  %v697 = vld [vmem:[%s1 + $0x14a8] sm:$0xff]
  %v698 = vld [vmem:[%s1 + $0x14b0] sm:$0xff]
  %v699 = vld [vmem:[%s1 + $0x14b8] sm:$0xff]
  %v700 = vld [vmem:[%s1 + $0x14c0] sm:$0xff]
  %v701 = vld [vmem:[%s1 + $0x14c8] sm:$0xff]
  %v702 = vld [vmem:[%s1 + $0x14d0] sm:$0xff]
  %v703 = vld [vmem:[%s1 + $0x14d8] sm:$0xff]
  %v704 = vld [vmem:[%s1 + $0x14e0] sm:$0xff]
  %v705 = vld [vmem:[%s1 + $0x14e8] sm:$0xff]
  %v706 = vld [vmem:[%s1 + $0x14f0] sm:$0xff]
  %v707 = vld [vmem:[%s1 + $0x14f8] sm:$0xff]
  %v708 = vld [vmem:[%s1 + $0x1500] sm:$0xff]
  %v709 = vld [vmem:[%s1 + $0x1508] sm:$0xff]
  %v710 = vld [vmem:[%s1 + $0x1510] sm:$0xff]
  %v711 = vld [vmem:[%s1 + $0x1518] sm:$0xff]
  %v712 = vld [vmem:[%s1 + $0x1520] sm:$0xff]
  %v713 = vld [vmem:[%s1 + $0x1528] sm:$0xff]
  %v714 = vld [vmem:[%s1 + $0x1530] sm:$0xff]
  %v715 = vld [vmem:[%s1 + $0x1538] sm:$0xff]
  %v716 = vld [vmem:[%s1 + $0x1540] sm:$0xff]
  %v717 = vld [vmem:[%s1 + $0x1548] sm:$0xff]
  %v718 = vld [vmem:[%s1 + $0x1550] sm:$0xff]
  %v719 = vld [vmem:[%s1 + $0x1558] sm:$0xff]
  %v720 = vld [vmem:[%s1 + $0x1560] sm:$0xff]
  %v721 = vld [vmem:[%s1 + $0x1568] sm:$0xff]
  %v722 = vld [vmem:[%s1 + $0x1570] sm:$0xff]
  %v723 = vld [vmem:[%s1 + $0x1578] sm:$0xff]
  %v724 = vld [vmem:[%s1 + $0x1580] sm:$0xff]
  %v725 = vld [vmem:[%s1 + $0x1588] sm:$0xff]
  %v726 = vld [vmem:[%s1 + $0x1590] sm:$0xff]
  %v727 = vld [vmem:[%s1 + $0x1598] sm:$0xff]
  %v728 = vld [vmem:[%s1 + $0x15a0] sm:$0xff]
  %v729 = vld [vmem:[%s1 + $0x15a8] sm:$0xff]
  %v730 = vld [vmem:[%s1 + $0x15b0] sm:$0xff]
  %v731 = vld [vmem:[%s1 + $0x15b8] sm:$0xff]
  %v732 = vld [vmem:[%s1 + $0x15c0] sm:$0xff]
  %v733 = vld [vmem:[%s1 + $0x15c8] sm:$0xff]
  %v734 = vld [vmem:[%s1 + $0x15d0] sm:$0xff]
  %v735 = vld [vmem:[%s1 + $0x15d8] sm:$0xff]
  %v736 = vld [vmem:[%s1 + $0x15e0] sm:$0xff]
  %v737 = vld [vmem:[%s1 + $0x15e8] sm:$0xff]
  %v738 = vld [vmem:[%s1 + $0x15f0] sm:$0xff]
  %v739 = vld [vmem:[%s1 + $0x15f8] sm:$0xff]
  %v740 = vld [vmem:[%s1 + $0x1600] sm:$0xff]
  %v741 = vld [vmem:[%s1 + $0x1608] sm:$0xff]
  %v742 = vld [vmem:[%s1 + $0x1610] sm:$0xff]
  %v743 = vld [vmem:[%s1 + $0x1618] sm:$0xff]
  %v744 = vld [vmem:[%s1 + $0x1620] sm:$0xff]
  %v745 = vld [vmem:[%s1 + $0x1628] sm:$0xff]
  %v746 = vld [vmem:[%s1 + $0x1630] sm:$0xff]
  %v747 = vld [vmem:[%s1 + $0x1638] sm:$0xff]
  %v748 = vld [vmem:[%s1 + $0x1640] sm:$0xff]
  %v749 = vld [vmem:[%s1 + $0x1648] sm:$0xff]
  %v750 = vld [vmem:[%s1 + $0x1650] sm:$0xff]
  %v751 = vld [vmem:[%s1 + $0x1658] sm:$0xff]
  %v752 = vld [vmem:[%s1 + $0x1660] sm:$0xff]
  %v753 = vld [vmem:[%s1 + $0x1668] sm:$0xff]
  %v754 = vld [vmem:[%s1 + $0x1670] sm:$0xff]
  %v755 = vld [vmem:[%s1 + $0x1678] sm:$0xff]
  %v756 = vld [vmem:[%s1 + $0x1680] sm:$0xff]
  %v757 = vld [vmem:[%s1 + $0x1688] sm:$0xff]
  %v758 = vld [vmem:[%s1 + $0x1690] sm:$0xff]
  %v759 = vld [vmem:[%s1 + $0x1698] sm:$0xff]
  %v760 = vld [vmem:[%s1 + $0x16a0] sm:$0xff]
  %v761 = vld [vmem:[%s1 + $0x16a8] sm:$0xff]
  %v762 = vld [vmem:[%s1 + $0x16b0] sm:$0xff]
  %v763 = vld [vmem:[%s1 + $0x16b8] sm:$0xff]
  %v764 = vld [vmem:[%s1 + $0x16c0] sm:$0xff]
  %v765 = vld [vmem:[%s1 + $0x16c8] sm:$0xff]
  %v766 = vld [vmem:[%s1 + $0x16d0] sm:$0xff]
  %v767 = vld [vmem:[%s1 + $0x16d8] sm:$0xff]
  %v768 = vld [vmem:[%s1 + $0x16e0] sm:$0xff]
  %v769 = vld [vmem:[%s1 + $0x16e8] sm:$0xff]
  %v770 = vld [vmem:[%s1 + $0x16f0] sm:$0xff]
  %v771 = vld [vmem:[%s1 + $0x16f8] sm:$0xff]
  %v772 = vld [vmem:[%s1 + $0x1700] sm:$0xff]
  %v773 = vld [vmem:[%s1 + $0x1708] sm:$0xff]
  %v774 = vld [vmem:[%s1 + $0x1710] sm:$0xff]
  %v775 = vld [vmem:[%s1 + $0x1718] sm:$0xff]
  %v776 = vld [vmem:[%s1 + $0x1720] sm:$0xff]
  %v777 = vld [vmem:[%s1 + $0x1728] sm:$0xff]
  %v778 = vld [vmem:[%s1 + $0x1730] sm:$0xff]
  %v779 = vld [vmem:[%s1 + $0x1738] sm:$0xff]
  %v780 = vld [vmem:[%s1 + $0x1740] sm:$0xff]
  %v781 = vld [vmem:[%s1 + $0x1748] sm:$0xff]
  %v782 = vld [vmem:[%s1 + $0x1750] sm:$0xff]
  %v783 = vld [vmem:[%s1 + $0x1758] sm:$0xff]
  %v784 = vld [vmem:[%s1 + $0x1760] sm:$0xff]
  %v785 = vld [vmem:[%s1 + $0x1768] sm:$0xff]
  %v786 = vld [vmem:[%s1 + $0x1770] sm:$0xff]
  %v787 = vld [vmem:[%s1 + $0x1778] sm:$0xff]
  %v788 = vld [vmem:[%s1 + $0x1780] sm:$0xff]
  %v789 = vld [vmem:[%s1 + $0x1788] sm:$0xff]
  %v790 = vld [vmem:[%s1 + $0x1790] sm:$0xff]
  %v791 = vld [vmem:[%s1 + $0x1798] sm:$0xff]
  %v792 = vld [vmem:[%s1 + $0x17a0] sm:$0xff]
  %v793 = vld [vmem:[%s1 + $0x17a8] sm:$0xff]
  %v794 = vld [vmem:[%s1 + $0x17b0] sm:$0xff]
  %v795 = vld [vmem:[%s1 + $0x17b8] sm:$0xff]
  %v796 = vld [vmem:[%s1 + $0x17c0] sm:$0xff]
  %v797 = vld [vmem:[%s1 + $0x17c8] sm:$0xff]
  %v798 = vld [vmem:[%s1 + $0x17d0] sm:$0xff]
  %v799 = vld [vmem:[%s1 + $0x17d8] sm:$0xff]
  %v800 = vld [vmem:[%s1 + $0x17e0] sm:$0xff]
  %v801 = vld [vmem:[%s1 + $0x17e8] sm:$0xff]
  %v802 = vld [vmem:[%s1 + $0x17f0] sm:$0xff]
  %v803 = vld [vmem:[%s1 + $0x17f8] sm:$0xff]
  %v804 = vld [vmem:[%s1 + $0x1800] sm:$0xff]
  %v805 = vld [vmem:[%s1 + $0x1808] sm:$0xff]
  %v806 = vld [vmem:[%s1 + $0x1810] sm:$0xff]
  %v807 = vld [vmem:[%s1 + $0x1818] sm:$0xff]
  %v808 = vld [vmem:[%s1 + $0x1820] sm:$0xff]
  %v809 = vld [vmem:[%s1 + $0x1828] sm:$0xff]
  %v810 = vld [vmem:[%s1 + $0x1830] sm:$0xff]
  %v811 = vld [vmem:[%s1 + $0x1838] sm:$0xff]
  %v812 = vld [vmem:[%s1 + $0x1840] sm:$0xff]
  %v813 = vld [vmem:[%s1 + $0x1848] sm:$0xff]
  %v814 = vld [vmem:[%s1 + $0x1850] sm:$0xff]
  %v815 = vld [vmem:[%s1 + $0x1858] sm:$0xff]
  %v816 = vld [vmem:[%s1 + $0x1860] sm:$0xff]
  %v817 = vld [vmem:[%s1 + $0x1868] sm:$0xff]
  %v818 = vld [vmem:[%s1 + $0x1870] sm:$0xff]
  %v819 = vld [vmem:[%s1 + $0x1878] sm:$0xff]
  %v820 = vld [vmem:[%s1 + $0x1880] sm:$0xff]
  %v821 = vld [vmem:[%s1 + $0x1888] sm:$0xff]
  %v822 = vld [vmem:[%s1 + $0x1890] sm:$0xff]
  %v823 = vld [vmem:[%s1 + $0x1898] sm:$0xff]
  %v824 = vld [vmem:[%s1 + $0x18a0] sm:$0xff]
  %v825 = vld [vmem:[%s1 + $0x18a8] sm:$0xff]
  %v826 = vld [vmem:[%s1 + $0x18b0] sm:$0xff]
  %v827 = vld [vmem:[%s1 + $0x18b8] sm:$0xff]
  %v828 = vld [vmem:[%s1 + $0x18c0] sm:$0xff]
  %v829 = vld [vmem:[%s1 + $0x18c8] sm:$0xff]
  %v830 = vld [vmem:[%s1 + $0x18d0] sm:$0xff]
  %v831 = vld [vmem:[%s1 + $0x18d8] sm:$0xff]
  %v832 = vld [vmem:[%s1 + $0x18e0] sm:$0xff]
  %v833 = vld [vmem:[%s1 + $0x18e8] sm:$0xff]
  %v834 = vld [vmem:[%s1 + $0x18f0] sm:$0xff]
  %v835 = vld [vmem:[%s1 + $0x18f8] sm:$0xff]
  %v836 = vld [vmem:[%s1 + $0x1900] sm:$0xff]
  %v837 = vld [vmem:[%s1 + $0x1908] sm:$0xff]
  %v838 = vld [vmem:[%s1 + $0x1910] sm:$0xff]
  %v839 = vld [vmem:[%s1 + $0x1918] sm:$0xff]
  %v840 = vld [vmem:[%s1 + $0x1920] sm:$0xff]
  %v841 = vld [vmem:[%s1 + $0x1928] sm:$0xff]
  %v842 = vld [vmem:[%s1 + $0x1930] sm:$0xff]
  %v843 = vld [vmem:[%s1 + $0x1938] sm:$0xff]
  %v844 = vld [vmem:[%s1 + $0x1940] sm:$0xff]
  %v845 = vld [vmem:[%s1 + $0x1948] sm:$0xff]
  %v846 = vld [vmem:[%s1 + $0x1950] sm:$0xff]
  %v847 = vld [vmem:[%s1 + $0x1958] sm:$0xff]
  %v848 = vld [vmem:[%s1 + $0x1960] sm:$0xff]
  %v849 = vld [vmem:[%s1 + $0x1968] sm:$0xff]
  %v850 = vld [vmem:[%s1 + $0x1970] sm:$0xff]
  %v851 = vld [vmem:[%s1 + $0x1978] sm:$0xff]
  %v852 = vld [vmem:[%s1 + $0x1980] sm:$0xff]
  %v853 = vld [vmem:[%s1 + $0x1988] sm:$0xff]
  %v854 = vld [vmem:[%s1 + $0x1990] sm:$0xff]
  %v855 = vld [vmem:[%s1 + $0x1998] sm:$0xff]
  %v856 = vld [vmem:[%s1 + $0x19a0] sm:$0xff]
  %v857 = vld [vmem:[%s1 + $0x19a8] sm:$0xff]
  %v858 = vld [vmem:[%s1 + $0x19b0] sm:$0xff]
  %v859 = vld [vmem:[%s1 + $0x19b8] sm:$0xff]
  %v860 = vld [vmem:[%s1 + $0x19c0] sm:$0xff]
  %v861 = vld [vmem:[%s1 + $0x19c8] sm:$0xff]
  %v862 = vld [vmem:[%s1 + $0x19d0] sm:$0xff]
  %v863 = vld [vmem:[%s1 + $0x19d8] sm:$0xff]
  %v864 = vld [vmem:[%s1 + $0x19e0] sm:$0xff]
  %v865 = vld [vmem:[%s1 + $0x19e8] sm:$0xff]
  %v866 = vld [vmem:[%s1 + $0x19f0] sm:$0xff]
  %v867 = vld [vmem:[%s1 + $0x19f8] sm:$0xff]
  %v868 = vld [vmem:[%s1 + $0x1a00] sm:$0xff]
  %v869 = vld [vmem:[%s1 + $0x1a08] sm:$0xff]
  %v870 = vld [vmem:[%s1 + $0x1a10] sm:$0xff]
  %v871 = vld [vmem:[%s1 + $0x1a18] sm:$0xff]
  %v872 = vld [vmem:[%s1 + $0x1a20] sm:$0xff]
  %v873 = vld [vmem:[%s1 + $0x1a28] sm:$0xff]
  %v874 = vld [vmem:[%s1 + $0x1a30] sm:$0xff]
  %v875 = vld [vmem:[%s1 + $0x1a38] sm:$0xff]
  %v876 = vld [vmem:[%s1 + $0x1a40] sm:$0xff]
  %v877 = vld [vmem:[%s1 + $0x1a48] sm:$0xff]
  %v878 = vld [vmem:[%s1 + $0x1a50] sm:$0xff]
  %v879 = vld [vmem:[%s1 + $0x1a58] sm:$0xff]
  %v880 = vld [vmem:[%s1 + $0x1a60] sm:$0xff]
  %v881 = vld [vmem:[%s1 + $0x1a68] sm:$0xff]
  %v882 = vld [vmem:[%s1 + $0x1a70] sm:$0xff]
  %v883 = vld [vmem:[%s1 + $0x1a78] sm:$0xff]
  %v884 = vld [vmem:[%s1 + $0x1a80] sm:$0xff]
  %v885 = vld [vmem:[%s1 + $0x1a88] sm:$0xff]
  %v886 = vld [vmem:[%s1 + $0x1a90] sm:$0xff]
  %v887 = vld [vmem:[%s1 + $0x1a98] sm:$0xff]
  %v888 = vld [vmem:[%s1 + $0x1aa0] sm:$0xff]
  %v889 = vld [vmem:[%s1 + $0x1aa8] sm:$0xff]
  %v890 = vld [vmem:[%s1 + $0x1ab0] sm:$0xff]
  %v891 = vld [vmem:[%s1 + $0x1ab8] sm:$0xff]
  %v892 = vld [vmem:[%s1 + $0x1ac0] sm:$0xff]
  %v893 = vld [vmem:[%s1 + $0x1ac8] sm:$0xff]
  %v894 = vld [vmem:[%s1 + $0x1ad0] sm:$0xff]
  %v895 = vld [vmem:[%s1 + $0x1ad8] sm:$0xff]
  %v896 = vld [vmem:[%s1 + $0x1ae0] sm:$0xff]
  %v897 = vld [vmem:[%s1 + $0x1ae8] sm:$0xff]
  %v898 = vld [vmem:[%s1 + $0x1af0] sm:$0xff]
  %v899 = vld [vmem:[%s1 + $0x1af8] sm:$0xff]
  %v900 = vld [vmem:[%s1 + $0x1b00] sm:$0xff]
  %v901 = vld [vmem:[%s1 + $0x1b08] sm:$0xff]
  %v902 = vld [vmem:[%s1 + $0x1b10] sm:$0xff]
  %v903 = vld [vmem:[%s1 + $0x1b18] sm:$0xff]
  %v904 = vld [vmem:[%s1 + $0x1b20] sm:$0xff]
  %v905 = vld [vmem:[%s1 + $0x1b28] sm:$0xff]
  %v906 = vld [vmem:[%s1 + $0x1b30] sm:$0xff]
  %v907 = vld [vmem:[%s1 + $0x1b38] sm:$0xff]
  %v908 = vld [vmem:[%s1 + $0x1b40] sm:$0xff]
  %v909 = vld [vmem:[%s1 + $0x1b48] sm:$0xff]
  %v910 = vld [vmem:[%s1 + $0x1b50] sm:$0xff]
  %v911 = vld [vmem:[%s1 + $0x1b58] sm:$0xff]
  %v912 = vld [vmem:[%s1 + $0x1b60] sm:$0xff]
  %v913 = vld [vmem:[%s1 + $0x1b68] sm:$0xff]
  %v914 = vld [vmem:[%s1 + $0x1b70] sm:$0xff]
  %v915 = vld [vmem:[%s1 + $0x1b78] sm:$0xff]
  %v916 = vld [vmem:[%s1 + $0x1b80] sm:$0xff]
  %v917 = vld [vmem:[%s1 + $0x1b88] sm:$0xff]
  %v918 = vld [vmem:[%s1 + $0x1b90] sm:$0xff]
  %v919 = vld [vmem:[%s1 + $0x1b98] sm:$0xff]
  %v920 = vld [vmem:[%s1 + $0x1ba0] sm:$0xff]
  %v921 = vld [vmem:[%s1 + $0x1ba8] sm:$0xff]
  %v922 = vld [vmem:[%s1 + $0x1bb0] sm:$0xff]
  %v923 = vld [vmem:[%s1 + $0x1bb8] sm:$0xff]
  %v924 = vld [vmem:[%s1 + $0x1bc0] sm:$0xff]
  %v925 = vld [vmem:[%s1 + $0x1bc8] sm:$0xff]
  %v926 = vld [vmem:[%s1 + $0x1bd0] sm:$0xff]
  %v927 = vld [vmem:[%s1 + $0x1bd8] sm:$0xff]
  %v928 = vld [vmem:[%s1 + $0x1be0] sm:$0xff]
  %v929 = vld [vmem:[%s1 + $0x1be8] sm:$0xff]
  %v930 = vld [vmem:[%s1 + $0x1bf0] sm:$0xff]
  %v931 = vld [vmem:[%s1 + $0x1bf8] sm:$0xff]
  %v932 = vld [vmem:[%s1 + $0x1c00] sm:$0xff]
  %v933 = vld [vmem:[%s1 + $0x1c08] sm:$0xff]
  %v934 = vld [vmem:[%s1 + $0x1c10] sm:$0xff]
  %v935 = vld [vmem:[%s1 + $0x1c18] sm:$0xff]
  %v936 = vld [vmem:[%s1 + $0x1c20] sm:$0xff]
  %v937 = vld [vmem:[%s1 + $0x1c28] sm:$0xff]
  %v938 = vld [vmem:[%s1 + $0x1c30] sm:$0xff]
  %v939 = vld [vmem:[%s1 + $0x1c38] sm:$0xff]
  %v940 = vld [vmem:[%s1 + $0x1c40] sm:$0xff]
  %v941 = vld [vmem:[%s1 + $0x1c48] sm:$0xff]
  %v942 = vld [vmem:[%s1 + $0x1c50] sm:$0xff]
  %v943 = vld [vmem:[%s1 + $0x1c58] sm:$0xff]
  %v944 = vld [vmem:[%s1 + $0x1c60] sm:$0xff]
  %v945 = vld [vmem:[%s1 + $0x1c68] sm:$0xff]
  %v946 = vld [vmem:[%s1 + $0x1c70] sm:$0xff]
  %v947 = vld [vmem:[%s1 + $0x1c78] sm:$0xff]
  %v948 = vld [vmem:[%s1 + $0x1c80] sm:$0xff]
  %v949 = vld [vmem:[%s1 + $0x1c88] sm:$0xff]
  %v950 = vld [vmem:[%s1 + $0x1c90] sm:$0xff]
  %v951 = vld [vmem:[%s1 + $0x1c98] sm:$0xff]
  %v952 = vld [vmem:[%s1 + $0x1ca0] sm:$0xff]
  %v953 = vld [vmem:[%s1 + $0x1ca8] sm:$0xff]
  %v954 = vld [vmem:[%s1 + $0x1cb0] sm:$0xff]
  %v955 = vld [vmem:[%s1 + $0x1cb8] sm:$0xff]
  %v956 = vld [vmem:[%s1 + $0x1cc0] sm:$0xff]
  %v957 = vld [vmem:[%s1 + $0x1cc8] sm:$0xff]
  %v958 = vld [vmem:[%s1 + $0x1cd0] sm:$0xff]
  %v959 = vld [vmem:[%s1 + $0x1cd8] sm:$0xff]
  %v960 = vld [vmem:[%s1 + $0x1ce0] sm:$0xff]
  %v961 = vld [vmem:[%s1 + $0x1ce8] sm:$0xff]
  %v962 = vld [vmem:[%s1 + $0x1cf0] sm:$0xff]
  %v963 = vld [vmem:[%s1 + $0x1cf8] sm:$0xff]
  %v964 = vld [vmem:[%s1 + $0x1d00] sm:$0xff]
  %v965 = vld [vmem:[%s1 + $0x1d08] sm:$0xff]
  %v966 = vld [vmem:[%s1 + $0x1d10] sm:$0xff]
  %v967 = vld [vmem:[%s1 + $0x1d18] sm:$0xff]
  %v968 = vld [vmem:[%s1 + $0x1d20] sm:$0xff]
  %v969 = vld [vmem:[%s1 + $0x1d28] sm:$0xff]
  %v970 = vld [vmem:[%s1 + $0x1d30] sm:$0xff]
  %v971 = vld [vmem:[%s1 + $0x1d38] sm:$0xff]
  %v972 = vld [vmem:[%s1 + $0x1d40] sm:$0xff]
  %v973 = vld [vmem:[%s1 + $0x1d48] sm:$0xff]
  %v974 = vld [vmem:[%s1 + $0x1d50] sm:$0xff]
  %v975 = vld [vmem:[%s1 + $0x1d58] sm:$0xff]
  %v976 = vld [vmem:[%s1 + $0x1d60] sm:$0xff]
  %v977 = vld [vmem:[%s1 + $0x1d68] sm:$0xff]
  %v978 = vld [vmem:[%s1 + $0x1d70] sm:$0xff]
  %v979 = vld [vmem:[%s1 + $0x1d78] sm:$0xff]
  %v980 = vld [vmem:[%s1 + $0x1d80] sm:$0xff]
  %v981 = vld [vmem:[%s1 + $0x1d88] sm:$0xff]
  %v982 = vld [vmem:[%s1 + $0x1d90] sm:$0xff]
  %v983 = vld [vmem:[%s1 + $0x1d98] sm:$0xff]
  %v984 = vld [vmem:[%s1 + $0x1da0] sm:$0xff]
  %v985 = vld [vmem:[%s1 + $0x1da8] sm:$0xff]
  %v986 = vld [vmem:[%s1 + $0x1db0] sm:$0xff]
  %v987 = vld [vmem:[%s1 + $0x1db8] sm:$0xff]
  %v988 = vld [vmem:[%s1 + $0x1dc0] sm:$0xff]
  %v989 = vld [vmem:[%s1 + $0x1dc8] sm:$0xff]
  %v990 = vld [vmem:[%s1 + $0x1dd0] sm:$0xff]
  %v991 = vld [vmem:[%s1 + $0x1dd8] sm:$0xff]
  %v992 = vld [vmem:[%s1 + $0x1de0] sm:$0xff]
  %v993 = vld [vmem:[%s1 + $0x1de8] sm:$0xff]
  %v994 = vld [vmem:[%s1 + $0x1df0] sm:$0xff]
  %v995 = vld [vmem:[%s1 + $0x1df8] sm:$0xff]
  %v996 = vld [vmem:[%s1 + $0x1e00] sm:$0xff]
  %v997 = vld [vmem:[%s1 + $0x1e08] sm:$0xff]
  %v998 = vld [vmem:[%s1 + $0x1e10] sm:$0xff]
  %v999 = vld [vmem:[%s1 + $0x1e18] sm:$0xff]
  %v1000 = vld [vmem:[%s1 + $0x1e20] sm:$0xff]
  %v1001 = vld [vmem:[%s1 + $0x1e28] sm:$0xff]
  %v1002 = vld [vmem:[%s1 + $0x1e30] sm:$0xff]
  %v1003 = vld [vmem:[%s1 + $0x1e38] sm:$0xff]
  %v1004 = vld [vmem:[%s1 + $0x1e40] sm:$0xff]
  %v1005 = vld [vmem:[%s1 + $0x1e48] sm:$0xff]
  %v1006 = vld [vmem:[%s1 + $0x1e50] sm:$0xff]
  %v1007 = vld [vmem:[%s1 + $0x1e58] sm:$0xff]
  %v1008 = vld [vmem:[%s1 + $0x1e60] sm:$0xff]
  %v1009 = vld [vmem:[%s1 + $0x1e68] sm:$0xff]
  %v1010 = vld [vmem:[%s1 + $0x1e70] sm:$0xff]
  %v1011 = vld [vmem:[%s1 + $0x1e78] sm:$0xff]
  %v1012 = vld [vmem:[%s1 + $0x1e80] sm:$0xff]
  %v1013 = vld [vmem:[%s1 + $0x1e88] sm:$0xff]
  %v1014 = vld [vmem:[%s1 + $0x1e90] sm:$0xff]
  %v1015 = vld [vmem:[%s1 + $0x1e98] sm:$0xff]
  %v1016 = vld [vmem:[%s1 + $0x1ea0] sm:$0xff]
  %v1017 = vld [vmem:[%s1 + $0x1ea8] sm:$0xff]
  %v1018 = vld [vmem:[%s1 + $0x1eb0] sm:$0xff]
  %v1019 = vld [vmem:[%s1 + $0x1eb8] sm:$0xff]
  %v1020 = vld [vmem:[%s1 + $0x1ec0] sm:$0xff]
  %v1021 = vld [vmem:[%s1 + $0x1ec8] sm:$0xff]
  %v1022 = vld [vmem:[%s1 + $0x1ed0] sm:$0xff]
  %v1023 = vld [vmem:[%s1 + $0x1ed8] sm:$0xff]
  %v1024 = vld [vmem:[%s1 + $0x1ee0] sm:$0xff]
  %v1025 = vld [vmem:[%s1 + $0x1ee8] sm:$0xff]
  %v1026 = vld [vmem:[%s1 + $0x1ef0] sm:$0xff]
  %v1027 = vld [vmem:[%s1 + $0x1ef8] sm:$0xff]
  %v1028 = vld [vmem:[%s1 + $0x1f00] sm:$0xff]
  %v1029 = vld [vmem:[%s1 + $0x1f08] sm:$0xff]
  %v1030 = vld [vmem:[%s1 + $0x1f10] sm:$0xff]
  %v1031 = vld [vmem:[%s1 + $0x1f18] sm:$0xff]
  %v1032 = vld [vmem:[%s1 + $0x1f20] sm:$0xff]
  %v1033 = vld [vmem:[%s1 + $0x1f28] sm:$0xff]
  %v1034 = vld [vmem:[%s1 + $0x1f30] sm:$0xff]
  %v1035 = vld [vmem:[%s1 + $0x1f38] sm:$0xff]
  %v1036 = vld [vmem:[%s1 + $0x1f40] sm:$0xff]
  %v1037 = vld [vmem:[%s1 + $0x1f48] sm:$0xff]
  %v1038 = vld [vmem:[%s1 + $0x1f50] sm:$0xff]
  %v1039 = vld [vmem:[%s1 + $0x1f58] sm:$0xff]
  %v1040 = vld [vmem:[%s1 + $0x1f60] sm:$0xff]
  %v1041 = vld [vmem:[%s1 + $0x1f68] sm:$0xff]
  %v1042 = vld [vmem:[%s1 + $0x1f70] sm:$0xff]
  %v1043 = vld [vmem:[%s1 + $0x1f78] sm:$0xff]
  %v1044 = vld [vmem:[%s1 + $0x1f80] sm:$0xff]
  %v1045 = vld [vmem:[%s1 + $0x1f88] sm:$0xff]
  %v1046 = vld [vmem:[%s1 + $0x1f90] sm:$0xff]
  %v1047 = vld [vmem:[%s1 + $0x1f98] sm:$0xff]
  %v1048 = vld [vmem:[%s1 + $0x1fa0] sm:$0xff]
  %v1049 = vld [vmem:[%s1 + $0x1fa8] sm:$0xff]
  %v1050 = vld [vmem:[%s1 + $0x1fb0] sm:$0xff]
  %v1051 = vld [vmem:[%s1 + $0x1fb8] sm:$0xff]
  %v1052 = vld [vmem:[%s1 + $0x1fc0] sm:$0xff]
  %v1053 = vld [vmem:[%s1 + $0x1fc8] sm:$0xff]
  %v1054 = vld [vmem:[%s1 + $0x1fd0] sm:$0xff]
  %v1055 = vld [vmem:[%s1 + $0x1fd8] sm:$0xff]
  %v1056 = vld [vmem:[%s1 + $0x1fe0] sm:$0xff]
  %v1057 = vld [vmem:[%s1 + $0x1fe8] sm:$0xff]
  %v1058 = vld [vmem:[%s1 + $0x1ff0] sm:$0xff]
  %v1059 = vld [vmem:[%s1 + $0x1ff8] sm:$0xff]
  %v1060 = vld [vmem:[%s1 + $0x2000] sm:$0xff]
  %v1061 = vld [vmem:[%s1 + $0x2008] sm:$0xff]
  %v1062 = vld [vmem:[%s1 + $0x2010] sm:$0xff]
  %v1063 = vld [vmem:[%s1 + $0x2018] sm:$0xff]
  %v1064 = vld [vmem:[%s1 + $0x2020] sm:$0xff]
  %v1065 = vld [vmem:[%s1 + $0x2028] sm:$0xff]
  %v1066 = vld [vmem:[%s1 + $0x2030] sm:$0xff]
  %v1067 = vld [vmem:[%s1 + $0x2038] sm:$0xff]
  %v1068 = vld [vmem:[%s1 + $0x2040] sm:$0xff]
  %v1069 = vld [vmem:[%s1 + $0x2048] sm:$0xff]
  %v1070 = vld [vmem:[%s1 + $0x2050] sm:$0xff]
  %v1071 = vld [vmem:[%s1 + $0x2058] sm:$0xff]
  %v1072 = vld [vmem:[%s1 + $0x2060] sm:$0xff]
  %v1073 = vld [vmem:[%s1 + $0x2068] sm:$0xff]
  %v1074 = vld [vmem:[%s1 + $0x2070] sm:$0xff]
  %v1075 = vld [vmem:[%s1 + $0x2078] sm:$0xff]
  %v1076 = vld [vmem:[%s1 + $0x2080] sm:$0xff]
  %v1077 = vld [vmem:[%s1 + $0x2088] sm:$0xff]
  %v1078 = vld [vmem:[%s1 + $0x2090] sm:$0xff]
  %v1079 = vld [vmem:[%s1 + $0x2098] sm:$0xff]
  %v1080 = vld [vmem:[%s1 + $0x20a0] sm:$0xff]
  %v1081 = vld [vmem:[%s1 + $0x20a8] sm:$0xff]
  %v1082 = vld [vmem:[%s1 + $0x20b0] sm:$0xff]
  %v1083 = vld [vmem:[%s1 + $0x20b8] sm:$0xff]
  %v1084 = vld [vmem:[%s1 + $0x20c0] sm:$0xff]
  %v1085 = vld [vmem:[%s1 + $0x20c8] sm:$0xff]
  %v1086 = vld [vmem:[%s1 + $0x20d0] sm:$0xff]
  %v1087 = vld [vmem:[%s1 + $0x20d8] sm:$0xff]
  %v1088 = vld [vmem:[%s1 + $0x20e0] sm:$0xff]
  %v1089 = vld [vmem:[%s1 + $0x20e8] sm:$0xff]
  %v1090 = vld [vmem:[%s1 + $0x20f0] sm:$0xff]
  %v1091 = vld [vmem:[%s1 + $0x20f8] sm:$0xff]
  %v1092 = vld [vmem:[%s1 + $0x2100] sm:$0xff]
  %v1093 = vld [vmem:[%s1 + $0x2108] sm:$0xff]
  %v1094 = vld [vmem:[%s1 + $0x2110] sm:$0xff]
  %v1095 = vld [vmem:[%s1 + $0x2118] sm:$0xff]
  %v1096 = vld [vmem:[%s1 + $0x2120] sm:$0xff]
  %v1097 = vld [vmem:[%s1 + $0x2128] sm:$0xff]
  %v1098 = vld [vmem:[%s1 + $0x2130] sm:$0xff]
  %v1099 = vld [vmem:[%s1 + $0x2138] sm:$0xff]
  %v1100 = vld [vmem:[%s1 + $0x2140] sm:$0xff]
  %v1101 = vld [vmem:[%s1 + $0x2148] sm:$0xff]
  %v1102 = vld [vmem:[%s1 + $0x2150] sm:$0xff]
  %v1103 = vld [vmem:[%s1 + $0x2158] sm:$0xff]
  %v1104 = vld [vmem:[%s1 + $0x2160] sm:$0xff]
  %v1105 = vld [vmem:[%s1 + $0x2168] sm:$0xff]
  %v1106 = vld [vmem:[%s1 + $0x2170] sm:$0xff]
  %v1107 = vld [vmem:[%s1 + $0x2178] sm:$0xff]
  %v1108 = vld [vmem:[%s1 + $0x2180] sm:$0xff]
  %v1109 = vld [vmem:[%s1 + $0x2188] sm:$0xff]
  %v1110 = vld [vmem:[%s1 + $0x2190] sm:$0xff]
  %v1111 = vld [vmem:[%s1 + $0x2198] sm:$0xff]
  %v1112 = vld [vmem:[%s1 + $0x21a0] sm:$0xff]
  %v1113 = vld [vmem:[%s1 + $0x21a8] sm:$0xff]
  %v1114 = vld [vmem:[%s1 + $0x21b0] sm:$0xff]
  %v1115 = vld [vmem:[%s1 + $0x21b8] sm:$0xff]
  %v1116 = vld [vmem:[%s1 + $0x21c0] sm:$0xff]
  %v1117 = vld [vmem:[%s1 + $0x21c8] sm:$0xff]
  %v1118 = vld [vmem:[%s1 + $0x21d0] sm:$0xff]
  %v1119 = vld [vmem:[%s1 + $0x21d8] sm:$0xff]
  %v1120 = vld [vmem:[%s1 + $0x21e0] sm:$0xff]
  %v1121 = vld [vmem:[%s1 + $0x21e8] sm:$0xff]
  %v1122 = vld [vmem:[%s1 + $0x21f0] sm:$0xff]
  %v1123 = vld [vmem:[%s1 + $0x21f8] sm:$0xff]
  %v1124 = vld [vmem:[%s1 + $0x2200] sm:$0xff]
  %v1125 = vld [vmem:[%s1 + $0x2208] sm:$0xff]
  %v1126 = vld [vmem:[%s1 + $0x2210] sm:$0xff]
  %v1127 = vld [vmem:[%s1 + $0x2218] sm:$0xff]
  %v1128 = vld [vmem:[%s1 + $0x2220] sm:$0xff]
  %v1129 = vld [vmem:[%s1 + $0x2228] sm:$0xff]
  %v1130 = vld [vmem:[%s1 + $0x2230] sm:$0xff]
  %v1131 = vld [vmem:[%s1 + $0x2238] sm:$0xff]
  %v1132 = vld [vmem:[%s1 + $0x2240] sm:$0xff]
  %v1133 = vld [vmem:[%s1 + $0x2248] sm:$0xff]
  %v1134 = vld [vmem:[%s1 + $0x2250] sm:$0xff]
  %v1135 = vld [vmem:[%s1 + $0x2258] sm:$0xff]
  %v1136 = vld [vmem:[%s1 + $0x2260] sm:$0xff]
  %v1137 = vld [vmem:[%s1 + $0x2268] sm:$0xff]
  %v1138 = vld [vmem:[%s1 + $0x2270] sm:$0xff]
  %v1139 = vld [vmem:[%s1 + $0x2278] sm:$0xff]
  %v1140 = vld [vmem:[%s1 + $0x2280] sm:$0xff]
  %v1141 = vld [vmem:[%s1 + $0x2288] sm:$0xff]
  %v1142 = vld [vmem:[%s1 + $0x2290] sm:$0xff]
  %v1143 = vld [vmem:[%s1 + $0x2298] sm:$0xff]
  %v1144 = vld [vmem:[%s1 + $0x22a0] sm:$0xff]
  %v1145 = vld [vmem:[%s1 + $0x22a8] sm:$0xff]
  %v1146 = vld [vmem:[%s1 + $0x22b0] sm:$0xff]
  %v1147 = vld [vmem:[%s1 + $0x22b8] sm:$0xff]
  %v1148 = vld [vmem:[%s1 + $0x22c0] sm:$0xff]
  %v1149 = vld [vmem:[%s1 + $0x22c8] sm:$0xff]
  %v1150 = vld [vmem:[%s1 + $0x22d0] sm:$0xff]
  %v1151 = vld [vmem:[%s1 + $0x22d8] sm:$0xff]
  %v1152 = vld [vmem:[%s1 + $0x22e0] sm:$0xff]
  %v1153 = vld [vmem:[%s1 + $0x22e8] sm:$0xff]
  %v1154 = vld [vmem:[%s1 + $0x22f0] sm:$0xff]
  %v1155 = vld [vmem:[%s1 + $0x22f8] sm:$0xff]
  %v1156 = vld [vmem:[%s1 + $0x2300] sm:$0xff]
  %v1157 = vld [vmem:[%s1 + $0x2308] sm:$0xff]
  %v1158 = vld [vmem:[%s1 + $0x2310] sm:$0xff]
  %v1159 = vld [vmem:[%s1 + $0x2318] sm:$0xff]
  %v1160 = vld [vmem:[%s1 + $0x2320] sm:$0xff]
  %v1161 = vld [vmem:[%s1 + $0x2328] sm:$0xff]
  %v1162 = vld [vmem:[%s1 + $0x2330] sm:$0xff]
  %v1163 = vld [vmem:[%s1 + $0x2338] sm:$0xff]
  %v1164 = vld [vmem:[%s1 + $0x2340] sm:$0xff]
  %v1165 = vld [vmem:[%s1 + $0x2348] sm:$0xff]
  %v1166 = vld [vmem:[%s1 + $0x2350] sm:$0xff]
  %v1167 = vld [vmem:[%s1 + $0x2358] sm:$0xff]
  %v1168 = vld [vmem:[%s1 + $0x2360] sm:$0xff]
  %v1169 = vld [vmem:[%s1 + $0x2368] sm:$0xff]
  %v1170 = vld [vmem:[%s1 + $0x2370] sm:$0xff]
  %v1171 = vld [vmem:[%s1 + $0x2378] sm:$0xff]
  %v1172 = vld [vmem:[%s1 + $0x2380] sm:$0xff]
  %v1173 = vld [vmem:[%s1 + $0x2388] sm:$0xff]
  %v1174 = vld [vmem:[%s1 + $0x2390] sm:$0xff]
  %v1175 = vld [vmem:[%s1 + $0x2398] sm:$0xff]
  %v1176 = vld [vmem:[%s1 + $0x23a0] sm:$0xff]
  %v1177 = vld [vmem:[%s1 + $0x23a8] sm:$0xff]
  %v1178 = vld [vmem:[%s1 + $0x23b0] sm:$0xff]
  %v1179 = vld [vmem:[%s1 + $0x23b8] sm:$0xff]
  %v1180 = vld [vmem:[%s1 + $0x23c0] sm:$0xff]
  %v1181 = vld [vmem:[%s1 + $0x23c8] sm:$0xff]
  %v1182 = vld [vmem:[%s1 + $0x23d0] sm:$0xff]
  %v1183 = vld [vmem:[%s1 + $0x23d8] sm:$0xff]
  %v1184 = vld [vmem:[%s1 + $0x23e0] sm:$0xff]
  %v1185 = vld [vmem:[%s1 + $0x23e8] sm:$0xff]
  %v1186 = vld [vmem:[%s1 + $0x23f0] sm:$0xff]
  %v1187 = vld [vmem:[%s1 + $0x23f8] sm:$0xff]
  %v1188 = vld [vmem:[%s1 + $0x2400] sm:$0xff]
  %v1189 = vld [vmem:[%s1 + $0x2408] sm:$0xff]
  %v1190 = vld [vmem:[%s1 + $0x2410] sm:$0xff]
  %v1191 = vld [vmem:[%s1 + $0x2418] sm:$0xff]
  %v1192 = vld [vmem:[%s1 + $0x2420] sm:$0xff]
  %v1193 = vld [vmem:[%s1 + $0x2428] sm:$0xff]
  %v1194 = vld [vmem:[%s1 + $0x2430] sm:$0xff]
  %v1195 = vld [vmem:[%s1 + $0x2438] sm:$0xff]
  %v1196 = vld [vmem:[%s1 + $0x2440] sm:$0xff]
  %v1197 = vld [vmem:[%s1 + $0x2448] sm:$0xff]
  %v1198 = vld [vmem:[%s1 + $0x2450] sm:$0xff]
  %v1199 = vld [vmem:[%s1 + $0x2458] sm:$0xff]
  %v1200 = vld [vmem:[%s1 + $0x2460] sm:$0xff]
  %v1201 = vld [vmem:[%s1 + $0x2468] sm:$0xff]
  %v1202 = vld [vmem:[%s1 + $0x2470] sm:$0xff]
  %v1203 = vld [vmem:[%s1 + $0x2478] sm:$0xff]
  %v1204 = vld [vmem:[%s1 + $0x2480] sm:$0xff]
  %v1205 = vld [vmem:[%s1 + $0x2488] sm:$0xff]
  %v1206 = vld [vmem:[%s1 + $0x2490] sm:$0xff]
  %v1207 = vld [vmem:[%s1 + $0x2498] sm:$0xff]
  %v1208 = vld [vmem:[%s1 + $0x24a0] sm:$0xff]
  %v1209 = vld [vmem:[%s1 + $0x24a8] sm:$0xff]
  %v1210 = vld [vmem:[%s1 + $0x24b0] sm:$0xff]
  %v1211 = vld [vmem:[%s1 + $0x24b8] sm:$0xff]
  %v1212 = vld [vmem:[%s1 + $0x24c0] sm:$0xff]
  %v1213 = vld [vmem:[%s1 + $0x24c8] sm:$0xff]
  %v1214 = vld [vmem:[%s1 + $0x24d0] sm:$0xff]
  %v1215 = vld [vmem:[%s1 + $0x24d8] sm:$0xff]
  %v1216 = vld [vmem:[%s1 + $0x24e0] sm:$0xff]
  %v1217 = vld [vmem:[%s1 + $0x24e8] sm:$0xff]
  %v1218 = vld [vmem:[%s1 + $0x24f0] sm:$0xff]
  %v1219 = vld [vmem:[%s1 + $0x24f8] sm:$0xff]
  %v1220 = vld [vmem:[%s1 + $0x2500] sm:$0xff]
  %v1221 = vld [vmem:[%s1 + $0x2508] sm:$0xff]
  %v1222 = vld [vmem:[%s1 + $0x2510] sm:$0xff]
  %v1223 = vld [vmem:[%s1 + $0x2518] sm:$0xff]
  %v1224 = vld [vmem:[%s1 + $0x2520] sm:$0xff]
  %v1225 = vld [vmem:[%s1 + $0x2528] sm:$0xff]
  %v1226 = vld [vmem:[%s1 + $0x2530] sm:$0xff]
  %v1227 = vld [vmem:[%s1 + $0x2538] sm:$0xff]
  %v1228 = vld [vmem:[%s1 + $0x2540] sm:$0xff]
  %v1229 = vld [vmem:[%s1 + $0x2548] sm:$0xff]
  %v1230 = vld [vmem:[%s1 + $0x2550] sm:$0xff]
  %v1231 = vld [vmem:[%s1 + $0x2558] sm:$0xff]
  %v1232 = vld [vmem:[%s1 + $0x2560] sm:$0xff]
  %v1233 = vld [vmem:[%s1 + $0x2568] sm:$0xff]
  %v1234 = vld [vmem:[%s1 + $0x2570] sm:$0xff]
  %v1235 = vld [vmem:[%s1 + $0x2578] sm:$0xff]
  %v1236 = vld [vmem:[%s1 + $0x2580] sm:$0xff]
  %v1237 = vld [vmem:[%s1 + $0x2588] sm:$0xff]
  %v1238 = vld [vmem:[%s1 + $0x2590] sm:$0xff]
  %v1239 = vld [vmem:[%s1 + $0x2598] sm:$0xff]
  %v1240 = vld [vmem:[%s1 + $0x25a0] sm:$0xff]
  %v1241 = vld [vmem:[%s1 + $0x25a8] sm:$0xff]
  %v1242 = vld [vmem:[%s1 + $0x25b0] sm:$0xff]
  %v1243 = vld [vmem:[%s1 + $0x25b8] sm:$0xff]
  %v1244 = vld [vmem:[%s1 + $0x25c0] sm:$0xff]
  %v1245 = vld [vmem:[%s1 + $0x25c8] sm:$0xff]
  %v1246 = vld [vmem:[%s1 + $0x25d0] sm:$0xff]
  %v1247 = vld [vmem:[%s1 + $0x25d8] sm:$0xff]
  %v1248 = vld [vmem:[%s1 + $0x25e0] sm:$0xff]
  %v1249 = vld [vmem:[%s1 + $0x25e8] sm:$0xff]
  %v1250 = vld [vmem:[%s1 + $0x25f0] sm:$0xff]
  %v1251 = vld [vmem:[%s1 + $0x25f8] sm:$0xff]
  %v1252 = vld [vmem:[%s1 + $0x2600] sm:$0xff]
  %v1253 = vld [vmem:[%s1 + $0x2608] sm:$0xff]
  %v1254 = vld [vmem:[%s1 + $0x2610] sm:$0xff]
  %v1255 = vld [vmem:[%s1 + $0x2618] sm:$0xff]
  %v1256 = vld [vmem:[%s1 + $0x2620] sm:$0xff]
  %v1257 = vld [vmem:[%s1 + $0x2628] sm:$0xff]
  %v1258 = vld [vmem:[%s1 + $0x2630] sm:$0xff]
  %v1259 = vld [vmem:[%s1 + $0x2638] sm:$0xff]
  %v1260 = vld [vmem:[%s1 + $0x2640] sm:$0xff]
  %v1261 = vld [vmem:[%s1 + $0x2648] sm:$0xff]
  %v1262 = vld [vmem:[%s1 + $0x2650] sm:$0xff]
  %v1263 = vld [vmem:[%s1 + $0x2658] sm:$0xff]
  %v1264 = vld [vmem:[%s1 + $0x2660] sm:$0xff]
  %v1265 = vld [vmem:[%s1 + $0x2668] sm:$0xff]
  %v1266 = vld [vmem:[%s1 + $0x2670] sm:$0xff]
  %v1267 = vld [vmem:[%s1 + $0x2678] sm:$0xff]
  %v1268 = vld [vmem:[%s1 + $0x2680] sm:$0xff]
  %v1269 = vld [vmem:[%s1 + $0x2688] sm:$0xff]
  %v1270 = vld [vmem:[%s1 + $0x2690] sm:$0xff]
  %v1271 = vld [vmem:[%s1 + $0x2698] sm:$0xff]
  %v1272 = vld [vmem:[%s1 + $0x26a0] sm:$0xff]
  %v1273 = vld [vmem:[%s1 + $0x26a8] sm:$0xff]
  %v1274 = vld [vmem:[%s1 + $0x26b0] sm:$0xff]
  %v1275 = vld [vmem:[%s1 + $0x26b8] sm:$0xff]
  %v1276 = vld [vmem:[%s1 + $0x26c0] sm:$0xff]
  %v1277 = vld [vmem:[%s1 + $0x26c8] sm:$0xff]
  %v1278 = vld [vmem:[%s1 + $0x26d0] sm:$0xff]
  %v1279 = vld [vmem:[%s1 + $0x26d8] sm:$0xff]
  %v1280 = vld [vmem:[%s1 + $0x26e0] sm:$0xff]
  %v1281 = vld [vmem:[%s1 + $0x26e8] sm:$0xff]
  %v1282 = vld [vmem:[%s1 + $0x26f0] sm:$0xff]
  %v1283 = vld [vmem:[%s1 + $0x26f8] sm:$0xff]
  %v1284 = vld [vmem:[%s1 + $0x2700] sm:$0xff]
  %v1285 = vld [vmem:[%s1 + $0x2708] sm:$0xff]
  %v1286 = vld [vmem:[%s1 + $0x2710] sm:$0xff]
  %v1287 = vld [vmem:[%s1 + $0x2718] sm:$0xff]
  %v1288 = vld [vmem:[%s1 + $0x2720] sm:$0xff]
  %v1289 = vld [vmem:[%s1 + $0x2728] sm:$0xff]
  %v1290 = vld [vmem:[%s1 + $0x2730] sm:$0xff]
  %v1291 = vld [vmem:[%s1 + $0x2738] sm:$0xff]
  %v1292 = vld [vmem:[%s1 + $0x2740] sm:$0xff]
  %v1293 = vld [vmem:[%s1 + $0x2748] sm:$0xff]
  %v1294 = vld [vmem:[%s1 + $0x2750] sm:$0xff]
  %v1295 = vld [vmem:[%s1 + $0x2758] sm:$0xff]
  %v1296 = vld [vmem:[%s1 + $0x2760] sm:$0xff]
  %v1297 = vld [vmem:[%s1 + $0x2768] sm:$0xff]
  %v1298 = vld [vmem:[%s1 + $0x2770] sm:$0xff]
  %v1299 = vld [vmem:[%s1 + $0x2778] sm:$0xff]
  %v1300 = vld [vmem:[%s1 + $0x2780] sm:$0xff]
  %v1301 = vld [vmem:[%s1 + $0x2788] sm:$0xff]
  %v1302 = vld [vmem:[%s1 + $0x2790] sm:$0xff]
  %v1303 = vld [vmem:[%s1 + $0x2798] sm:$0xff]
  %v1304 = vld [vmem:[%s1 + $0x27a0] sm:$0xff]
  %v1305 = vld [vmem:[%s1 + $0x27a8] sm:$0xff]
  %v1306 = vld [vmem:[%s1 + $0x27b0] sm:$0xff]
  %v1307 = vld [vmem:[%s1 + $0x27b8] sm:$0xff]
  %v1308 = vld [vmem:[%s1 + $0x27c0] sm:$0xff]
  %v1309 = vld [vmem:[%s1 + $0x27c8] sm:$0xff]
  %v1310 = vld [vmem:[%s1 + $0x27d0] sm:$0xff]
  %v1311 = vld [vmem:[%s1 + $0x27d8] sm:$0xff]
  %v1312 = vld [vmem:[%s1 + $0x27e0] sm:$0xff]
  %v1313 = vld [vmem:[%s1 + $0x27e8] sm:$0xff]
  %v1314 = vld [vmem:[%s1 + $0x27f0] sm:$0xff]
  %v1315 = vld [vmem:[%s1 + $0x27f8] sm:$0xff]
  %v1316 = vld [vmem:[%s1 + $0x2800] sm:$0xff]
  %v1317 = vld [vmem:[%s1 + $0x2808] sm:$0xff]
  %v1318 = vld [vmem:[%s1 + $0x2810] sm:$0xff]
  %v1319 = vld [vmem:[%s1 + $0x2818] sm:$0xff]
  %v1320 = vld [vmem:[%s1 + $0x2820] sm:$0xff]
  %v1321 = vld [vmem:[%s1 + $0x2828] sm:$0xff]
  %v1322 = vld [vmem:[%s1 + $0x2830] sm:$0xff]
  %v1323 = vld [vmem:[%s1 + $0x2838] sm:$0xff]
  %v1324 = vld [vmem:[%s1 + $0x2840] sm:$0xff]
  %v1325 = vld [vmem:[%s1 + $0x2848] sm:$0xff]
  %v1326 = vld [vmem:[%s1 + $0x2850] sm:$0xff]
  %v1327 = vld [vmem:[%s1 + $0x2858] sm:$0xff]
  %v1328 = vld [vmem:[%s1 + $0x2860] sm:$0xff]
  %v1329 = vld [vmem:[%s1 + $0x2868] sm:$0xff]
  %v1330 = vld [vmem:[%s1 + $0x2870] sm:$0xff]
  %v1331 = vld [vmem:[%s1 + $0x2878] sm:$0xff]
  %v1332 = vld [vmem:[%s1 + $0x2880] sm:$0xff]
  %v1333 = vld [vmem:[%s1 + $0x2888] sm:$0xff]
  %v1334 = vld [vmem:[%s1 + $0x2890] sm:$0xff]
  %v1335 = vld [vmem:[%s1 + $0x2898] sm:$0xff]
  %v1336 = vld [vmem:[%s1 + $0x28a0] sm:$0xff]
  %v1337 = vld [vmem:[%s1 + $0x28a8] sm:$0xff]
  %v1338 = vld [vmem:[%s1 + $0x28b0] sm:$0xff]
  %v1339 = vld [vmem:[%s1 + $0x28b8] sm:$0xff]
  %v1340 = vld [vmem:[%s1 + $0x28c0] sm:$0xff]
  %v1341 = vld [vmem:[%s1 + $0x28c8] sm:$0xff]
  %v1342 = vld [vmem:[%s1 + $0x28d0] sm:$0xff]
  %v1343 = vld [vmem:[%s1 + $0x28d8] sm:$0xff]
  %v1344 = vld [vmem:[%s1 + $0x28e0] sm:$0xff]
  %v1345 = vld [vmem:[%s1 + $0x28e8] sm:$0xff]
  %v1346 = vld [vmem:[%s1 + $0x28f0] sm:$0xff]
  %v1347 = vld [vmem:[%s1 + $0x28f8] sm:$0xff]
  %v1348 = vld [vmem:[%s1 + $0x2900] sm:$0xff]
  %v1349 = vld [vmem:[%s1 + $0x2908] sm:$0xff]
  %v1350 = vld [vmem:[%s1 + $0x2910] sm:$0xff]
  %v1351 = vld [vmem:[%s1 + $0x2918] sm:$0xff]
  %v1352 = vld [vmem:[%s1 + $0x2920] sm:$0xff]
  %v1353 = vld [vmem:[%s1 + $0x2928] sm:$0xff]
  %v1354 = vld [vmem:[%s1 + $0x2930] sm:$0xff]
  %v1355 = vld [vmem:[%s1 + $0x2938] sm:$0xff]
  %v1356 = vld [vmem:[%s1 + $0x2940] sm:$0xff]
  %v1357 = vld [vmem:[%s1 + $0x2948] sm:$0xff]
  %v1358 = vld [vmem:[%s1 + $0x2950] sm:$0xff]
  %v1359 = vld [vmem:[%s1 + $0x2958] sm:$0xff]
  %v1360 = vld [vmem:[%s1 + $0x2960] sm:$0xff]
  %v1361 = vld [vmem:[%s1 + $0x2968] sm:$0xff]
  %v1362 = vld [vmem:[%s1 + $0x2970] sm:$0xff]
  %v1363 = vld [vmem:[%s1 + $0x2978] sm:$0xff]
  %v1364 = vld [vmem:[%s1 + $0x2980] sm:$0xff]
  %v1365 = vld [vmem:[%s1 + $0x2988] sm:$0xff]
  %v1366 = vld [vmem:[%s1 + $0x2990] sm:$0xff]
  %v1367 = vld [vmem:[%s1 + $0x2998] sm:$0xff]
  %v1368 = vld [vmem:[%s1 + $0x29a0] sm:$0xff]
  %v1369 = vld [vmem:[%s1 + $0x29a8] sm:$0xff]
  %v1370 = vld [vmem:[%s1 + $0x29b0] sm:$0xff]
  %v1371 = vld [vmem:[%s1 + $0x29b8] sm:$0xff]
  %v1372 = vld [vmem:[%s1 + $0x29c0] sm:$0xff]
  %v1373 = vld [vmem:[%s1 + $0x29c8] sm:$0xff]
  %v1374 = vld [vmem:[%s1 + $0x29d0] sm:$0xff]
  %v1375 = vld [vmem:[%s1 + $0x29d8] sm:$0xff]
  %v1376 = vld [vmem:[%s1 + $0x29e0] sm:$0xff]
  %v1377 = vld [vmem:[%s1 + $0x29e8] sm:$0xff]
  %v1378 = vld [vmem:[%s1 + $0x29f0] sm:$0xff]
  %v1379 = vld [vmem:[%s1 + $0x29f8] sm:$0xff]
  %v1380 = vld [vmem:[%s1 + $0x2a00] sm:$0xff]
  %v1381 = vld [vmem:[%s1 + $0x2a08] sm:$0xff]
  %v1382 = vld [vmem:[%s1 + $0x2a10] sm:$0xff]
  %v1383 = vld [vmem:[%s1 + $0x2a18] sm:$0xff]
  %v1384 = vld [vmem:[%s1 + $0x2a20] sm:$0xff]
  %v1385 = vld [vmem:[%s1 + $0x2a28] sm:$0xff]
  %v1386 = vld [vmem:[%s1 + $0x2a30] sm:$0xff]
  %v1387 = vld [vmem:[%s1 + $0x2a38] sm:$0xff]
  %v1388 = vld [vmem:[%s1 + $0x2a40] sm:$0xff]
  %v1389 = vld [vmem:[%s1 + $0x2a48] sm:$0xff]
  %v1390 = vld [vmem:[%s1 + $0x2a50] sm:$0xff]
  %v1391 = vld [vmem:[%s1 + $0x2a58] sm:$0xff]
  %v1392 = vld [vmem:[%s1 + $0x2a60] sm:$0xff]
  %v1393 = vld [vmem:[%s1 + $0x2a68] sm:$0xff]
  %v1394 = vld [vmem:[%s1 + $0x2a70] sm:$0xff]
  %v1395 = vld [vmem:[%s1 + $0x2a78] sm:$0xff]
  %v1396 = vld [vmem:[%s1 + $0x2a80] sm:$0xff]
  %v1397 = vld [vmem:[%s1 + $0x2a88] sm:$0xff]
  %v1398 = vld [vmem:[%s1 + $0x2a90] sm:$0xff]
  %v1399 = vld [vmem:[%s1 + $0x2a98] sm:$0xff]
  %v1400 = vld [vmem:[%s1 + $0x2aa0] sm:$0xff]
  %v1401 = vld [vmem:[%s1 + $0x2aa8] sm:$0xff]
  %v1402 = vld [vmem:[%s1 + $0x2ab0] sm:$0xff]
  %v1403 = vld [vmem:[%s1 + $0x2ab8] sm:$0xff]
  %v1404 = vld [vmem:[%s1 + $0x2ac0] sm:$0xff]
  %v1405 = vld [vmem:[%s1 + $0x2ac8] sm:$0xff]
  %v1406 = vld [vmem:[%s1 + $0x2ad0] sm:$0xff]
  %v1407 = vld [vmem:[%s1 + $0x2ad8] sm:$0xff]
  %v1408 = vld [vmem:[%s1 + $0x2ae0] sm:$0xff]
  %v1409 = vld [vmem:[%s1 + $0x2ae8] sm:$0xff]
  %v1410 = vld [vmem:[%s1 + $0x2af0] sm:$0xff]
  %v1411 = vld [vmem:[%s1 + $0x2af8] sm:$0xff]
  %v1412 = vld [vmem:[%s1 + $0x2b00] sm:$0xff]
  %v1413 = vld [vmem:[%s1 + $0x2b08] sm:$0xff]
  %v1414 = vld [vmem:[%s1 + $0x2b10] sm:$0xff]
  %v1415 = vld [vmem:[%s1 + $0x2b18] sm:$0xff]
  %v1416 = vld [vmem:[%s1 + $0x2b20] sm:$0xff]
  %v1417 = vld [vmem:[%s1 + $0x2b28] sm:$0xff]
  %v1418 = vld [vmem:[%s1 + $0x2b30] sm:$0xff]
  %v1419 = vld [vmem:[%s1 + $0x2b38] sm:$0xff]
  %v1420 = vld [vmem:[%s1 + $0x2b40] sm:$0xff]
  %v1421 = vld [vmem:[%s1 + $0x2b48] sm:$0xff]
  %v1422 = vld [vmem:[%s1 + $0x2b50] sm:$0xff]
  %v1423 = vld [vmem:[%s1 + $0x2b58] sm:$0xff]
  %v1424 = vld [vmem:[%s1 + $0x2b60] sm:$0xff]
  %v1425 = vld [vmem:[%s1 + $0x2b68] sm:$0xff]
  %v1426 = vld [vmem:[%s1 + $0x2b70] sm:$0xff]
  %v1427 = vld [vmem:[%s1 + $0x2b78] sm:$0xff]
  %v1428 = vld [vmem:[%s1 + $0x2b80] sm:$0xff]
  %v1429 = vld [vmem:[%s1 + $0x2b88] sm:$0xff]
  %v1430 = vld [vmem:[%s1 + $0x2b90] sm:$0xff]
  %v1431 = vld [vmem:[%s1 + $0x2b98] sm:$0xff]
  %v1432 = vld [vmem:[%s1 + $0x2ba0] sm:$0xff]
  %v1433 = vld [vmem:[%s1 + $0x2ba8] sm:$0xff]
  %v1434 = vld [vmem:[%s1 + $0x2bb0] sm:$0xff]
  %v1435 = vld [vmem:[%s1 + $0x2bb8] sm:$0xff]
  %v1436 = vld [vmem:[%s1 + $0x2bc0] sm:$0xff]
  %v1437 = vld [vmem:[%s1 + $0x2bc8] sm:$0xff]
  %v1438 = vld [vmem:[%s1 + $0x2bd0] sm:$0xff]
  %v1439 = vld [vmem:[%s1 + $0x2bd8] sm:$0xff]
  %v1440 = vld [vmem:[%s1 + $0x2be0] sm:$0xff]
  %v1441 = vld [vmem:[%s1 + $0x2be8] sm:$0xff]
  %v1442 = vld [vmem:[%s1 + $0x2bf0] sm:$0xff]
  %v1443 = vld [vmem:[%s1 + $0x2bf8] sm:$0xff]
  %v1444 = vld [vmem:[%s1 + $0x2c00] sm:$0xff]
  %v1445 = vld [vmem:[%s1 + $0x2c08] sm:$0xff]
  %v1446 = vld [vmem:[%s1 + $0x2c10] sm:$0xff]
  %v1447 = vld [vmem:[%s1 + $0x2c18] sm:$0xff]
  %v1448 = vld [vmem:[%s1 + $0x2c20] sm:$0xff]
  %v1449 = vld [vmem:[%s1 + $0x2c28] sm:$0xff]
  %v1450 = vld [vmem:[%s1 + $0x2c30] sm:$0xff]
  %v1451 = vld [vmem:[%s1 + $0x2c38] sm:$0xff]
  %v1452 = vld [vmem:[%s1 + $0x2c40] sm:$0xff]
  %v1453 = vld [vmem:[%s1 + $0x2c48] sm:$0xff]
  %v1454 = vld [vmem:[%s1 + $0x2c50] sm:$0xff]
  %v1455 = vld [vmem:[%s1 + $0x2c58] sm:$0xff]
  %v1456 = vld [vmem:[%s1 + $0x2c60] sm:$0xff]
  %v1457 = vld [vmem:[%s1 + $0x2c68] sm:$0xff]
  %v1458 = vld [vmem:[%s1 + $0x2c70] sm:$0xff]
  %v1459 = vld [vmem:[%s1 + $0x2c78] sm:$0xff]
  %v1460 = vld [vmem:[%s1 + $0x2c80] sm:$0xff]
  %v1461 = vld [vmem:[%s1 + $0x2c88] sm:$0xff]
  %v1462 = vld [vmem:[%s1 + $0x2c90] sm:$0xff]
  %v1463 = vld [vmem:[%s1 + $0x2c98] sm:$0xff]
  %v1464 = vld [vmem:[%s1 + $0x2ca0] sm:$0xff]
  %v1465 = vld [vmem:[%s1 + $0x2ca8] sm:$0xff]
  %v1466 = vld [vmem:[%s1 + $0x2cb0] sm:$0xff]
  %v1467 = vld [vmem:[%s1 + $0x2cb8] sm:$0xff]
  %v1468 = vld [vmem:[%s1 + $0x2cc0] sm:$0xff]
  %v1469 = vld [vmem:[%s1 + $0x2cc8] sm:$0xff]
  %v1470 = vld [vmem:[%s1 + $0x2cd0] sm:$0xff]
  %v1471 = vld [vmem:[%s1 + $0x2cd8] sm:$0xff]
  %v1472 = vld [vmem:[%s1 + $0x2ce0] sm:$0xff]
  %v1473 = vld [vmem:[%s1 + $0x2ce8] sm:$0xff]
  %v1474 = vld [vmem:[%s1 + $0x2cf0] sm:$0xff]
  %v1475 = vld [vmem:[%s1 + $0x2cf8] sm:$0xff]
  %v1476 = vld [vmem:[%s1 + $0x2d00] sm:$0xff]
  %v1477 = vld [vmem:[%s1 + $0x2d08] sm:$0xff]
  %v1478 = vld [vmem:[%s1 + $0x2d10] sm:$0xff]
  %v1479 = vld [vmem:[%s1 + $0x2d18] sm:$0xff]
  %v1480 = vld [vmem:[%s1 + $0x2d20] sm:$0xff]
  %v1481 = vld [vmem:[%s1 + $0x2d28] sm:$0xff]
  %v1482 = vld [vmem:[%s1 + $0x2d30] sm:$0xff]
  %v1483 = vld [vmem:[%s1 + $0x2d38] sm:$0xff]
  %v1484 = vld [vmem:[%s1 + $0x2d40] sm:$0xff]
  %v1485 = vld [vmem:[%s1 + $0x2d48] sm:$0xff]
  %v1486 = vld [vmem:[%s1 + $0x2d50] sm:$0xff]
  %v1487 = vld [vmem:[%s1 + $0x2d58] sm:$0xff]
  %v1488 = vld [vmem:[%s1 + $0x2d60] sm:$0xff]
  %v1489 = vld [vmem:[%s1 + $0x2d68] sm:$0xff]
  %v1490 = vld [vmem:[%s1 + $0x2d70] sm:$0xff]
  %v1491 = vld [vmem:[%s1 + $0x2d78] sm:$0xff]
  %v1492 = vld [vmem:[%s1 + $0x2d80] sm:$0xff]
  %v1493 = vld [vmem:[%s1 + $0x2d88] sm:$0xff]
  %v1494 = vld [vmem:[%s1 + $0x2d90] sm:$0xff]
  %v1495 = vld [vmem:[%s1 + $0x2d98] sm:$0xff]
  %v1496 = vld [vmem:[%s1 + $0x2da0] sm:$0xff]
  %v1497 = vld [vmem:[%s1 + $0x2da8] sm:$0xff]
  %v1498 = vld [vmem:[%s1 + $0x2db0] sm:$0xff]
  %v1499 = vld [vmem:[%s1 + $0x2db8] sm:$0xff]
  %v1500 = vld [vmem:[%s1 + $0x2dc0] sm:$0xff]
  %v1501 = vld [vmem:[%s1 + $0x2dc8] sm:$0xff]
  %v1502 = vld [vmem:[%s1 + $0x2dd0] sm:$0xff]
  %v1503 = vld [vmem:[%s1 + $0x2dd8] sm:$0xff]
  %v1504 = vld [vmem:[%s1 + $0x2de0] sm:$0xff]
  %v1505 = vld [vmem:[%s1 + $0x2de8] sm:$0xff]
  %v1506 = vld [vmem:[%s1 + $0x2df0] sm:$0xff]
  %v1507 = vld [vmem:[%s1 + $0x2df8] sm:$0xff]
  %v1508 = vld [vmem:[%s1 + $0x2e00] sm:$0xff]
  %v1509 = vld [vmem:[%s1 + $0x2e08] sm:$0xff]
  %v1510 = vld [vmem:[%s1 + $0x2e10] sm:$0xff]
  %v1511 = vld [vmem:[%s1 + $0x2e18] sm:$0xff]
  %v1512 = vld [vmem:[%s1 + $0x2e20] sm:$0xff]
  %v1513 = vld [vmem:[%s1 + $0x2e28] sm:$0xff]
  %v1514 = vld [vmem:[%s1 + $0x2e30] sm:$0xff]
  %v1515 = vld [vmem:[%s1 + $0x2e38] sm:$0xff]
  %v1516 = vld [vmem:[%s1 + $0x2e40] sm:$0xff]
  %v1517 = vld [vmem:[%s1 + $0x2e48] sm:$0xff]
  %v1518 = vld [vmem:[%s1 + $0x2e50] sm:$0xff]
  %v1519 = vld [vmem:[%s1 + $0x2e58] sm:$0xff]
  %v1520 = vld [vmem:[%s1 + $0x2e60] sm:$0xff]
  %v1521 = vld [vmem:[%s1 + $0x2e68] sm:$0xff]
  %v1522 = vld [vmem:[%s1 + $0x2e70] sm:$0xff]
  %v1523 = vld [vmem:[%s1 + $0x2e78] sm:$0xff]
  %v1524 = vld [vmem:[%s1 + $0x2e80] sm:$0xff]
  %v1525 = vld [vmem:[%s1 + $0x2e88] sm:$0xff]
  %v1526 = vld [vmem:[%s1 + $0x2e90] sm:$0xff]
  %v1527 = vld [vmem:[%s1 + $0x2e98] sm:$0xff]
  %v1528 = vld [vmem:[%s1 + $0x2ea0] sm:$0xff]
  %v1529 = vld [vmem:[%s1 + $0x2ea8] sm:$0xff]
  %v1530 = vld [vmem:[%s1 + $0x2eb0] sm:$0xff]
  %v1531 = vld [vmem:[%s1 + $0x2eb8] sm:$0xff]
  %v1532 = vld [vmem:[%s1 + $0x2ec0] sm:$0xff]
  %v1533 = vld [vmem:[%s1 + $0x2ec8] sm:$0xff]
  %v1534 = vld [vmem:[%s1 + $0x2ed0] sm:$0xff]
  %v1535 = vld [vmem:[%s1 + $0x2ed8] sm:$0xff]
  %v1536 = vld [vmem:[%s1 + $0x2ee0] sm:$0xff]
  %v1537 = vld [vmem:[%s1 + $0x2ee8] sm:$0xff]
  %v1538 = vld [vmem:[%s1 + $0x2ef0] sm:$0xff]
  %v1539 = vld [vmem:[%s1 + $0x2ef8] sm:$0xff]
  %v1540 = vld [vmem:[%s1 + $0x2f00] sm:$0xff]
  %v1541 = vld [vmem:[%s1 + $0x2f08] sm:$0xff]
  %v1542 = vld [vmem:[%s1 + $0x2f10] sm:$0xff]
  %v1543 = vld [vmem:[%s1 + $0x2f18] sm:$0xff]
  %v1544 = vld [vmem:[%s1 + $0x2f20] sm:$0xff]
  %v1545 = vld [vmem:[%s1 + $0x2f28] sm:$0xff]
  %v1546 = vld [vmem:[%s1 + $0x2f30] sm:$0xff]
  %v1547 = vld [vmem:[%s1 + $0x2f38] sm:$0xff]
  %v1548 = vld [vmem:[%s1 + $0x2f40] sm:$0xff]
  %v1549 = vld [vmem:[%s1 + $0x2f48] sm:$0xff]
  %v1550 = vld [vmem:[%s1 + $0x2f50] sm:$0xff]
  %v1551 = vld [vmem:[%s1 + $0x2f58] sm:$0xff]
  %v1552 = vld [vmem:[%s1 + $0x2f60] sm:$0xff]
  %v1553 = vld [vmem:[%s1 + $0x2f68] sm:$0xff]
  %v1554 = vld [vmem:[%s1 + $0x2f70] sm:$0xff]
  %v1555 = vld [vmem:[%s1 + $0x2f78] sm:$0xff]
  %v1556 = vld [vmem:[%s1 + $0x2f80] sm:$0xff]
  %v1557 = vld [vmem:[%s1 + $0x2f88] sm:$0xff]
  %v1558 = vld [vmem:[%s1 + $0x2f90] sm:$0xff]
  %v1559 = vld [vmem:[%s1 + $0x2f98] sm:$0xff]
  %v1560 = vld [vmem:[%s1 + $0x2fa0] sm:$0xff]
  %v1561 = vld [vmem:[%s1 + $0x2fa8] sm:$0xff]
  %v1562 = vld [vmem:[%s1 + $0x2fb0] sm:$0xff]
  %v1563 = vld [vmem:[%s1 + $0x2fb8] sm:$0xff]
  %v1564 = vld [vmem:[%s1 + $0x2fc0] sm:$0xff]
  %v1565 = vld [vmem:[%s1 + $0x2fc8] sm:$0xff]
  %v1566 = vld [vmem:[%s1 + $0x2fd0] sm:$0xff]
  %v1567 = vld [vmem:[%s1 + $0x2fd8] sm:$0xff]
  %v1568 = vld [vmem:[%s1 + $0x2fe0] sm:$0xff]
  %v1569 = vld [vmem:[%s1 + $0x2fe8] sm:$0xff]
  %v1570 = vld [vmem:[%s1 + $0x2ff0] sm:$0xff]
  %v1571 = vld [vmem:[%s1 + $0x2ff8] sm:$0xff]
  %v1572 = vld [vmem:[%s1 + $0x3000] sm:$0xff]
  %v1573 = vld [vmem:[%s1 + $0x3008] sm:$0xff]
  %v1574 = vld [vmem:[%s1 + $0x3010] sm:$0xff]
  %v1575 = vld [vmem:[%s1 + $0x3018] sm:$0xff]
  %v1576 = vld [vmem:[%s1 + $0x3020] sm:$0xff]
  %v1577 = vld [vmem:[%s1 + $0x3028] sm:$0xff]
  %v1578 = vld [vmem:[%s1 + $0x3030] sm:$0xff]
  %v1579 = vld [vmem:[%s1 + $0x3038] sm:$0xff]
  %v1580 = vld [vmem:[%s1 + $0x3040] sm:$0xff]
  %v1581 = vld [vmem:[%s1 + $0x3048] sm:$0xff]
  %v1582 = vld [vmem:[%s1 + $0x3050] sm:$0xff]
  %v1583 = vld [vmem:[%s1 + $0x3058] sm:$0xff]
  %v1584 = vld [vmem:[%s1 + $0x3060] sm:$0xff]
  %v1585 = vld [vmem:[%s1 + $0x3068] sm:$0xff]
  %v1586 = vld [vmem:[%s1 + $0x3070] sm:$0xff]
  %v1587 = vld [vmem:[%s1 + $0x3078] sm:$0xff]
  %v1588 = vld [vmem:[%s1 + $0x3080] sm:$0xff]
  %v1589 = vld [vmem:[%s1 + $0x3088] sm:$0xff]
  %v1590 = vld [vmem:[%s1 + $0x3090] sm:$0xff]
  %v1591 = vld [vmem:[%s1 + $0x3098] sm:$0xff]
  %v1592 = vld [vmem:[%s1 + $0x30a0] sm:$0xff]
  %v1593 = vld [vmem:[%s1 + $0x30a8] sm:$0xff]
  %v1594 = vld [vmem:[%s1 + $0x30b0] sm:$0xff]
  %v1595 = vld [vmem:[%s1 + $0x30b8] sm:$0xff]
  %v1596 = vld [vmem:[%s1 + $0x30c0] sm:$0xff]
  %v1597 = vld [vmem:[%s1 + $0x30c8] sm:$0xff]
  %v1598 = vld [vmem:[%s1 + $0x30d0] sm:$0xff]
  %v1599 = vld [vmem:[%s1 + $0x30d8] sm:$0xff]
  %v1600 = vld [vmem:[%s1 + $0x30e0] sm:$0xff]
  %v1601 = vld [vmem:[%s1 + $0x30e8] sm:$0xff]
  %v1602 = vld [vmem:[%s1 + $0x30f0] sm:$0xff]
  %v1603 = vld [vmem:[%s1 + $0x30f8] sm:$0xff]
  %v1604 = vld [vmem:[%s1 + $0x3100] sm:$0xff]
  %v1605 = vld [vmem:[%s1 + $0x3108] sm:$0xff]
  %v1606 = vld [vmem:[%s1 + $0x3110] sm:$0xff]
  %v1607 = vld [vmem:[%s1 + $0x3118] sm:$0xff]
  %v1608 = vld [vmem:[%s1 + $0x3120] sm:$0xff]
  %v1609 = vld [vmem:[%s1 + $0x3128] sm:$0xff]
  %v1610 = vld [vmem:[%s1 + $0x3130] sm:$0xff]
  %v1611 = vld [vmem:[%s1 + $0x3138] sm:$0xff]
  %v1612 = vld [vmem:[%s1 + $0x3140] sm:$0xff]
  %v1613 = vld [vmem:[%s1 + $0x3148] sm:$0xff]
  %v1614 = vld [vmem:[%s1 + $0x3150] sm:$0xff]
  %v1615 = vld [vmem:[%s1 + $0x3158] sm:$0xff]
  %v1616 = vld [vmem:[%s1 + $0x3160] sm:$0xff]
  %v1617 = vld [vmem:[%s1 + $0x3168] sm:$0xff]
  %v1618 = vld [vmem:[%s1 + $0x3170] sm:$0xff]
  %v1619 = vld [vmem:[%s1 + $0x3178] sm:$0xff]
  %v1620 = vld [vmem:[%s1 + $0x3180] sm:$0xff]
  %v1621 = vld [vmem:[%s1 + $0x3188] sm:$0xff]
  %v1622 = vld [vmem:[%s1 + $0x3190] sm:$0xff]
  %v1623 = vld [vmem:[%s1 + $0x3198] sm:$0xff]
  %v1624 = vld [vmem:[%s1 + $0x31a0] sm:$0xff]
  %v1625 = vld [vmem:[%s1 + $0x31a8] sm:$0xff]
  %v1626 = vld [vmem:[%s1 + $0x31b0] sm:$0xff]
  %v1627 = vld [vmem:[%s1 + $0x31b8] sm:$0xff]
  %v1628 = vld [vmem:[%s1 + $0x31c0] sm:$0xff]
  %v1629 = vld [vmem:[%s1 + $0x31c8] sm:$0xff]
  %v1630 = vld [vmem:[%s1 + $0x31d0] sm:$0xff]
  %v1631 = vld [vmem:[%s1 + $0x31d8] sm:$0xff]
  %v1632 = vld [vmem:[%s1 + $0x31e0] sm:$0xff]
  %v1633 = vld [vmem:[%s1 + $0x31e8] sm:$0xff]
  %v1634 = vld [vmem:[%s1 + $0x31f0] sm:$0xff]
  %v1635 = vld [vmem:[%s1 + $0x31f8] sm:$0xff]
  %v1636 = vld [vmem:[%s1 + $0x3200] sm:$0xff]
  %v1637 = vld [vmem:[%s1 + $0x3208] sm:$0xff]
  %v1638 = vld [vmem:[%s1 + $0x3210] sm:$0xff]
  %v1639 = vld [vmem:[%s1 + $0x3218] sm:$0xff]
  %v1640 = vld [vmem:[%s1 + $0x3220] sm:$0xff]
  %v1641 = vld [vmem:[%s1 + $0x3228] sm:$0xff]
  %v1642 = vld [vmem:[%s1 + $0x3230] sm:$0xff]
  %v1643 = vld [vmem:[%s1 + $0x3238] sm:$0xff]
  %v1644 = vld [vmem:[%s1 + $0x3240] sm:$0xff]
  %v1645 = vld [vmem:[%s1 + $0x3248] sm:$0xff]
  %v1646 = vld [vmem:[%s1 + $0x3250] sm:$0xff]
  %v1647 = vld [vmem:[%s1 + $0x3258] sm:$0xff]
  %v1648 = vld [vmem:[%s1 + $0x3260] sm:$0xff]
  %v1649 = vld [vmem:[%s1 + $0x3268] sm:$0xff]
  %v1650 = vld [vmem:[%s1 + $0x3270] sm:$0xff]
  %v1651 = vld [vmem:[%s1 + $0x3278] sm:$0xff]
  %v1652 = vld [vmem:[%s1 + $0x3280] sm:$0xff]
  %v1653 = vld [vmem:[%s1 + $0x3288] sm:$0xff]
  %v1654 = vld [vmem:[%s1 + $0x3290] sm:$0xff]
  %v1655 = vld [vmem:[%s1 + $0x3298] sm:$0xff]
  %v1656 = vld [vmem:[%s1 + $0x32a0] sm:$0xff]
  %v1657 = vld [vmem:[%s1 + $0x32a8] sm:$0xff]
  %v1658 = vld [vmem:[%s1 + $0x32b0] sm:$0xff]
  %v1659 = vld [vmem:[%s1 + $0x32b8] sm:$0xff]
  %v1660 = vld [vmem:[%s1 + $0x32c0] sm:$0xff]
  %v1661 = vld [vmem:[%s1 + $0x32c8] sm:$0xff]
  %v1662 = vld [vmem:[%s1 + $0x32d0] sm:$0xff]
  %v1663 = vld [vmem:[%s1 + $0x32d8] sm:$0xff]
  %v1664 = vld [vmem:[%s1 + $0x32e0] sm:$0xff]
  %v1665 = vld [vmem:[%s1 + $0x32e8] sm:$0xff]
  %v1666 = vld [vmem:[%s1 + $0x32f0] sm:$0xff]
  %v1667 = vld [vmem:[%s1 + $0x32f8] sm:$0xff]
  %v1668 = vld [vmem:[%s1 + $0x3300] sm:$0xff]
  %v1669 = vld [vmem:[%s1 + $0x3308] sm:$0xff]
  %v1670 = vld [vmem:[%s1 + $0x3310] sm:$0xff]
  %v1671 = vld [vmem:[%s1 + $0x3318] sm:$0xff]
  %v1672 = vld [vmem:[%s1 + $0x3320] sm:$0xff]
  %v1673 = vld [vmem:[%s1 + $0x3328] sm:$0xff]
  %v1674 = vld [vmem:[%s1 + $0x3330] sm:$0xff]
  %v1675 = vld [vmem:[%s1 + $0x3338] sm:$0xff]
  %v1676 = vld [vmem:[%s1 + $0x3340] sm:$0xff]
  %v1677 = vld [vmem:[%s1 + $0x3348] sm:$0xff]
  %v1678 = vld [vmem:[%s1 + $0x3350] sm:$0xff]
  %v1679 = vld [vmem:[%s1 + $0x3358] sm:$0xff]
  %v1680 = vld [vmem:[%s1 + $0x3360] sm:$0xff]
  %v1681 = vld [vmem:[%s1 + $0x3368] sm:$0xff]
  %v1682 = vld [vmem:[%s1 + $0x3370] sm:$0xff]
  %v1683 = vld [vmem:[%s1 + $0x3378] sm:$0xff]
  %v1684 = vld [vmem:[%s1 + $0x3380] sm:$0xff]
  %v1685 = vld [vmem:[%s1 + $0x3388] sm:$0xff]
  %v1686 = vld [vmem:[%s1 + $0x3390] sm:$0xff]
  %v1687 = vld [vmem:[%s1 + $0x3398] sm:$0xff]
  %v1688 = vld [vmem:[%s1 + $0x33a0] sm:$0xff]
  %v1689 = vld [vmem:[%s1 + $0x33a8] sm:$0xff]
  %v1690 = vld [vmem:[%s1 + $0x33b0] sm:$0xff]
  %v1691 = vld [vmem:[%s1 + $0x33b8] sm:$0xff]
  %v1692 = vld [vmem:[%s1 + $0x33c0] sm:$0xff]
  %v1693 = vld [vmem:[%s1 + $0x33c8] sm:$0xff]
  %v1694 = vld [vmem:[%s1 + $0x33d0] sm:$0xff]
  %v1695 = vld [vmem:[%s1 + $0x33d8] sm:$0xff]
  %v1696 = vld [vmem:[%s1 + $0x33e0] sm:$0xff]
  %v1697 = vld [vmem:[%s1 + $0x33e8] sm:$0xff]
  %v1698 = vld [vmem:[%s1 + $0x33f0] sm:$0xff]
  %v1699 = vld [vmem:[%s1 + $0x33f8] sm:$0xff]
  %v1700 = vld [vmem:[%s1 + $0x3400] sm:$0xff]
  %v1701 = vld [vmem:[%s1 + $0x3408] sm:$0xff]
  %v1702 = vld [vmem:[%s1 + $0x3410] sm:$0xff]
  %v1703 = vld [vmem:[%s1 + $0x3418] sm:$0xff]
  %v1704 = vld [vmem:[%s1 + $0x3420] sm:$0xff]
  %v1705 = vld [vmem:[%s1 + $0x3428] sm:$0xff]
  %v1706 = vld [vmem:[%s1 + $0x3430] sm:$0xff]
  %v1707 = vld [vmem:[%s1 + $0x3438] sm:$0xff]
  %v1708 = vld [vmem:[%s1 + $0x3440] sm:$0xff]
  %v1709 = vld [vmem:[%s1 + $0x3448] sm:$0xff]
  %v1710 = vld [vmem:[%s1 + $0x3450] sm:$0xff]
  %v1711 = vld [vmem:[%s1 + $0x3458] sm:$0xff]
  %v1712 = vld [vmem:[%s1 + $0x3460] sm:$0xff]
  %v1713 = vld [vmem:[%s1 + $0x3468] sm:$0xff]
  %v1714 = vld [vmem:[%s1 + $0x3470] sm:$0xff]
  %v1715 = vld [vmem:[%s1 + $0x3478] sm:$0xff]
  %v1716 = vld [vmem:[%s1 + $0x3480] sm:$0xff]
  %v1717 = vld [vmem:[%s1 + $0x3488] sm:$0xff]
  %v1718 = vld [vmem:[%s1 + $0x3490] sm:$0xff]
  %v1719 = vld [vmem:[%s1 + $0x3498] sm:$0xff]
  %v1720 = vld [vmem:[%s1 + $0x34a0] sm:$0xff]
  %v1721 = vld [vmem:[%s1 + $0x34a8] sm:$0xff]
  %v1722 = vld [vmem:[%s1 + $0x34b0] sm:$0xff]
  %v1723 = vld [vmem:[%s1 + $0x34b8] sm:$0xff]
  %v1724 = vld [vmem:[%s1 + $0x34c0] sm:$0xff]
  %v1725 = vld [vmem:[%s1 + $0x34c8] sm:$0xff]
  %v1726 = vld [vmem:[%s1 + $0x34d0] sm:$0xff]
  %v1727 = vld [vmem:[%s1 + $0x34d8] sm:$0xff]
  %v1728 = vld [vmem:[%s1 + $0x34e0] sm:$0xff]
  %v1729 = vld [vmem:[%s1 + $0x34e8] sm:$0xff]
  %v1730 = vld [vmem:[%s1 + $0x34f0] sm:$0xff]
  %v1731 = vld [vmem:[%s1 + $0x34f8] sm:$0xff]
  %v1732 = vld [vmem:[%s1 + $0x3500] sm:$0xff]
  %v1733 = vld [vmem:[%s1 + $0x3508] sm:$0xff]
  %v1734 = vld [vmem:[%s1 + $0x3510] sm:$0xff]
  %v1735 = vld [vmem:[%s1 + $0x3518] sm:$0xff]
  %v1736 = vld [vmem:[%s1 + $0x3520] sm:$0xff]
  %v1737 = vld [vmem:[%s1 + $0x3528] sm:$0xff]
  %v1738 = vld [vmem:[%s1 + $0x3530] sm:$0xff]
  %v1739 = vld [vmem:[%s1 + $0x3538] sm:$0xff]
  %v1740 = vld [vmem:[%s1 + $0x3540] sm:$0xff]
  %v1741 = vld [vmem:[%s1 + $0x3548] sm:$0xff]
  %v1742 = vld [vmem:[%s1 + $0x3550] sm:$0xff]
  %v1743 = vld [vmem:[%s1 + $0x3558] sm:$0xff]
  %v1744 = vld [vmem:[%s1 + $0x3560] sm:$0xff]
  %v1745 = vld [vmem:[%s1 + $0x3568] sm:$0xff]
  %v1746 = vld [vmem:[%s1 + $0x3570] sm:$0xff]
  %v1747 = vld [vmem:[%s1 + $0x3578] sm:$0xff]
  %v1748 = vld [vmem:[%s1 + $0x3580] sm:$0xff]
  %v1749 = vld [vmem:[%s1 + $0x3588] sm:$0xff]
  %v1750 = vld [vmem:[%s1 + $0x3590] sm:$0xff]
  %v1751 = vld [vmem:[%s1 + $0x3598] sm:$0xff]
  %v1752 = vld [vmem:[%s1 + $0x35a0] sm:$0xff]
  %v1753 = vld [vmem:[%s1 + $0x35a8] sm:$0xff]
  %v1754 = vld [vmem:[%s1 + $0x35b0] sm:$0xff]
  %v1755 = vld [vmem:[%s1 + $0x35b8] sm:$0xff]
  %v1756 = vld [vmem:[%s1 + $0x35c0] sm:$0xff]
  %v1757 = vld [vmem:[%s1 + $0x35c8] sm:$0xff]
  %v1758 = vld [vmem:[%s1 + $0x35d0] sm:$0xff]
  %v1759 = vld [vmem:[%s1 + $0x35d8] sm:$0xff]
  %v1760 = vld [vmem:[%s1 + $0x35e0] sm:$0xff]
  %v1761 = vld [vmem:[%s1 + $0x35e8] sm:$0xff]
  %v1762 = vld [vmem:[%s1 + $0x35f0] sm:$0xff]
  %v1763 = vld [vmem:[%s1 + $0x35f8] sm:$0xff]
  %v1764 = vld [vmem:[%s1 + $0x3600] sm:$0xff]
  %v1765 = vld [vmem:[%s1 + $0x3608] sm:$0xff]
  %v1766 = vld [vmem:[%s1 + $0x3610] sm:$0xff]
  %v1767 = vld [vmem:[%s1 + $0x3618] sm:$0xff]
  %v1768 = vld [vmem:[%s1 + $0x3620] sm:$0xff]
  %v1769 = vld [vmem:[%s1 + $0x3628] sm:$0xff]
  %v1770 = vld [vmem:[%s1 + $0x3630] sm:$0xff]
  %v1771 = vld [vmem:[%s1 + $0x3638] sm:$0xff]
  %v1772 = vld [vmem:[%s1 + $0x3640] sm:$0xff]
  %v1773 = vld [vmem:[%s1 + $0x3648] sm:$0xff]
  %v1774 = vld [vmem:[%s1 + $0x3650] sm:$0xff]
  %v1775 = vld [vmem:[%s1 + $0x3658] sm:$0xff]
  %v1776 = vld [vmem:[%s1 + $0x3660] sm:$0xff]
  %v1777 = vld [vmem:[%s1 + $0x3668] sm:$0xff]
  %v1778 = vld [vmem:[%s1 + $0x3670] sm:$0xff]
  %v1779 = vld [vmem:[%s1 + $0x3678] sm:$0xff]
  %v1780 = vld [vmem:[%s1 + $0x3680] sm:$0xff]
  %v1781 = vld [vmem:[%s1 + $0x3688] sm:$0xff]
  %v1782 = vld [vmem:[%s1 + $0x3690] sm:$0xff]
  %v1783 = vld [vmem:[%s1 + $0x3698] sm:$0xff]
  %v1784 = vld [vmem:[%s1 + $0x36a0] sm:$0xff]
  %v1785 = vld [vmem:[%s1 + $0x36a8] sm:$0xff]
  %v1786 = vld [vmem:[%s1 + $0x36b0] sm:$0xff]
  %v1787 = vld [vmem:[%s1 + $0x36b8] sm:$0xff]
  %v1788 = vld [vmem:[%s1 + $0x36c0] sm:$0xff]
  %v1789 = vld [vmem:[%s1 + $0x36c8] sm:$0xff]
  %v1790 = vld [vmem:[%s1 + $0x36d0] sm:$0xff]
  %v1791 = vld [vmem:[%s1 + $0x36d8] sm:$0xff]
  %v1792 = vld [vmem:[%s1 + $0x36e0] sm:$0xff]
  %v1793 = vld [vmem:[%s1 + $0x36e8] sm:$0xff]
  %v1794 = vld [vmem:[%s1 + $0x36f0] sm:$0xff]
  %v1795 = vld [vmem:[%s1 + $0x36f8] sm:$0xff]
  %v1796 = vld [vmem:[%s1 + $0x3700] sm:$0xff]
  %v1797 = vld [vmem:[%s1 + $0x3708] sm:$0xff]
  %v1798 = vld [vmem:[%s1 + $0x3710] sm:$0xff]
  %v1799 = vld [vmem:[%s1 + $0x3718] sm:$0xff]
  %v1800 = vld [vmem:[%s1 + $0x3720] sm:$0xff]
  %v1801 = vld [vmem:[%s1 + $0x3728] sm:$0xff]
  %v1802 = vld [vmem:[%s1 + $0x3730] sm:$0xff]
  %v1803 = vld [vmem:[%s1 + $0x3738] sm:$0xff]
  %v1804 = vld [vmem:[%s1 + $0x3740] sm:$0xff]
  %v1805 = vld [vmem:[%s1 + $0x3748] sm:$0xff]
  %v1806 = vld [vmem:[%s1 + $0x3750] sm:$0xff]
  %v1807 = vld [vmem:[%s1 + $0x3758] sm:$0xff]
  %v1808 = vld [vmem:[%s1 + $0x3760] sm:$0xff]
  %v1809 = vld [vmem:[%s1 + $0x3768] sm:$0xff]
  %v1810 = vld [vmem:[%s1 + $0x3770] sm:$0xff]
  %v1811 = vld [vmem:[%s1 + $0x3778] sm:$0xff]
  %v1812 = vld [vmem:[%s1 + $0x3780] sm:$0xff]
  %v1813 = vld [vmem:[%s1 + $0x3788] sm:$0xff]
  %v1814 = vld [vmem:[%s1 + $0x3790] sm:$0xff]
  %v1815 = vld [vmem:[%s1 + $0x3798] sm:$0xff]
  %v1816 = vld [vmem:[%s1 + $0x37a0] sm:$0xff]
  %v1817 = vld [vmem:[%s1 + $0x37a8] sm:$0xff]
  %v1818 = vld [vmem:[%s1 + $0x37b0] sm:$0xff]
  %v1819 = vld [vmem:[%s1 + $0x37b8] sm:$0xff]
  %v1820 = vld [vmem:[%s1 + $0x37c0] sm:$0xff]
  %v1821 = vld [vmem:[%s1 + $0x37c8] sm:$0xff]
  %v1822 = vld [vmem:[%s1 + $0x37d0] sm:$0xff]
  %v1823 = vld [vmem:[%s1 + $0x37d8] sm:$0xff]
  %v1824 = vld [vmem:[%s1 + $0x37e0] sm:$0xff]
  %v1825 = vld [vmem:[%s1 + $0x37e8] sm:$0xff]
  %v1826 = vld [vmem:[%s1 + $0x37f0] sm:$0xff]
  %v1827 = vld [vmem:[%s1 + $0x37f8] sm:$0xff]
  %v1828 = vld [vmem:[%s1 + $0x3800] sm:$0xff]
  %v1829 = vld [vmem:[%s1 + $0x3808] sm:$0xff]
  %v1830 = vld [vmem:[%s1 + $0x3810] sm:$0xff]
  %v1831 = vld [vmem:[%s1 + $0x3818] sm:$0xff]
  %v1832 = vld [vmem:[%s1 + $0x3820] sm:$0xff]
  %v1833 = vld [vmem:[%s1 + $0x3828] sm:$0xff]
  %v1834 = vld [vmem:[%s1 + $0x3830] sm:$0xff]
  %v1835 = vld [vmem:[%s1 + $0x3838] sm:$0xff]
  %v1836 = vld [vmem:[%s1 + $0x3840] sm:$0xff]
  %v1837 = vld [vmem:[%s1 + $0x3848] sm:$0xff]
  %v1838 = vld [vmem:[%s1 + $0x3850] sm:$0xff]
  %v1839 = vld [vmem:[%s1 + $0x3858] sm:$0xff]
  %v1840 = vld [vmem:[%s1 + $0x3860] sm:$0xff]
  %v1841 = vld [vmem:[%s1 + $0x3868] sm:$0xff]
  %v1842 = vld [vmem:[%s1 + $0x3870] sm:$0xff]
  %v1843 = vld [vmem:[%s1 + $0x3878] sm:$0xff]
  %v1844 = vld [vmem:[%s1 + $0x3880] sm:$0xff]
  %v1845 = vld [vmem:[%s1 + $0x3888] sm:$0xff]
  %v1846 = vld [vmem:[%s1 + $0x3890] sm:$0xff]
  %v1847 = vld [vmem:[%s1 + $0x3898] sm:$0xff]
  %v1848 = vld [vmem:[%s1 + $0x38a0] sm:$0xff]
  %v1849 = vld [vmem:[%s1 + $0x38a8] sm:$0xff]
  %v1850 = vld [vmem:[%s1 + $0x38b0] sm:$0xff]
  %v1851 = vld [vmem:[%s1 + $0x38b8] sm:$0xff]
  %v1852 = vld [vmem:[%s1 + $0x38c0] sm:$0xff]
  %v1853 = vld [vmem:[%s1 + $0x38c8] sm:$0xff]
  %v1854 = vld [vmem:[%s1 + $0x38d0] sm:$0xff]
  %v1855 = vld [vmem:[%s1 + $0x38d8] sm:$0xff]
  %v1856 = vld [vmem:[%s1 + $0x38e0] sm:$0xff]
  %v1857 = vld [vmem:[%s1 + $0x38e8] sm:$0xff]
  %v1858 = vld [vmem:[%s1 + $0x38f0] sm:$0xff]
  %v1859 = vld [vmem:[%s1 + $0x38f8] sm:$0xff]
  %v1860 = vld [vmem:[%s1 + $0x3900] sm:$0xff]
  %v1861 = vld [vmem:[%s1 + $0x3908] sm:$0xff]
  %v1862 = vld [vmem:[%s1 + $0x3910] sm:$0xff]
  %v1863 = vld [vmem:[%s1 + $0x3918] sm:$0xff]
  %v1864 = vld [vmem:[%s1 + $0x3920] sm:$0xff]
  %v1865 = vld [vmem:[%s1 + $0x3928] sm:$0xff]
  %v1866 = vld [vmem:[%s1 + $0x3930] sm:$0xff]
  %v1867 = vld [vmem:[%s1 + $0x3938] sm:$0xff]
  %v1868 = vld [vmem:[%s1 + $0x3940] sm:$0xff]
  %v1869 = vld [vmem:[%s1 + $0x3948] sm:$0xff]
  %v1870 = vld [vmem:[%s1 + $0x3950] sm:$0xff]
  %v1871 = vld [vmem:[%s1 + $0x3958] sm:$0xff]
  %v1872 = vld [vmem:[%s1 + $0x3960] sm:$0xff]
  %v1873 = vld [vmem:[%s1 + $0x3968] sm:$0xff]
  %v1874 = vld [vmem:[%s1 + $0x3970] sm:$0xff]
  %v1875 = vld [vmem:[%s1 + $0x3978] sm:$0xff]
  %v1876 = vld [vmem:[%s1 + $0x3980] sm:$0xff]
  %v1877 = vld [vmem:[%s1 + $0x3988] sm:$0xff]
  %v1878 = vld [vmem:[%s1 + $0x3990] sm:$0xff]
  %v1879 = vld [vmem:[%s1 + $0x3998] sm:$0xff]
  %v1880 = vld [vmem:[%s1 + $0x39a0] sm:$0xff]
  %v1881 = vld [vmem:[%s1 + $0x39a8] sm:$0xff]
  %v1882 = vld [vmem:[%s1 + $0x39b0] sm:$0xff]
  %v1883 = vld [vmem:[%s1 + $0x39b8] sm:$0xff]
  %v1884 = vld [vmem:[%s1 + $0x39c0] sm:$0xff]
  %v1885 = vld [vmem:[%s1 + $0x39c8] sm:$0xff]
  %v1886 = vld [vmem:[%s1 + $0x39d0] sm:$0xff]
  %v1887 = vld [vmem:[%s1 + $0x39d8] sm:$0xff]
  %v1888 = vld [vmem:[%s1 + $0x39e0] sm:$0xff]
  %v1889 = vld [vmem:[%s1 + $0x39e8] sm:$0xff]
  %v1890 = vld [vmem:[%s1 + $0x39f0] sm:$0xff]
  %v1891 = vld [vmem:[%s1 + $0x39f8] sm:$0xff]
  %v1892 = vld [vmem:[%s1 + $0x3a00] sm:$0xff]
  %v1893 = vld [vmem:[%s1 + $0x3a08] sm:$0xff]
  %v1894 = vld [vmem:[%s1 + $0x3a10] sm:$0xff]
  %v1895 = vld [vmem:[%s1 + $0x3a18] sm:$0xff]
  %v1896 = vld [vmem:[%s1 + $0x3a20] sm:$0xff]
  %v1897 = vld [vmem:[%s1 + $0x3a28] sm:$0xff]
  %v1898 = vld [vmem:[%s1 + $0x3a30] sm:$0xff]
  %v1899 = vld [vmem:[%s1 + $0x3a38] sm:$0xff]
  %v1900 = vld [vmem:[%s1 + $0x3a40] sm:$0xff]
  %v1901 = vld [vmem:[%s1 + $0x3a48] sm:$0xff]
  %v1902 = vld [vmem:[%s1 + $0x3a50] sm:$0xff]
  %v1903 = vld [vmem:[%s1 + $0x3a58] sm:$0xff]
  %v1904 = vld [vmem:[%s1 + $0x3a60] sm:$0xff]
  %v1905 = vld [vmem:[%s1 + $0x3a68] sm:$0xff]
  %v1906 = vld [vmem:[%s1 + $0x3a70] sm:$0xff]
  %v1907 = vld [vmem:[%s1 + $0x3a78] sm:$0xff]
  %v1908 = vld [vmem:[%s1 + $0x3a80] sm:$0xff]
  %v1909 = vld [vmem:[%s1 + $0x3a88] sm:$0xff]
  %v1910 = vld [vmem:[%s1 + $0x3a90] sm:$0xff]
  %v1911 = vld [vmem:[%s1 + $0x3a98] sm:$0xff]
  %v1912 = vld [vmem:[%s1 + $0x3aa0] sm:$0xff]
  %v1913 = vld [vmem:[%s1 + $0x3aa8] sm:$0xff]
  %v1914 = vld [vmem:[%s1 + $0x3ab0] sm:$0xff]
  %v1915 = vld [vmem:[%s1 + $0x3ab8] sm:$0xff]
  %v1916 = vld [vmem:[%s1 + $0x3ac0] sm:$0xff]
  %v1917 = vld [vmem:[%s1 + $0x3ac8] sm:$0xff]
  %v1918 = vld [vmem:[%s1 + $0x3ad0] sm:$0xff]
  %v1919 = vld [vmem:[%s1 + $0x3ad8] sm:$0xff]
  %v1920 = vld [vmem:[%s1 + $0x3ae0] sm:$0xff]
  %v1921 = vld [vmem:[%s1 + $0x3ae8] sm:$0xff]
  %v1922 = vld [vmem:[%s1 + $0x3af0] sm:$0xff]
  %v1923 = vld [vmem:[%s1 + $0x3af8] sm:$0xff]
  %v1924 = vld [vmem:[%s1 + $0x3b00] sm:$0xff]
  %v1925 = vld [vmem:[%s1 + $0x3b08] sm:$0xff]
  %v1926 = vld [vmem:[%s1 + $0x3b10] sm:$0xff]
  %v1927 = vld [vmem:[%s1 + $0x3b18] sm:$0xff]
  %v1928 = vld [vmem:[%s1 + $0x3b20] sm:$0xff]
  %v1929 = vld [vmem:[%s1 + $0x3b28] sm:$0xff]
  %v1930 = vld [vmem:[%s1 + $0x3b30] sm:$0xff]
  %v1931 = vld [vmem:[%s1 + $0x3b38] sm:$0xff]
  %v1932 = vld [vmem:[%s1 + $0x3b40] sm:$0xff]
  %v1933 = vld [vmem:[%s1 + $0x3b48] sm:$0xff]
  %v1934 = vld [vmem:[%s1 + $0x3b50] sm:$0xff]
  %v1935 = vld [vmem:[%s1 + $0x3b58] sm:$0xff]
  %v1936 = vld [vmem:[%s1 + $0x3b60] sm:$0xff]
  %v1937 = vld [vmem:[%s1 + $0x3b68] sm:$0xff]
  %v1938 = vld [vmem:[%s1 + $0x3b70] sm:$0xff]
  %v1939 = vld [vmem:[%s1 + $0x3b78] sm:$0xff]
  %v1940 = vld [vmem:[%s1 + $0x3b80] sm:$0xff]
  %v1941 = vld [vmem:[%s1 + $0x3b88] sm:$0xff]
  %v1942 = vld [vmem:[%s1 + $0x3b90] sm:$0xff]
  %v1943 = vld [vmem:[%s1 + $0x3b98] sm:$0xff]
  %v1944 = vld [vmem:[%s1 + $0x3ba0] sm:$0xff]
  %v1945 = vld [vmem:[%s1 + $0x3ba8] sm:$0xff]
  %v1946 = vld [vmem:[%s1 + $0x3bb0] sm:$0xff]
  %v1947 = vld [vmem:[%s1 + $0x3bb8] sm:$0xff]
  %v1948 = vld [vmem:[%s1 + $0x3bc0] sm:$0xff]
  %v1949 = vld [vmem:[%s1 + $0x3bc8] sm:$0xff]
  %v1950 = vld [vmem:[%s1 + $0x3bd0] sm:$0xff]
  %v1951 = vld [vmem:[%s1 + $0x3bd8] sm:$0xff]
  %v1952 = vld [vmem:[%s1 + $0x3be0] sm:$0xff]
  %v1953 = vld [vmem:[%s1 + $0x3be8] sm:$0xff]
  %v1954 = vld [vmem:[%s1 + $0x3bf0] sm:$0xff]
  %v1955 = vld [vmem:[%s1 + $0x3bf8] sm:$0xff]
  %v1956 = vld [vmem:[%s1 + $0x3c00] sm:$0xff]
  %v1957 = vld [vmem:[%s1 + $0x3c08] sm:$0xff]
  %v1958 = vld [vmem:[%s1 + $0x3c10] sm:$0xff]
  %v1959 = vld [vmem:[%s1 + $0x3c18] sm:$0xff]
  %v1960 = vld [vmem:[%s1 + $0x3c20] sm:$0xff]
  %v1961 = vld [vmem:[%s1 + $0x3c28] sm:$0xff]
  %v1962 = vld [vmem:[%s1 + $0x3c30] sm:$0xff]
  %v1963 = vld [vmem:[%s1 + $0x3c38] sm:$0xff]
  %v1964 = vld [vmem:[%s1 + $0x3c40] sm:$0xff]
  %v1965 = vld [vmem:[%s1 + $0x3c48] sm:$0xff]
  %v1966 = vld [vmem:[%s1 + $0x3c50] sm:$0xff]
  %v1967 = vld [vmem:[%s1 + $0x3c58] sm:$0xff]
  %v1968 = vld [vmem:[%s1 + $0x3c60] sm:$0xff]
  %v1969 = vld [vmem:[%s1 + $0x3c68] sm:$0xff]
  %v1970 = vld [vmem:[%s1 + $0x3c70] sm:$0xff]
  %v1971 = vld [vmem:[%s1 + $0x3c78] sm:$0xff]
  %v1972 = vld [vmem:[%s1 + $0x3c80] sm:$0xff]
  %v1973 = vld [vmem:[%s1 + $0x3c88] sm:$0xff]
  %v1974 = vld [vmem:[%s1 + $0x3c90] sm:$0xff]
  %v1975 = vld [vmem:[%s1 + $0x3c98] sm:$0xff]
  %v1976 = vld [vmem:[%s1 + $0x3ca0] sm:$0xff]
  %v1977 = vld [vmem:[%s1 + $0x3ca8] sm:$0xff]
  %v1978 = vld [vmem:[%s1 + $0x3cb0] sm:$0xff]
  %v1979 = vld [vmem:[%s1 + $0x3cb8] sm:$0xff]
  %v1980 = vld [vmem:[%s1 + $0x3cc0] sm:$0xff]
  %v1981 = vld [vmem:[%s1 + $0x3cc8] sm:$0xff]
  %v1982 = vld [vmem:[%s1 + $0x3cd0] sm:$0xff]
  %v1983 = vld [vmem:[%s1 + $0x3cd8] sm:$0xff]
  %v1984 = vld [vmem:[%s1 + $0x3ce0] sm:$0xff]
  %v1985 = vld [vmem:[%s1 + $0x3ce8] sm:$0xff]
  %v1986 = vld [vmem:[%s1 + $0x3cf0] sm:$0xff]
  %v1987 = vld [vmem:[%s1 + $0x3cf8] sm:$0xff]
  %v1988 = vld [vmem:[%s1 + $0x3d00] sm:$0xff]
  %v1989 = vld [vmem:[%s1 + $0x3d08] sm:$0xff]
  %v1990 = vld [vmem:[%s1 + $0x3d10] sm:$0xff]
  %v1991 = vld [vmem:[%s1 + $0x3d18] sm:$0xff]
  %v1992 = vld [vmem:[%s1 + $0x3d20] sm:$0xff]
  %v1993 = vld [vmem:[%s1 + $0x3d28] sm:$0xff]
  %v1994 = vld [vmem:[%s1 + $0x3d30] sm:$0xff]
  %v1995 = vld [vmem:[%s1 + $0x3d38] sm:$0xff]
  %v1996 = vld [vmem:[%s1 + $0x3d40] sm:$0xff]
  %v1997 = vld [vmem:[%s1 + $0x3d48] sm:$0xff]
  %v1998 = vld [vmem:[%s1 + $0x3d50] sm:$0xff]
  %v1999 = vld [vmem:[%s1 + $0x3d58] sm:$0xff]
  %v2000 = vld [vmem:[%s1 + $0x3d60] sm:$0xff]
  %v2001 = vld [vmem:[%s1 + $0x3d68] sm:$0xff]
  %v2002 = vld [vmem:[%s1 + $0x3d70] sm:$0xff]
  %v2003 = vld [vmem:[%s1 + $0x3d78] sm:$0xff]
  %v2004 = vld [vmem:[%s1 + $0x3d80] sm:$0xff]
  %v2005 = vld [vmem:[%s1 + $0x3d88] sm:$0xff]
  %v2006 = vld [vmem:[%s1 + $0x3d90] sm:$0xff]
  %v2007 = vld [vmem:[%s1 + $0x3d98] sm:$0xff]
  %v2008 = vld [vmem:[%s1 + $0x3da0] sm:$0xff]
  %v2009 = vld [vmem:[%s1 + $0x3da8] sm:$0xff]
  %v2010 = vld [vmem:[%s1 + $0x3db0] sm:$0xff]
  %v2011 = vld [vmem:[%s1 + $0x3db8] sm:$0xff]
  %v2012 = vld [vmem:[%s1 + $0x3dc0] sm:$0xff]
  %v2013 = vld [vmem:[%s1 + $0x3dc8] sm:$0xff]
  %v2014 = vld [vmem:[%s1 + $0x3dd0] sm:$0xff]
  %v2015 = vld [vmem:[%s1 + $0x3dd8] sm:$0xff]
  %v2016 = vld [vmem:[%s1 + $0x3de0] sm:$0xff]
  %v2017 = vld [vmem:[%s1 + $0x3de8] sm:$0xff]
  %v2018 = vld [vmem:[%s1 + $0x3df0] sm:$0xff]
  %v2019 = vld [vmem:[%s1 + $0x3df8] sm:$0xff]
  %v2020 = vld [vmem:[%s1 + $0x3e00] sm:$0xff]
  %v2021 = vld [vmem:[%s1 + $0x3e08] sm:$0xff]
  %v2022 = vld [vmem:[%s1 + $0x3e10] sm:$0xff]
  %v2023 = vld [vmem:[%s1 + $0x3e18] sm:$0xff]
  %v2024 = vld [vmem:[%s1 + $0x3e20] sm:$0xff]
  %v2025 = vld [vmem:[%s1 + $0x3e28] sm:$0xff]
  %v2026 = vld [vmem:[%s1 + $0x3e30] sm:$0xff]
  %v2027 = vld [vmem:[%s1 + $0x3e38] sm:$0xff]
  %v2028 = vld [vmem:[%s1 + $0x3e40] sm:$0xff]
  %v2029 = vld [vmem:[%s1 + $0x3e48] sm:$0xff]
  %v2030 = vld [vmem:[%s1 + $0x3e50] sm:$0xff]
  %v2031 = vld [vmem:[%s1 + $0x3e58] sm:$0xff]
  %v2032 = vld [vmem:[%s1 + $0x3e60] sm:$0xff]
  %v2033 = vld [vmem:[%s1 + $0x3e68] sm:$0xff]
  %v2034 = vld [vmem:[%s1 + $0x3e70] sm:$0xff]
  %v2035 = vld [vmem:[%s1 + $0x3e78] sm:$0xff]
  %v2036 = vld [vmem:[%s1 + $0x3e80] sm:$0xff]
  %v2037 = vld [vmem:[%s1 + $0x3e88] sm:$0xff]
  %v2038 = vld [vmem:[%s1 + $0x3e90] sm:$0xff]
  %v2039 = vld [vmem:[%s1 + $0x3e98] sm:$0xff]
  %v2040 = vld [vmem:[%s1 + $0x3ea0] sm:$0xff]
  %v2041 = vld [vmem:[%s1 + $0x3ea8] sm:$0xff]
  %v2042 = vld [vmem:[%s1 + $0x3eb0] sm:$0xff]
  %v2043 = vld [vmem:[%s1 + $0x3eb8] sm:$0xff]
  %v2044 = vld [vmem:[%s1 + $0x3ec0] sm:$0xff]
  %v2045 = vld [vmem:[%s1 + $0x3ec8] sm:$0xff]
  %v2046 = vld [vmem:[%s1 + $0x3ed0] sm:$0xff]
  %v2047 = vld [vmem:[%s1 + $0x3ed8] sm:$0xff]
  %v2048 = vld [vmem:[%s1 + $0x3ee0] sm:$0xff]
  %v2049 = vld [vmem:[%s1 + $0x3ee8] sm:$0xff]
  %v2050 = vld [vmem:[%s1 + $0x3ef0] sm:$0xff]
  %v2051 = vld [vmem:[%s1 + $0x3ef8] sm:$0xff]
  %v2052 = vld [vmem:[%s1 + $0x3f00] sm:$0xff]
  %v2053 = vld [vmem:[%s1 + $0x3f08] sm:$0xff]
  %v2054 = vld [vmem:[%s1 + $0x3f10] sm:$0xff]
  %v2055 = vld [vmem:[%s1 + $0x3f18] sm:$0xff]
  %v2056 = vld [vmem:[%s1 + $0x3f20] sm:$0xff]
  %v2057 = vld [vmem:[%s1 + $0x3f28] sm:$0xff]
  %v2058 = vld [vmem:[%s1 + $0x3f30] sm:$0xff]
  %v2059 = vld [vmem:[%s1 + $0x3f38] sm:$0xff]
  %v2060 = vld [vmem:[%s1 + $0x3f40] sm:$0xff]
  %v2061 = vld [vmem:[%s1 + $0x3f48] sm:$0xff]
  %v2062 = vld [vmem:[%s1 + $0x3f50] sm:$0xff]
  %v2063 = vld [vmem:[%s1 + $0x3f58] sm:$0xff]
  %v2064 = vld [vmem:[%s1 + $0x3f60] sm:$0xff]
  %v2065 = vld [vmem:[%s1 + $0x3f68] sm:$0xff]
  %v2066 = vld [vmem:[%s1 + $0x3f70] sm:$0xff]
  %v2067 = vld [vmem:[%s1 + $0x3f78] sm:$0xff]
  %v2068 = vld [vmem:[%s1 + $0x3f80] sm:$0xff]
  %v2069 = vld [vmem:[%s1 + $0x3f88] sm:$0xff]
  %v2070 = vld [vmem:[%s1 + $0x3f90] sm:$0xff]
  %v2071 = vld [vmem:[%s1 + $0x3f98] sm:$0xff]
  %v2072 = vld [vmem:[%s1 + $0x3fa0] sm:$0xff]
  %v2073 = vld [vmem:[%s1 + $0x3fa8] sm:$0xff]
  %v2074 = vld [vmem:[%s1 + $0x3fb0] sm:$0xff]
  %v2075 = vld [vmem:[%s1 + $0x3fb8] sm:$0xff]
  %v2076 = vld [vmem:[%s1 + $0x3fc0] sm:$0xff]
  %v2077 = vld [vmem:[%s1 + $0x3fc8] sm:$0xff]
  %v2078 = vld [vmem:[%s1 + $0x3fd0] sm:$0xff]
  %v2079 = vld [vmem:[%s1 + $0x3fd8] sm:$0xff]
  %v2080 = vld [vmem:[%s1 + $0x3fe0] sm:$0xff]
  %v2081 = vld [vmem:[%s1 + $0x3fe8] sm:$0xff]
  %v2082 = vld [vmem:[%s1 + $0x3ff0] sm:$0xff]
  %v2083 = vld [vmem:[%s1 + $0x3ff8] sm:$0xff]
  %2084 = vmatprep.subr.mxu0 %v37
  %2085 = vmatpush1.msra.mxu0 %v36
  %2086 = vmatprep.subr.mxu0 %v53
  %2087 = vmatpush1.msra.mxu0 %v52
  %2088 = vmatprep.subr.mxu0 %v69
  %2089 = vmatpush1.msra.mxu0 %v68
  %2090 = vmatprep.subr.mxu0 %v85
  %2091 = vmatpush1.msra.mxu0 %v84
  %2092 = vmatprep.subr.mxu0 %v101
  %2093 = vmatpush1.msra.mxu0 %v100
  %2094 = vmatprep.subr.mxu0 %v117
  %2095 = vmatpush1.msra.mxu0 %v116
  %2096 = vmatprep.subr.mxu0 %v133
  %2097 = vmatpush1.msra.mxu0 %v132
  %2098 = vmatprep.subr.mxu0 %v149
  %2099 = vmatpush1.msra.mxu0 %v148
  %2100 = vmatprep.subr.mxu0 %v165
  %2101 = vmatpush1.msra.mxu0 %v164
  %2102 = vmatprep.subr.mxu0 %v181
  %2103 = vmatpush1.msra.mxu0 %v180
  %2104 = vmatprep.subr.mxu0 %v197
  %2105 = vmatpush1.msra.mxu0 %v196
  %2106 = vmatprep.subr.mxu0 %v213
  %2107 = vmatpush1.msra.mxu0 %v212
  %2108 = vmatprep.subr.mxu0 %v229
  %2109 = vmatpush1.msra.mxu0 %v228
  %2110 = vmatprep.subr.mxu0 %v245
  %2111 = vmatpush1.msra.mxu0 %v244
  %2112 = vmatprep.subr.mxu0 %v261
  %2113 = vmatpush1.msra.mxu0 %v260
  %2114 = vmatprep.subr.mxu0 %v277
  %2115 = vmatpush1.msra.mxu0 %v276
  %2116 = vmatprep.subr.mxu0 %v293
  %2117 = vmatpush1.msra.mxu0 %v292
  %2118 = vmatprep.subr.mxu0 %v309
  %2119 = vmatpush1.msra.mxu0 %v308
  %2120 = vmatprep.subr.mxu0 %v325
  %2121 = vmatpush1.msra.mxu0 %v324
  %2122 = vmatprep.subr.mxu0 %v341
  %2123 = vmatpush1.msra.mxu0 %v340
  %2124 = vmatprep.subr.mxu0 %v357
  %2125 = vmatpush1.msra.mxu0 %v356
  %2126 = vmatprep.subr.mxu0 %v373
  %2127 = vmatpush1.msra.mxu0 %v372
  %2128 = vmatprep.subr.mxu0 %v389
  %2129 = vmatpush1.msra.mxu0 %v388
  %2130 = vmatprep.subr.mxu0 %v405
  %2131 = vmatpush1.msra.mxu0 %v404
  %2132 = vmatprep.subr.mxu0 %v421
  %2133 = vmatpush1.msra.mxu0 %v420
  %2134 = vmatprep.subr.mxu0 %v437
  %2135 = vmatpush1.msra.mxu0 %v436
  %2136 = vmatprep.subr.mxu0 %v453
  %2137 = vmatpush1.msra.mxu0 %v452
  %2138 = vmatprep.subr.mxu0 %v469
  %2139 = vmatpush1.msra.mxu0 %v468
  %2140 = vmatprep.subr.mxu0 %v485
  %2141 = vmatpush1.msra.mxu0 %v484
  %2142 = vmatprep.subr.mxu0 %v501
  %2143 = vmatpush1.msra.mxu0 %v500
  %2144 = vmatprep.subr.mxu0 %v517
  %2145 = vmatpush1.msra.mxu0 %v516
  %2146 = vmatprep.subr.mxu0 %v533
  %2147 = vmatpush1.msra.mxu0 %v532
  %2148 = vmatprep.mubr.f32.mxu0 %v21
  %2149 = vmatmul.mubr.f32.gmra.mrb[0].mxu0 %v20
  %v2150 = vpop.f32.mrb[0].mxu0
  %v2151 = vadd.f32 0.0, %v2150
  %v2152 = vpop.f32.mrb[0].mxu0
  %v2153 = vadd.f32 0.0, %v2152
  %2154 = vmatprep.mubr.f32.mxu0 %v29
  %2155 = vmatmul.mubr.f32.gmra.mrb[0].mxu0 %v28
  %v2156 = vpop.f32.mrb[0].mxu0
  %v2157 = vadd.f32 0.0, %v2156
  %v2158 = vpop.f32.mrb[0].mxu0
  %v2159 = vadd.f32 0.0, %v2158
  %2160 = vdwg.mxu0
  %2161 = vmatprep.subr.mxu0 %v549
  %2162 = vmatpush1.msra.mxu0 %v548
  %2163 = vmatprep.subr.mxu0 %v565
  %2164 = vmatpush1.msra.mxu0 %v564
  %2165 = vmatprep.subr.mxu0 %v581
  %2166 = vmatpush1.msra.mxu0 %v580
  %2167 = vmatprep.subr.mxu0 %v597
  %2168 = vmatpush1.msra.mxu0 %v596
  %2169 = vmatprep.subr.mxu0 %v613
  %2170 = vmatpush1.msra.mxu0 %v612
  %2171 = vmatprep.subr.mxu0 %v629
  %2172 = vmatpush1.msra.mxu0 %v628
  %2173 = vmatprep.subr.mxu0 %v645
  %2174 = vmatpush1.msra.mxu0 %v644
  %2175 = vmatprep.subr.mxu0 %v661
  %2176 = vmatpush1.msra.mxu0 %v660
  %2177 = vmatprep.subr.mxu0 %v677
  %2178 = vmatpush1.msra.mxu0 %v676
  %2179 = vmatprep.subr.mxu0 %v693
  %2180 = vmatpush1.msra.mxu0 %v692
  %2181 = vmatprep.subr.mxu0 %v709
  %2182 = vmatpush1.msra.mxu0 %v708
  %2183 = vmatprep.subr.mxu0 %v725
  %2184 = vmatpush1.msra.mxu0 %v724
  %2185 = vmatprep.subr.mxu0 %v741
  %2186 = vmatpush1.msra.mxu0 %v740
  %2187 = vmatprep.subr.mxu0 %v757
  %2188 = vmatpush1.msra.mxu0 %v756
  %2189 = vmatprep.subr.mxu0 %v773
  %2190 = vmatpush1.msra.mxu0 %v772
  %2191 = vmatprep.subr.mxu0 %v789
  %2192 = vmatpush1.msra.mxu0 %v788
  %2193 = vmatprep.subr.mxu0 %v805
  %2194 = vmatpush1.msra.mxu0 %v804
  %2195 = vmatprep.subr.mxu0 %v821
  %2196 = vmatpush1.msra.mxu0 %v820
  %2197 = vmatprep.subr.mxu0 %v837
  %2198 = vmatpush1.msra.mxu0 %v836
  %2199 = vmatprep.subr.mxu0 %v853
  %2200 = vmatpush1.msra.mxu0 %v852
  %2201 = vmatprep.subr.mxu0 %v869
  %2202 = vmatpush1.msra.mxu0 %v868
  %2203 = vmatprep.subr.mxu0 %v885
  %2204 = vmatpush1.msra.mxu0 %v884
  %2205 = vmatprep.subr.mxu0 %v901
  %2206 = vmatpush1.msra.mxu0 %v900
  %2207 = vmatprep.subr.mxu0 %v917
  %2208 = vmatpush1.msra.mxu0 %v916
  %2209 = vmatprep.subr.mxu0 %v933
  %2210 = vmatpush1.msra.mxu0 %v932
  %2211 = vmatprep.subr.mxu0 %v949
  %2212 = vmatpush1.msra.mxu0 %v948
  %2213 = vmatprep.subr.mxu0 %v965
  %2214 = vmatpush1.msra.mxu0 %v964
  %2215 = vmatprep.subr.mxu0 %v981
  %2216 = vmatpush1.msra.mxu0 %v980
  %2217 = vmatprep.subr.mxu0 %v997
  %2218 = vmatpush1.msra.mxu0 %v996
  %2219 = vmatprep.subr.mxu0 %v1013
  %2220 = vmatpush1.msra.mxu0 %v1012
  %2221 = vmatprep.subr.mxu0 %v1029
  %2222 = vmatpush1.msra.mxu0 %v1028
  %2223 = vmatprep.subr.mxu0 %v1045
  %2224 = vmatpush1.msra.mxu0 %v1044
  %2225 = vmatprep.mubr.f32.mxu0 %v23
  %2226 = vmatmul.mubr.f32.gmra.mrb[0].mxu0 %v22
  %v2227 = vpop.f32.mrb[0].mxu0
  %v2228 = vadd.f32 %v2151, %v2227
  %v2229 = vpop.f32.mrb[0].mxu0
  %v2230 = vadd.f32 %v2153, %v2229
  %2231 = vmatprep.mubr.f32.mxu0 %v31
  %2232 = vmatmul.mubr.f32.gmra.mrb[0].mxu0 %v30
  %v2233 = vpop.f32.mrb[0].mxu0
  %v2234 = vadd.f32 %v2157, %v2233
  %v2235 = vpop.f32.mrb[0].mxu0
  %v2236 = vadd.f32 %v2159, %v2235
  %2237 = vdwg.mxu0
  %2238 = vmatprep.subr.mxu0 %v1061
  %2239 = vmatpush1.msra.mxu0 %v1060
  %2240 = vmatprep.subr.mxu0 %v1077
  %2241 = vmatpush1.msra.mxu0 %v1076
  %2242 = vmatprep.subr.mxu0 %v1093
  %2243 = vmatpush1.msra.mxu0 %v1092
  %2244 = vmatprep.subr.mxu0 %v1109
  %2245 = vmatpush1.msra.mxu0 %v1108
  %2246 = vmatprep.subr.mxu0 %v1125
  %2247 = vmatpush1.msra.mxu0 %v1124
  %2248 = vmatprep.subr.mxu0 %v1141
  %2249 = vmatpush1.msra.mxu0 %v1140
  %2250 = vmatprep.subr.mxu0 %v1157
  %2251 = vmatpush1.msra.mxu0 %v1156
  %2252 = vmatprep.subr.mxu0 %v1173
  %2253 = vmatpush1.msra.mxu0 %v1172
  %2254 = vmatprep.subr.mxu0 %v1189
  %2255 = vmatpush1.msra.mxu0 %v1188
  %2256 = vmatprep.subr.mxu0 %v1205
  %2257 = vmatpush1.msra.mxu0 %v1204
  %2258 = vmatprep.subr.mxu0 %v1221
  %2259 = vmatpush1.msra.mxu0 %v1220
  %2260 = vmatprep.subr.mxu0 %v1237
  %2261 = vmatpush1.msra.mxu0 %v1236
  %2262 = vmatprep.subr.mxu0 %v1253
  %2263 = vmatpush1.msra.mxu0 %v1252
  %2264 = vmatprep.subr.mxu0 %v1269
  %2265 = vmatpush1.msra.mxu0 %v1268
  %2266 = vmatprep.subr.mxu0 %v1285
  %2267 = vmatpush1.msra.mxu0 %v1284
  %2268 = vmatprep.subr.mxu0 %v1301
  %2269 = vmatpush1.msra.mxu0 %v1300
  %2270 = vmatprep.subr.mxu0 %v1317
  %2271 = vmatpush1.msra.mxu0 %v1316
  %2272 = vmatprep.subr.mxu0 %v1333
  %2273 = vmatpush1.msra.mxu0 %v1332
  %2274 = vmatprep.subr.mxu0 %v1349
  %2275 = vmatpush1.msra.mxu0 %v1348
  %2276 = vmatprep.subr.mxu0 %v1365
  %2277 = vmatpush1.msra.mxu0 %v1364
  %2278 = vmatprep.subr.mxu0 %v1381
  %2279 = vmatpush1.msra.mxu0 %v1380
  %2280 = vmatprep.subr.mxu0 %v1397
  %2281 = vmatpush1.msra.mxu0 %v1396
  %2282 = vmatprep.subr.mxu0 %v1413
  %2283 = vmatpush1.msra.mxu0 %v1412
  %2284 = vmatprep.subr.mxu0 %v1429
  %2285 = vmatpush1.msra.mxu0 %v1428
  %2286 = vmatprep.subr.mxu0 %v1445
  %2287 = vmatpush1.msra.mxu0 %v1444
  %2288 = vmatprep.subr.mxu0 %v1461
  %2289 = vmatpush1.msra.mxu0 %v1460
  %2290 = vmatprep.subr.mxu0 %v1477
  %2291 = vmatpush1.msra.mxu0 %v1476
  %2292 = vmatprep.subr.mxu0 %v1493
  %2293 = vmatpush1.msra.mxu0 %v1492
  %2294 = vmatprep.subr.mxu0 %v1509
  %2295 = vmatpush1.msra.mxu0 %v1508
  %2296 = vmatprep.subr.mxu0 %v1525
  %2297 = vmatpush1.msra.mxu0 %v1524
  %2298 = vmatprep.subr.mxu0 %v1541
  %2299 = vmatpush1.msra.mxu0 %v1540
  %2300 = vmatprep.subr.mxu0 %v1557
  %2301 = vmatpush1.msra.mxu0 %v1556
  %2302 = vmatprep.mubr.f32.mxu0 %v25
  %2303 = vmatmul.mubr.f32.gmra.mrb[0].mxu0 %v24
  %v2304 = vpop.f32.mrb[0].mxu0
  %v2305 = vadd.f32 %v2228, %v2304
  %v2306 = vpop.f32.mrb[0].mxu0
  %v2307 = vadd.f32 %v2230, %v2306
  %2308 = vmatprep.mubr.f32.mxu0 %v33
  %2309 = vmatmul.mubr.f32.gmra.mrb[0].mxu0 %v32
  %v2310 = vpop.f32.mrb[0].mxu0
  %v2311 = vadd.f32 %v2234, %v2310
  %v2312 = vpop.f32.mrb[0].mxu0
  %v2313 = vadd.f32 %v2236, %v2312
  %2314 = vdwg.mxu0
  %2315 = vmatprep.subr.mxu0 %v1573
  %2316 = vmatpush1.msra.mxu0 %v1572
  %2317 = vmatprep.subr.mxu0 %v1589
  %2318 = vmatpush1.msra.mxu0 %v1588
  %2319 = vmatprep.subr.mxu0 %v1605
  %2320 = vmatpush1.msra.mxu0 %v1604
  %2321 = vmatprep.subr.mxu0 %v1621
  %2322 = vmatpush1.msra.mxu0 %v1620
  %2323 = vmatprep.subr.mxu0 %v1637
  %2324 = vmatpush1.msra.mxu0 %v1636
  %2325 = vmatprep.subr.mxu0 %v1653
  %2326 = vmatpush1.msra.mxu0 %v1652
  %2327 = vmatprep.subr.mxu0 %v1669
  %2328 = vmatpush1.msra.mxu0 %v1668
  %2329 = vmatprep.subr.mxu0 %v1685
  %2330 = vmatpush1.msra.mxu0 %v1684
  %2331 = vmatprep.subr.mxu0 %v1701
  %2332 = vmatpush1.msra.mxu0 %v1700
  %2333 = vmatprep.subr.mxu0 %v1717
  %2334 = vmatpush1.msra.mxu0 %v1716
  %2335 = vmatprep.subr.mxu0 %v1733
  %2336 = vmatpush1.msra.mxu0 %v1732
  %2337 = vmatprep.subr.mxu0 %v1749
  %2338 = vmatpush1.msra.mxu0 %v1748
  %2339 = vmatprep.subr.mxu0 %v1765
  %2340 = vmatpush1.msra.mxu0 %v1764
  %2341 = vmatprep.subr.mxu0 %v1781
  %2342 = vmatpush1.msra.mxu0 %v1780
  %2343 = vmatprep.subr.mxu0 %v1797
  %2344 = vmatpush1.msra.mxu0 %v1796
  %2345 = vmatprep.subr.mxu0 %v1813
  %2346 = vmatpush1.msra.mxu0 %v1812
  %2347 = vmatprep.subr.mxu0 %v1829
  %2348 = vmatpush1.msra.mxu0 %v1828
  %2349 = vmatprep.subr.mxu0 %v1845
  %2350 = vmatpush1.msra.mxu0 %v1844
  %2351 = vmatprep.subr.mxu0 %v1861
  %2352 = vmatpush1.msra.mxu0 %v1860
  %2353 = vmatprep.subr.mxu0 %v1877
  %2354 = vmatpush1.msra.mxu0 %v1876
  %2355 = vmatprep.subr.mxu0 %v1893
  %2356 = vmatpush1.msra.mxu0 %v1892
  %2357 = vmatprep.subr.mxu0 %v1909
  %2358 = vmatpush1.msra.mxu0 %v1908
  %2359 = vmatprep.subr.mxu0 %v1925
  %2360 = vmatpush1.msra.mxu0 %v1924
  %2361 = vmatprep.subr.mxu0 %v1941
  %2362 = vmatpush1.msra.mxu0 %v1940
  %2363 = vmatprep.subr.mxu0 %v1957
  %2364 = vmatpush1.msra.mxu0 %v1956
  %2365 = vmatprep.subr.mxu0 %v1973
  %2366 = vmatpush1.msra.mxu0 %v1972
  %2367 = vmatprep.subr.mxu0 %v1989
  %2368 = vmatpush1.msra.mxu0 %v1988
  %2369 = vmatprep.subr.mxu0 %v2005
  %2370 = vmatpush1.msra.mxu0 %v2004
  %2371 = vmatprep.subr.mxu0 %v2021
  %2372 = vmatpush1.msra.mxu0 %v2020
  %2373 = vmatprep.subr.mxu0 %v2037
  %2374 = vmatpush1.msra.mxu0 %v2036
  %2375 = vmatprep.subr.mxu0 %v2053
  %2376 = vmatpush1.msra.mxu0 %v2052
  %2377 = vmatprep.subr.mxu0 %v2069
  %2378 = vmatpush1.msra.mxu0 %v2068
  %2379 = vmatprep.mubr.f32.mxu0 %v27
  %2380 = vmatmul.mubr.f32.gmra.mrb[0].mxu0 %v26
  %v2381 = vpop.f32.mrb[0].mxu0
  %v2382 = vadd.f32 %v2305, %v2381
  %v2383 = vpop.f32.mrb[0].mxu0
  %v2384 = vadd.f32 %v2307, %v2383
  %2385 = vmatprep.mubr.f32.mxu0 %v35
  %2386 = vmatmul.mubr.f32.gmra.mrb[0].mxu0 %v34
  %v2387 = vpop.f32.mrb[0].mxu0
  %v2388 = vadd.f32 %v2311, %v2387
  %v2389 = vpop.f32.mrb[0].mxu0
  %v2390 = vadd.f32 %v2313, %v2389
  %2391 = vdwg.mxu0
  %2392 = vmatprep.subr.mxu0 %v39
  %2393 = vmatpush1.msra.mxu0 %v38
  %2394 = vmatprep.subr.mxu0 %v55
  %2395 = vmatpush1.msra.mxu0 %v54
  %2396 = vmatprep.subr.mxu0 %v71
  %2397 = vmatpush1.msra.mxu0 %v70
  %2398 = vmatprep.subr.mxu0 %v87
  %2399 = vmatpush1.msra.mxu0 %v86
  %2400 = vmatprep.subr.mxu0 %v103
  %2401 = vmatpush1.msra.mxu0 %v102
  %2402 = vmatprep.subr.mxu0 %v119
  %2403 = vmatpush1.msra.mxu0 %v118
  %2404 = vmatprep.subr.mxu0 %v135
  %2405 = vmatpush1.msra.mxu0 %v134
  %2406 = vmatprep.subr.mxu0 %v151
  %2407 = vmatpush1.msra.mxu0 %v150
  %2408 = vmatprep.subr.mxu0 %v167
  %2409 = vmatpush1.msra.mxu0 %v166
  %2410 = vmatprep.subr.mxu0 %v183
  %2411 = vmatpush1.msra.mxu0 %v182
  %2412 = vmatprep.subr.mxu0 %v199
  %2413 = vmatpush1.msra.mxu0 %v198
  %2414 = vmatprep.subr.mxu0 %v215
  %2415 = vmatpush1.msra.mxu0 %v214
  %2416 = vmatprep.subr.mxu0 %v231
  %2417 = vmatpush1.msra.mxu0 %v230
  %2418 = vmatprep.subr.mxu0 %v247
  %2419 = vmatpush1.msra.mxu0 %v246
  %2420 = vmatprep.subr.mxu0 %v263
  %2421 = vmatpush1.msra.mxu0 %v262
  %2422 = vmatprep.subr.mxu0 %v279
  %2423 = vmatpush1.msra.mxu0 %v278
  %2424 = vmatprep.subr.mxu0 %v295
  %2425 = vmatpush1.msra.mxu0 %v294
  %2426 = vmatprep.subr.mxu0 %v311
  %2427 = vmatpush1.msra.mxu0 %v310
  %2428 = vmatprep.subr.mxu0 %v327
  %2429 = vmatpush1.msra.mxu0 %v326
  %2430 = vmatprep.subr.mxu0 %v343
  %2431 = vmatpush1.msra.mxu0 %v342
  %2432 = vmatprep.subr.mxu0 %v359
  %2433 = vmatpush1.msra.mxu0 %v358
  %2434 = vmatprep.subr.mxu0 %v375
  %2435 = vmatpush1.msra.mxu0 %v374
  %2436 = vmatprep.subr.mxu0 %v391
  %2437 = vmatpush1.msra.mxu0 %v390
  %2438 = vmatprep.subr.mxu0 %v407
  %2439 = vmatpush1.msra.mxu0 %v406
  %2440 = vmatprep.subr.mxu0 %v423
  %2441 = vmatpush1.msra.mxu0 %v422
  %2442 = vmatprep.subr.mxu0 %v439
  %2443 = vmatpush1.msra.mxu0 %v438
  %2444 = vmatprep.subr.mxu0 %v455
  %2445 = vmatpush1.msra.mxu0 %v454
  %2446 = vmatprep.subr.mxu0 %v471
  %2447 = vmatpush1.msra.mxu0 %v470
  %2448 = vmatprep.subr.mxu0 %v487
  %2449 = vmatpush1.msra.mxu0 %v486
  %2450 = vmatprep.subr.mxu0 %v503
  %2451 = vmatpush1.msra.mxu0 %v502
  %2452 = vmatprep.subr.mxu0 %v519
  %2453 = vmatpush1.msra.mxu0 %v518
  %2454 = vmatprep.subr.mxu0 %v535
  %2455 = vmatpush1.msra.mxu0 %v534
  %2456 = vmatprep.mubr.f32.mxu0 %v21
  %2457 = vmatmul.mubr.f32.gmra.mrb[0].mxu0 %v20
  %v2458 = vpop.f32.mrb[0].mxu0
  %v2459 = vadd.f32 0.0, %v2458
  %v2460 = vpop.f32.mrb[0].mxu0
  %v2461 = vadd.f32 0.0, %v2460
  %2462 = vmatprep.mubr.f32.mxu0 %v29
  %2463 = vmatmul.mubr.f32.gmra.mrb[0].mxu0 %v28
  %v2464 = vpop.f32.mrb[0].mxu0
  %v2465 = vadd.f32 0.0, %v2464
  %v2466 = vpop.f32.mrb[0].mxu0
  %v2467 = vadd.f32 0.0, %v2466
  %2468 = vdwg.mxu0
  %2469 = vmatprep.subr.mxu0 %v551
  %2470 = vmatpush1.msra.mxu0 %v550
  %2471 = vmatprep.subr.mxu0 %v567
  %2472 = vmatpush1.msra.mxu0 %v566
  %2473 = vmatprep.subr.mxu0 %v583
  %2474 = vmatpush1.msra.mxu0 %v582
  %2475 = vmatprep.subr.mxu0 %v599
  %2476 = vmatpush1.msra.mxu0 %v598
  %2477 = vmatprep.subr.mxu0 %v615
  %2478 = vmatpush1.msra.mxu0 %v614
  %2479 = vmatprep.subr.mxu0 %v631
  %2480 = vmatpush1.msra.mxu0 %v630
  %2481 = vmatprep.subr.mxu0 %v647
  %2482 = vmatpush1.msra.mxu0 %v646
  %2483 = vmatprep.subr.mxu0 %v663
  %2484 = vmatpush1.msra.mxu0 %v662
  %2485 = vmatprep.subr.mxu0 %v679
  %2486 = vmatpush1.msra.mxu0 %v678
  %2487 = vmatprep.subr.mxu0 %v695
  %2488 = vmatpush1.msra.mxu0 %v694
  %2489 = vmatprep.subr.mxu0 %v711
  %2490 = vmatpush1.msra.mxu0 %v710
  %2491 = vmatprep.subr.mxu0 %v727
  %2492 = vmatpush1.msra.mxu0 %v726
  %2493 = vmatprep.subr.mxu0 %v743
  %2494 = vmatpush1.msra.mxu0 %v742
  %2495 = vmatprep.subr.mxu0 %v759
  %2496 = vmatpush1.msra.mxu0 %v758
  %2497 = vmatprep.subr.mxu0 %v775
  %2498 = vmatpush1.msra.mxu0 %v774
  %2499 = vmatprep.subr.mxu0 %v791
  %2500 = vmatpush1.msra.mxu0 %v790
  %2501 = vmatprep.subr.mxu0 %v807
  %2502 = vmatpush1.msra.mxu0 %v806
  %2503 = vmatprep.subr.mxu0 %v823
  %2504 = vmatpush1.msra.mxu0 %v822
  %2505 = vmatprep.subr.mxu0 %v839
  %2506 = vmatpush1.msra.mxu0 %v838
  %2507 = vmatprep.subr.mxu0 %v855
  %2508 = vmatpush1.msra.mxu0 %v854
  %2509 = vmatprep.subr.mxu0 %v871
  %2510 = vmatpush1.msra.mxu0 %v870
  %2511 = vmatprep.subr.mxu0 %v887
  %2512 = vmatpush1.msra.mxu0 %v886
  %2513 = vmatprep.subr.mxu0 %v903
  %2514 = vmatpush1.msra.mxu0 %v902
  %2515 = vmatprep.subr.mxu0 %v919
  %2516 = vmatpush1.msra.mxu0 %v918
  %2517 = vmatprep.subr.mxu0 %v935
  %2518 = vmatpush1.msra.mxu0 %v934
  %2519 = vmatprep.subr.mxu0 %v951
  %2520 = vmatpush1.msra.mxu0 %v950
  %2521 = vmatprep.subr.mxu0 %v967
  %2522 = vmatpush1.msra.mxu0 %v966
  %2523 = vmatprep.subr.mxu0 %v983
  %2524 = vmatpush1.msra.mxu0 %v982
  %2525 = vmatprep.subr.mxu0 %v999
  %2526 = vmatpush1.msra.mxu0 %v998
  %2527 = vmatprep.subr.mxu0 %v1015
  %2528 = vmatpush1.msra.mxu0 %v1014
  %2529 = vmatprep.subr.mxu0 %v1031
  %2530 = vmatpush1.msra.mxu0 %v1030
  %2531 = vmatprep.subr.mxu0 %v1047
  %2532 = vmatpush1.msra.mxu0 %v1046
  %2533 = vmatprep.mubr.f32.mxu0 %v23
  %2534 = vmatmul.mubr.f32.gmra.mrb[0].mxu0 %v22
  %v2535 = vpop.f32.mrb[0].mxu0
  %v2536 = vadd.f32 %v2459, %v2535
  %v2537 = vpop.f32.mrb[0].mxu0
  %v2538 = vadd.f32 %v2461, %v2537
  %2539 = vmatprep.mubr.f32.mxu0 %v31
  %2540 = vmatmul.mubr.f32.gmra.mrb[0].mxu0 %v30
  %v2541 = vpop.f32.mrb[0].mxu0
  %v2542 = vadd.f32 %v2465, %v2541
  %v2543 = vpop.f32.mrb[0].mxu0
  %v2544 = vadd.f32 %v2467, %v2543
  %2545 = vdwg.mxu0
  %2546 = vmatprep.subr.mxu0 %v1063
  %2547 = vmatpush1.msra.mxu0 %v1062
  %2548 = vmatprep.subr.mxu0 %v1079
  %2549 = vmatpush1.msra.mxu0 %v1078
  %2550 = vmatprep.subr.mxu0 %v1095
  %2551 = vmatpush1.msra.mxu0 %v1094
  %2552 = vmatprep.subr.mxu0 %v1111
  %2553 = vmatpush1.msra.mxu0 %v1110
  %2554 = vmatprep.subr.mxu0 %v1127
  %2555 = vmatpush1.msra.mxu0 %v1126
  %2556 = vmatprep.subr.mxu0 %v1143
  %2557 = vmatpush1.msra.mxu0 %v1142
  %2558 = vmatprep.subr.mxu0 %v1159
  %2559 = vmatpush1.msra.mxu0 %v1158
  %2560 = vmatprep.subr.mxu0 %v1175
  %2561 = vmatpush1.msra.mxu0 %v1174
  %2562 = vmatprep.subr.mxu0 %v1191
  %2563 = vmatpush1.msra.mxu0 %v1190
  %2564 = vmatprep.subr.mxu0 %v1207
  %2565 = vmatpush1.msra.mxu0 %v1206
  %2566 = vmatprep.subr.mxu0 %v1223
  %2567 = vmatpush1.msra.mxu0 %v1222
  %2568 = vmatprep.subr.mxu0 %v1239
  %2569 = vmatpush1.msra.mxu0 %v1238
  %2570 = vmatprep.subr.mxu0 %v1255
  %2571 = vmatpush1.msra.mxu0 %v1254
  %2572 = vmatprep.subr.mxu0 %v1271
  %2573 = vmatpush1.msra.mxu0 %v1270
  %2574 = vmatprep.subr.mxu0 %v1287
  %2575 = vmatpush1.msra.mxu0 %v1286
  %2576 = vmatprep.subr.mxu0 %v1303
  %2577 = vmatpush1.msra.mxu0 %v1302
  %2578 = vmatprep.subr.mxu0 %v1319
  %2579 = vmatpush1.msra.mxu0 %v1318
  %2580 = vmatprep.subr.mxu0 %v1335
  %2581 = vmatpush1.msra.mxu0 %v1334
  %2582 = vmatprep.subr.mxu0 %v1351
  %2583 = vmatpush1.msra.mxu0 %v1350
  %2584 = vmatprep.subr.mxu0 %v1367
  %2585 = vmatpush1.msra.mxu0 %v1366
  %2586 = vmatprep.subr.mxu0 %v1383
  %2587 = vmatpush1.msra.mxu0 %v1382
  %2588 = vmatprep.subr.mxu0 %v1399
  %2589 = vmatpush1.msra.mxu0 %v1398
  %2590 = vmatprep.subr.mxu0 %v1415
  %2591 = vmatpush1.msra.mxu0 %v1414
  %2592 = vmatprep.subr.mxu0 %v1431
  %2593 = vmatpush1.msra.mxu0 %v1430
  %2594 = vmatprep.subr.mxu0 %v1447
  %2595 = vmatpush1.msra.mxu0 %v1446
  %2596 = vmatprep.subr.mxu0 %v1463
  %2597 = vmatpush1.msra.mxu0 %v1462
  %2598 = vmatprep.subr.mxu0 %v1479
  %2599 = vmatpush1.msra.mxu0 %v1478
  %2600 = vmatprep.subr.mxu0 %v1495
  %2601 = vmatpush1.msra.mxu0 %v1494
  %2602 = vmatprep.subr.mxu0 %v1511
  %2603 = vmatpush1.msra.mxu0 %v1510
  %2604 = vmatprep.subr.mxu0 %v1527
  %2605 = vmatpush1.msra.mxu0 %v1526
  %2606 = vmatprep.subr.mxu0 %v1543
  %2607 = vmatpush1.msra.mxu0 %v1542
  %2608 = vmatprep.subr.mxu0 %v1559
  %2609 = vmatpush1.msra.mxu0 %v1558
  %2610 = vmatprep.mubr.f32.mxu0 %v25
  %2611 = vmatmul.mubr.f32.gmra.mrb[0].mxu0 %v24
  %v2612 = vpop.f32.mrb[0].mxu0
  %v2613 = vadd.f32 %v2536, %v2612
  %v2614 = vpop.f32.mrb[0].mxu0
  %v2615 = vadd.f32 %v2538, %v2614
  %2616 = vmatprep.mubr.f32.mxu0 %v33
  %2617 = vmatmul.mubr.f32.gmra.mrb[0].mxu0 %v32
  %v2618 = vpop.f32.mrb[0].mxu0
  %v2619 = vadd.f32 %v2542, %v2618
  %v2620 = vpop.f32.mrb[0].mxu0
  %v2621 = vadd.f32 %v2544, %v2620
  %2622 = vdwg.mxu0
  %2623 = vmatprep.subr.mxu0 %v1575
  %2624 = vmatpush1.msra.mxu0 %v1574
  %2625 = vmatprep.subr.mxu0 %v1591
  %2626 = vmatpush1.msra.mxu0 %v1590
  %2627 = vmatprep.subr.mxu0 %v1607
  %2628 = vmatpush1.msra.mxu0 %v1606
  %2629 = vmatprep.subr.mxu0 %v1623
  %2630 = vmatpush1.msra.mxu0 %v1622
  %2631 = vmatprep.subr.mxu0 %v1639
  %2632 = vmatpush1.msra.mxu0 %v1638
  %2633 = vmatprep.subr.mxu0 %v1655
  %2634 = vmatpush1.msra.mxu0 %v1654
  %2635 = vmatprep.subr.mxu0 %v1671
  %2636 = vmatpush1.msra.mxu0 %v1670
  %2637 = vmatprep.subr.mxu0 %v1687
  %2638 = vmatpush1.msra.mxu0 %v1686
  %2639 = vmatprep.subr.mxu0 %v1703
  %2640 = vmatpush1.msra.mxu0 %v1702
  %2641 = vmatprep.subr.mxu0 %v1719
  %2642 = vmatpush1.msra.mxu0 %v1718
  %2643 = vmatprep.subr.mxu0 %v1735
  %2644 = vmatpush1.msra.mxu0 %v1734
  %2645 = vmatprep.subr.mxu0 %v1751
  %2646 = vmatpush1.msra.mxu0 %v1750
  %2647 = vmatprep.subr.mxu0 %v1767
  %2648 = vmatpush1.msra.mxu0 %v1766
  %2649 = vmatprep.subr.mxu0 %v1783
  %2650 = vmatpush1.msra.mxu0 %v1782
  %2651 = vmatprep.subr.mxu0 %v1799
  %2652 = vmatpush1.msra.mxu0 %v1798
  %2653 = vmatprep.subr.mxu0 %v1815
  %2654 = vmatpush1.msra.mxu0 %v1814
  %2655 = vmatprep.subr.mxu0 %v1831
  %2656 = vmatpush1.msra.mxu0 %v1830
  %2657 = vmatprep.subr.mxu0 %v1847
  %2658 = vmatpush1.msra.mxu0 %v1846
  %2659 = vmatprep.subr.mxu0 %v1863
  %2660 = vmatpush1.msra.mxu0 %v1862
  %2661 = vmatprep.subr.mxu0 %v1879
  %2662 = vmatpush1.msra.mxu0 %v1878
  %2663 = vmatprep.subr.mxu0 %v1895
  %2664 = vmatpush1.msra.mxu0 %v1894
  %2665 = vmatprep.subr.mxu0 %v1911
  %2666 = vmatpush1.msra.mxu0 %v1910
  %2667 = vmatprep.subr.mxu0 %v1927
  %2668 = vmatpush1.msra.mxu0 %v1926
  %2669 = vmatprep.subr.mxu0 %v1943
  %2670 = vmatpush1.msra.mxu0 %v1942
  %2671 = vmatprep.subr.mxu0 %v1959
  %2672 = vmatpush1.msra.mxu0 %v1958
  %2673 = vmatprep.subr.mxu0 %v1975
  %2674 = vmatpush1.msra.mxu0 %v1974
  %2675 = vmatprep.subr.mxu0 %v1991
  %2676 = vmatpush1.msra.mxu0 %v1990
  %2677 = vmatprep.subr.mxu0 %v2007
  %2678 = vmatpush1.msra.mxu0 %v2006
  %2679 = vmatprep.subr.mxu0 %v2023
  %2680 = vmatpush1.msra.mxu0 %v2022
  %2681 = vmatprep.subr.mxu0 %v2039
  %2682 = vmatpush1.msra.mxu0 %v2038
  %2683 = vmatprep.subr.mxu0 %v2055
  %2684 = vmatpush1.msra.mxu0 %v2054
  %2685 = vmatprep.subr.mxu0 %v2071
  %2686 = vmatpush1.msra.mxu0 %v2070
  %2687 = vmatprep.mubr.f32.mxu0 %v27
  %2688 = vmatmul.mubr.f32.gmra.mrb[0].mxu0 %v26
  %v2689 = vpop.f32.mrb[0].mxu0
  %v2690 = vadd.f32 %v2613, %v2689
  %v2691 = vpop.f32.mrb[0].mxu0
  %v2692 = vadd.f32 %v2615, %v2691
  %2693 = vmatprep.mubr.f32.mxu0 %v35
  %2694 = vmatmul.mubr.f32.gmra.mrb[0].mxu0 %v34
  %v2695 = vpop.f32.mrb[0].mxu0
  %v2696 = vadd.f32 %v2619, %v2695
  %v2697 = vpop.f32.mrb[0].mxu0
  %v2698 = vadd.f32 %v2621, %v2697
  %2699 = vdwg.mxu0
  %2700 = vmatprep.subr.mxu0 %v41
  %2701 = vmatpush1.msra.mxu0 %v40
  %2702 = vmatprep.subr.mxu0 %v57
  %2703 = vmatpush1.msra.mxu0 %v56
  %2704 = vmatprep.subr.mxu0 %v73
  %2705 = vmatpush1.msra.mxu0 %v72
  %2706 = vmatprep.subr.mxu0 %v89
  %2707 = vmatpush1.msra.mxu0 %v88
  %2708 = vmatprep.subr.mxu0 %v105
  %2709 = vmatpush1.msra.mxu0 %v104
  %2710 = vmatprep.subr.mxu0 %v121
  %2711 = vmatpush1.msra.mxu0 %v120
  %2712 = vmatprep.subr.mxu0 %v137
  %2713 = vmatpush1.msra.mxu0 %v136
  %2714 = vmatprep.subr.mxu0 %v153
  %2715 = vmatpush1.msra.mxu0 %v152
  %2716 = vmatprep.subr.mxu0 %v169
  %2717 = vmatpush1.msra.mxu0 %v168
  %2718 = vmatprep.subr.mxu0 %v185
  %2719 = vmatpush1.msra.mxu0 %v184
  %2720 = vmatprep.subr.mxu0 %v201
  %2721 = vmatpush1.msra.mxu0 %v200
  %2722 = vmatprep.subr.mxu0 %v217
  %2723 = vmatpush1.msra.mxu0 %v216
  %2724 = vmatprep.subr.mxu0 %v233
  %2725 = vmatpush1.msra.mxu0 %v232
  %2726 = vmatprep.subr.mxu0 %v249
  %2727 = vmatpush1.msra.mxu0 %v248
  %2728 = vmatprep.subr.mxu0 %v265
  %2729 = vmatpush1.msra.mxu0 %v264
  %2730 = vmatprep.subr.mxu0 %v281
  %2731 = vmatpush1.msra.mxu0 %v280
  %2732 = vmatprep.subr.mxu0 %v297
  %2733 = vmatpush1.msra.mxu0 %v296
  %2734 = vmatprep.subr.mxu0 %v313
  %2735 = vmatpush1.msra.mxu0 %v312
  %2736 = vmatprep.subr.mxu0 %v329
  %2737 = vmatpush1.msra.mxu0 %v328
  %2738 = vmatprep.subr.mxu0 %v345
  %2739 = vmatpush1.msra.mxu0 %v344
  %2740 = vmatprep.subr.mxu0 %v361
  %2741 = vmatpush1.msra.mxu0 %v360
  %2742 = vmatprep.subr.mxu0 %v377
  %2743 = vmatpush1.msra.mxu0 %v376
  %2744 = vmatprep.subr.mxu0 %v393
  %2745 = vmatpush1.msra.mxu0 %v392
  %2746 = vmatprep.subr.mxu0 %v409
  %2747 = vmatpush1.msra.mxu0 %v408
  %2748 = vmatprep.subr.mxu0 %v425
  %2749 = vmatpush1.msra.mxu0 %v424
  %2750 = vmatprep.subr.mxu0 %v441
  %2751 = vmatpush1.msra.mxu0 %v440
  %2752 = vmatprep.subr.mxu0 %v457
  %2753 = vmatpush1.msra.mxu0 %v456
  %2754 = vmatprep.subr.mxu0 %v473
  %2755 = vmatpush1.msra.mxu0 %v472
  %2756 = vmatprep.subr.mxu0 %v489
  %2757 = vmatpush1.msra.mxu0 %v488
  %2758 = vmatprep.subr.mxu0 %v505
  %2759 = vmatpush1.msra.mxu0 %v504
  %2760 = vmatprep.subr.mxu0 %v521
  %2761 = vmatpush1.msra.mxu0 %v520
  %2762 = vmatprep.subr.mxu0 %v537
  %2763 = vmatpush1.msra.mxu0 %v536
  %2764 = vmatprep.mubr.f32.mxu0 %v21
  %2765 = vmatmul.mubr.f32.gmra.mrb[0].mxu0 %v20
  %v2766 = vpop.f32.mrb[0].mxu0
  %v2767 = vadd.f32 0.0, %v2766
  %v2768 = vpop.f32.mrb[0].mxu0
  %v2769 = vadd.f32 0.0, %v2768
  %2770 = vmatprep.mubr.f32.mxu0 %v29
  %2771 = vmatmul.mubr.f32.gmra.mrb[0].mxu0 %v28
  %v2772 = vpop.f32.mrb[0].mxu0
  %v2773 = vadd.f32 0.0, %v2772
  %v2774 = vpop.f32.mrb[0].mxu0
  %v2775 = vadd.f32 0.0, %v2774
  %2776 = vdwg.mxu0
  %2777 = vmatprep.subr.mxu0 %v553
  %2778 = vmatpush1.msra.mxu0 %v552
  %2779 = vmatprep.subr.mxu0 %v569
  %2780 = vmatpush1.msra.mxu0 %v568
  %2781 = vmatprep.subr.mxu0 %v585
  %2782 = vmatpush1.msra.mxu0 %v584
  %2783 = vmatprep.subr.mxu0 %v601
  %2784 = vmatpush1.msra.mxu0 %v600
  %2785 = vmatprep.subr.mxu0 %v617
  %2786 = vmatpush1.msra.mxu0 %v616
  %2787 = vmatprep.subr.mxu0 %v633
  %2788 = vmatpush1.msra.mxu0 %v632
  %2789 = vmatprep.subr.mxu0 %v649
  %2790 = vmatpush1.msra.mxu0 %v648
  %2791 = vmatprep.subr.mxu0 %v665
  %2792 = vmatpush1.msra.mxu0 %v664
  %2793 = vmatprep.subr.mxu0 %v681
  %2794 = vmatpush1.msra.mxu0 %v680
  %2795 = vmatprep.subr.mxu0 %v697
  %2796 = vmatpush1.msra.mxu0 %v696
  %2797 = vmatprep.subr.mxu0 %v713
  %2798 = vmatpush1.msra.mxu0 %v712
  %2799 = vmatprep.subr.mxu0 %v729
  %2800 = vmatpush1.msra.mxu0 %v728
  %2801 = vmatprep.subr.mxu0 %v745
  %2802 = vmatpush1.msra.mxu0 %v744
  %2803 = vmatprep.subr.mxu0 %v761
  %2804 = vmatpush1.msra.mxu0 %v760
  %2805 = vmatprep.subr.mxu0 %v777
  %2806 = vmatpush1.msra.mxu0 %v776
  %2807 = vmatprep.subr.mxu0 %v793
  %2808 = vmatpush1.msra.mxu0 %v792
  %2809 = vmatprep.subr.mxu0 %v809
  %2810 = vmatpush1.msra.mxu0 %v808
  %2811 = vmatprep.subr.mxu0 %v825
  %2812 = vmatpush1.msra.mxu0 %v824
  %2813 = vmatprep.subr.mxu0 %v841
  %2814 = vmatpush1.msra.mxu0 %v840
  %2815 = vmatprep.subr.mxu0 %v857
  %2816 = vmatpush1.msra.mxu0 %v856
  %2817 = vmatprep.subr.mxu0 %v873
  %2818 = vmatpush1.msra.mxu0 %v872
  %2819 = vmatprep.subr.mxu0 %v889
  %2820 = vmatpush1.msra.mxu0 %v888
  %2821 = vmatprep.subr.mxu0 %v905
  %2822 = vmatpush1.msra.mxu0 %v904
  %2823 = vmatprep.subr.mxu0 %v921
  %2824 = vmatpush1.msra.mxu0 %v920
  %2825 = vmatprep.subr.mxu0 %v937
  %2826 = vmatpush1.msra.mxu0 %v936
  %2827 = vmatprep.subr.mxu0 %v953
  %2828 = vmatpush1.msra.mxu0 %v952
  %2829 = vmatprep.subr.mxu0 %v969
  %2830 = vmatpush1.msra.mxu0 %v968
  %2831 = vmatprep.subr.mxu0 %v985
  %2832 = vmatpush1.msra.mxu0 %v984
  %2833 = vmatprep.subr.mxu0 %v1001
  %2834 = vmatpush1.msra.mxu0 %v1000
  %2835 = vmatprep.subr.mxu0 %v1017
  %2836 = vmatpush1.msra.mxu0 %v1016
  %2837 = vmatprep.subr.mxu0 %v1033
  %2838 = vmatpush1.msra.mxu0 %v1032
  %2839 = vmatprep.subr.mxu0 %v1049
  %2840 = vmatpush1.msra.mxu0 %v1048
  %2841 = vmatprep.mubr.f32.mxu0 %v23
  %2842 = vmatmul.mubr.f32.gmra.mrb[0].mxu0 %v22
  %v2843 = vpop.f32.mrb[0].mxu0
  %v2844 = vadd.f32 %v2767, %v2843
  %v2845 = vpop.f32.mrb[0].mxu0
  %v2846 = vadd.f32 %v2769, %v2845
  %2847 = vmatprep.mubr.f32.mxu0 %v31
  %2848 = vmatmul.mubr.f32.gmra.mrb[0].mxu0 %v30
  %v2849 = vpop.f32.mrb[0].mxu0
  %v2850 = vadd.f32 %v2773, %v2849
  %v2851 = vpop.f32.mrb[0].mxu0
  %v2852 = vadd.f32 %v2775, %v2851
  %2853 = vdwg.mxu0
  %2854 = vmatprep.subr.mxu0 %v1065
  %2855 = vmatpush1.msra.mxu0 %v1064
  %2856 = vmatprep.subr.mxu0 %v1081
  %2857 = vmatpush1.msra.mxu0 %v1080
  %2858 = vmatprep.subr.mxu0 %v1097
  %2859 = vmatpush1.msra.mxu0 %v1096
  %2860 = vmatprep.subr.mxu0 %v1113
  %2861 = vmatpush1.msra.mxu0 %v1112
  %2862 = vmatprep.subr.mxu0 %v1129
  %2863 = vmatpush1.msra.mxu0 %v1128
  %2864 = vmatprep.subr.mxu0 %v1145
  %2865 = vmatpush1.msra.mxu0 %v1144
  %2866 = vmatprep.subr.mxu0 %v1161
  %2867 = vmatpush1.msra.mxu0 %v1160
  %2868 = vmatprep.subr.mxu0 %v1177
  %2869 = vmatpush1.msra.mxu0 %v1176
  %2870 = vmatprep.subr.mxu0 %v1193
  %2871 = vmatpush1.msra.mxu0 %v1192
  %2872 = vmatprep.subr.mxu0 %v1209
  %2873 = vmatpush1.msra.mxu0 %v1208
  %2874 = vmatprep.subr.mxu0 %v1225
  %2875 = vmatpush1.msra.mxu0 %v1224
  %2876 = vmatprep.subr.mxu0 %v1241
  %2877 = vmatpush1.msra.mxu0 %v1240
  %2878 = vmatprep.subr.mxu0 %v1257
  %2879 = vmatpush1.msra.mxu0 %v1256
  %2880 = vmatprep.subr.mxu0 %v1273
  %2881 = vmatpush1.msra.mxu0 %v1272
  %2882 = vmatprep.subr.mxu0 %v1289
  %2883 = vmatpush1.msra.mxu0 %v1288
  %2884 = vmatprep.subr.mxu0 %v1305
  %2885 = vmatpush1.msra.mxu0 %v1304
  %2886 = vmatprep.subr.mxu0 %v1321
  %2887 = vmatpush1.msra.mxu0 %v1320
  %2888 = vmatprep.subr.mxu0 %v1337
  %2889 = vmatpush1.msra.mxu0 %v1336
  %2890 = vmatprep.subr.mxu0 %v1353
  %2891 = vmatpush1.msra.mxu0 %v1352
  %2892 = vmatprep.subr.mxu0 %v1369
  %2893 = vmatpush1.msra.mxu0 %v1368
  %2894 = vmatprep.subr.mxu0 %v1385
  %2895 = vmatpush1.msra.mxu0 %v1384
  %2896 = vmatprep.subr.mxu0 %v1401
  %2897 = vmatpush1.msra.mxu0 %v1400
  %2898 = vmatprep.subr.mxu0 %v1417
  %2899 = vmatpush1.msra.mxu0 %v1416
  %2900 = vmatprep.subr.mxu0 %v1433
  %2901 = vmatpush1.msra.mxu0 %v1432
  %2902 = vmatprep.subr.mxu0 %v1449
  %2903 = vmatpush1.msra.mxu0 %v1448
  %2904 = vmatprep.subr.mxu0 %v1465
  %2905 = vmatpush1.msra.mxu0 %v1464
  %2906 = vmatprep.subr.mxu0 %v1481
  %2907 = vmatpush1.msra.mxu0 %v1480
  %2908 = vmatprep.subr.mxu0 %v1497
  %2909 = vmatpush1.msra.mxu0 %v1496
  %2910 = vmatprep.subr.mxu0 %v1513
  %2911 = vmatpush1.msra.mxu0 %v1512
  %2912 = vmatprep.subr.mxu0 %v1529
  %2913 = vmatpush1.msra.mxu0 %v1528
  %2914 = vmatprep.subr.mxu0 %v1545
  %2915 = vmatpush1.msra.mxu0 %v1544
  %2916 = vmatprep.subr.mxu0 %v1561
  %2917 = vmatpush1.msra.mxu0 %v1560
  %2918 = vmatprep.mubr.f32.mxu0 %v25
  %2919 = vmatmul.mubr.f32.gmra.mrb[0].mxu0 %v24
  %v2920 = vpop.f32.mrb[0].mxu0
  %v2921 = vadd.f32 %v2844, %v2920
  %v2922 = vpop.f32.mrb[0].mxu0
  %v2923 = vadd.f32 %v2846, %v2922
  %2924 = vmatprep.mubr.f32.mxu0 %v33
  %2925 = vmatmul.mubr.f32.gmra.mrb[0].mxu0 %v32
  %v2926 = vpop.f32.mrb[0].mxu0
  %v2927 = vadd.f32 %v2850, %v2926
  %v2928 = vpop.f32.mrb[0].mxu0
  %v2929 = vadd.f32 %v2852, %v2928
  %2930 = vdwg.mxu0
  %2931 = vmatprep.subr.mxu0 %v1577
  %2932 = vmatpush1.msra.mxu0 %v1576
  %2933 = vmatprep.subr.mxu0 %v1593
  %2934 = vmatpush1.msra.mxu0 %v1592
  %2935 = vmatprep.subr.mxu0 %v1609
  %2936 = vmatpush1.msra.mxu0 %v1608
  %2937 = vmatprep.subr.mxu0 %v1625
  %2938 = vmatpush1.msra.mxu0 %v1624
  %2939 = vmatprep.subr.mxu0 %v1641
  %2940 = vmatpush1.msra.mxu0 %v1640
  %2941 = vmatprep.subr.mxu0 %v1657
  %2942 = vmatpush1.msra.mxu0 %v1656
  %2943 = vmatprep.subr.mxu0 %v1673
  %2944 = vmatpush1.msra.mxu0 %v1672
  %2945 = vmatprep.subr.mxu0 %v1689
  %2946 = vmatpush1.msra.mxu0 %v1688
  %2947 = vmatprep.subr.mxu0 %v1705
  %2948 = vmatpush1.msra.mxu0 %v1704
  %2949 = vmatprep.subr.mxu0 %v1721
  %2950 = vmatpush1.msra.mxu0 %v1720
  %2951 = vmatprep.subr.mxu0 %v1737
  %2952 = vmatpush1.msra.mxu0 %v1736
  %2953 = vmatprep.subr.mxu0 %v1753
  %2954 = vmatpush1.msra.mxu0 %v1752
  %2955 = vmatprep.subr.mxu0 %v1769
  %2956 = vmatpush1.msra.mxu0 %v1768
  %2957 = vmatprep.subr.mxu0 %v1785
  %2958 = vmatpush1.msra.mxu0 %v1784
  %2959 = vmatprep.subr.mxu0 %v1801
  %2960 = vmatpush1.msra.mxu0 %v1800
  %2961 = vmatprep.subr.mxu0 %v1817
  %2962 = vmatpush1.msra.mxu0 %v1816
  %2963 = vmatprep.subr.mxu0 %v1833
  %2964 = vmatpush1.msra.mxu0 %v1832
  %2965 = vmatprep.subr.mxu0 %v1849
  %2966 = vmatpush1.msra.mxu0 %v1848
  %2967 = vmatprep.subr.mxu0 %v1865
  %2968 = vmatpush1.msra.mxu0 %v1864
  %2969 = vmatprep.subr.mxu0 %v1881
  %2970 = vmatpush1.msra.mxu0 %v1880
  %2971 = vmatprep.subr.mxu0 %v1897
  %2972 = vmatpush1.msra.mxu0 %v1896
  %2973 = vmatprep.subr.mxu0 %v1913
  %2974 = vmatpush1.msra.mxu0 %v1912
  %2975 = vmatprep.subr.mxu0 %v1929
  %2976 = vmatpush1.msra.mxu0 %v1928
  %2977 = vmatprep.subr.mxu0 %v1945
  %2978 = vmatpush1.msra.mxu0 %v1944
  %2979 = vmatprep.subr.mxu0 %v1961
  %2980 = vmatpush1.msra.mxu0 %v1960
  %2981 = vmatprep.subr.mxu0 %v1977
  %2982 = vmatpush1.msra.mxu0 %v1976
  %2983 = vmatprep.subr.mxu0 %v1993
  %2984 = vmatpush1.msra.mxu0 %v1992
  %2985 = vmatprep.subr.mxu0 %v2009
  %2986 = vmatpush1.msra.mxu0 %v2008
  %2987 = vmatprep.subr.mxu0 %v2025
  %2988 = vmatpush1.msra.mxu0 %v2024
  %2989 = vmatprep.subr.mxu0 %v2041
  %2990 = vmatpush1.msra.mxu0 %v2040
  %2991 = vmatprep.subr.mxu0 %v2057
  %2992 = vmatpush1.msra.mxu0 %v2056
  %2993 = vmatprep.subr.mxu0 %v2073
  %2994 = vmatpush1.msra.mxu0 %v2072
  %2995 = vmatprep.mubr.f32.mxu0 %v27
  %2996 = vmatmul.mubr.f32.gmra.mrb[0].mxu0 %v26
  %v2997 = vpop.f32.mrb[0].mxu0
  %v2998 = vadd.f32 %v2921, %v2997
  %v2999 = vpop.f32.mrb[0].mxu0
  %v3000 = vadd.f32 %v2923, %v2999
  %3001 = vmatprep.mubr.f32.mxu0 %v35
  %3002 = vmatmul.mubr.f32.gmra.mrb[0].mxu0 %v34
  %v3003 = vpop.f32.mrb[0].mxu0
  %v3004 = vadd.f32 %v2927, %v3003
  %v3005 = vpop.f32.mrb[0].mxu0
  %v3006 = vadd.f32 %v2929, %v3005
  %3007 = vdwg.mxu0
  %3008 = vmatprep.subr.mxu0 %v43
  %3009 = vmatpush1.msra.mxu0 %v42
  %3010 = vmatprep.subr.mxu0 %v59
  %3011 = vmatpush1.msra.mxu0 %v58
  %3012 = vmatprep.subr.mxu0 %v75
  %3013 = vmatpush1.msra.mxu0 %v74
  %3014 = vmatprep.subr.mxu0 %v91
  %3015 = vmatpush1.msra.mxu0 %v90
  %3016 = vmatprep.subr.mxu0 %v107
  %3017 = vmatpush1.msra.mxu0 %v106
  %3018 = vmatprep.subr.mxu0 %v123
  %3019 = vmatpush1.msra.mxu0 %v122
  %3020 = vmatprep.subr.mxu0 %v139
  %3021 = vmatpush1.msra.mxu0 %v138
  %3022 = vmatprep.subr.mxu0 %v155
  %3023 = vmatpush1.msra.mxu0 %v154
  %3024 = vmatprep.subr.mxu0 %v171
  %3025 = vmatpush1.msra.mxu0 %v170
  %3026 = vmatprep.subr.mxu0 %v187
  %3027 = vmatpush1.msra.mxu0 %v186
  %3028 = vmatprep.subr.mxu0 %v203
  %3029 = vmatpush1.msra.mxu0 %v202
  %3030 = vmatprep.subr.mxu0 %v219
  %3031 = vmatpush1.msra.mxu0 %v218
  %3032 = vmatprep.subr.mxu0 %v235
  %3033 = vmatpush1.msra.mxu0 %v234
  %3034 = vmatprep.subr.mxu0 %v251
  %3035 = vmatpush1.msra.mxu0 %v250
  %3036 = vmatprep.subr.mxu0 %v267
  %3037 = vmatpush1.msra.mxu0 %v266
  %3038 = vmatprep.subr.mxu0 %v283
  %3039 = vmatpush1.msra.mxu0 %v282
  %3040 = vmatprep.subr.mxu0 %v299
  %3041 = vmatpush1.msra.mxu0 %v298
  %3042 = vmatprep.subr.mxu0 %v315
  %3043 = vmatpush1.msra.mxu0 %v314
  %3044 = vmatprep.subr.mxu0 %v331
  %3045 = vmatpush1.msra.mxu0 %v330
  %3046 = vmatprep.subr.mxu0 %v347
  %3047 = vmatpush1.msra.mxu0 %v346
  %3048 = vmatprep.subr.mxu0 %v363
  %3049 = vmatpush1.msra.mxu0 %v362
  %3050 = vmatprep.subr.mxu0 %v379
  %3051 = vmatpush1.msra.mxu0 %v378
  %3052 = vmatprep.subr.mxu0 %v395
  %3053 = vmatpush1.msra.mxu0 %v394
  %3054 = vmatprep.subr.mxu0 %v411
  %3055 = vmatpush1.msra.mxu0 %v410
  %3056 = vmatprep.subr.mxu0 %v427
  %3057 = vmatpush1.msra.mxu0 %v426
  %3058 = vmatprep.subr.mxu0 %v443
  %3059 = vmatpush1.msra.mxu0 %v442
  %3060 = vmatprep.subr.mxu0 %v459
  %3061 = vmatpush1.msra.mxu0 %v458
  %3062 = vmatprep.subr.mxu0 %v475
  %3063 = vmatpush1.msra.mxu0 %v474
  %3064 = vmatprep.subr.mxu0 %v491
  %3065 = vmatpush1.msra.mxu0 %v490
  %3066 = vmatprep.subr.mxu0 %v507
  %3067 = vmatpush1.msra.mxu0 %v506
  %3068 = vmatprep.subr.mxu0 %v523
  %3069 = vmatpush1.msra.mxu0 %v522
  %3070 = vmatprep.subr.mxu0 %v539
  %3071 = vmatpush1.msra.mxu0 %v538
  %3072 = vmatprep.mubr.f32.mxu0 %v21
  %3073 = vmatmul.mubr.f32.gmra.mrb[0].mxu0 %v20
  %v3074 = vpop.f32.mrb[0].mxu0
  %v3075 = vadd.f32 0.0, %v3074
  %v3076 = vpop.f32.mrb[0].mxu0
  %v3077 = vadd.f32 0.0, %v3076
  %3078 = vmatprep.mubr.f32.mxu0 %v29
  %3079 = vmatmul.mubr.f32.gmra.mrb[0].mxu0 %v28
  %v3080 = vpop.f32.mrb[0].mxu0
  %v3081 = vadd.f32 0.0, %v3080
  %v3082 = vpop.f32.mrb[0].mxu0
  %v3083 = vadd.f32 0.0, %v3082
  %3084 = vdwg.mxu0
  %3085 = vmatprep.subr.mxu0 %v555
  %3086 = vmatpush1.msra.mxu0 %v554
  %3087 = vmatprep.subr.mxu0 %v571
  %3088 = vmatpush1.msra.mxu0 %v570
  %3089 = vmatprep.subr.mxu0 %v587
  %3090 = vmatpush1.msra.mxu0 %v586
  %3091 = vmatprep.subr.mxu0 %v603
  %3092 = vmatpush1.msra.mxu0 %v602
  %3093 = vmatprep.subr.mxu0 %v619
  %3094 = vmatpush1.msra.mxu0 %v618
  %3095 = vmatprep.subr.mxu0 %v635
  %3096 = vmatpush1.msra.mxu0 %v634
  %3097 = vmatprep.subr.mxu0 %v651
  %3098 = vmatpush1.msra.mxu0 %v650
  %3099 = vmatprep.subr.mxu0 %v667
  %3100 = vmatpush1.msra.mxu0 %v666
  %3101 = vmatprep.subr.mxu0 %v683
  %3102 = vmatpush1.msra.mxu0 %v682
  %3103 = vmatprep.subr.mxu0 %v699
  %3104 = vmatpush1.msra.mxu0 %v698
  %3105 = vmatprep.subr.mxu0 %v715
  %3106 = vmatpush1.msra.mxu0 %v714
  %3107 = vmatprep.subr.mxu0 %v731
  %3108 = vmatpush1.msra.mxu0 %v730
  %3109 = vmatprep.subr.mxu0 %v747
  %3110 = vmatpush1.msra.mxu0 %v746
  %3111 = vmatprep.subr.mxu0 %v763
  %3112 = vmatpush1.msra.mxu0 %v762
  %3113 = vmatprep.subr.mxu0 %v779
  %3114 = vmatpush1.msra.mxu0 %v778
  %3115 = vmatprep.subr.mxu0 %v795
  %3116 = vmatpush1.msra.mxu0 %v794
  %3117 = vmatprep.subr.mxu0 %v811
  %3118 = vmatpush1.msra.mxu0 %v810
  %3119 = vmatprep.subr.mxu0 %v827
  %3120 = vmatpush1.msra.mxu0 %v826
  %3121 = vmatprep.subr.mxu0 %v843
  %3122 = vmatpush1.msra.mxu0 %v842
  %3123 = vmatprep.subr.mxu0 %v859
  %3124 = vmatpush1.msra.mxu0 %v858
  %3125 = vmatprep.subr.mxu0 %v875
  %3126 = vmatpush1.msra.mxu0 %v874
  %3127 = vmatprep.subr.mxu0 %v891
  %3128 = vmatpush1.msra.mxu0 %v890
  %3129 = vmatprep.subr.mxu0 %v907
  %3130 = vmatpush1.msra.mxu0 %v906
  %3131 = vmatprep.subr.mxu0 %v923
  %3132 = vmatpush1.msra.mxu0 %v922
  %3133 = vmatprep.subr.mxu0 %v939
  %3134 = vmatpush1.msra.mxu0 %v938
  %3135 = vmatprep.subr.mxu0 %v955
  %3136 = vmatpush1.msra.mxu0 %v954
  %3137 = vmatprep.subr.mxu0 %v971
  %3138 = vmatpush1.msra.mxu0 %v970
  %3139 = vmatprep.subr.mxu0 %v987
  %3140 = vmatpush1.msra.mxu0 %v986
  %3141 = vmatprep.subr.mxu0 %v1003
  %3142 = vmatpush1.msra.mxu0 %v1002
  %3143 = vmatprep.subr.mxu0 %v1019
  %3144 = vmatpush1.msra.mxu0 %v1018
  %3145 = vmatprep.subr.mxu0 %v1035
  %3146 = vmatpush1.msra.mxu0 %v1034
  %3147 = vmatprep.subr.mxu0 %v1051
  %3148 = vmatpush1.msra.mxu0 %v1050
  %3149 = vmatprep.mubr.f32.mxu0 %v23
  %3150 = vmatmul.mubr.f32.gmra.mrb[0].mxu0 %v22
  %v3151 = vpop.f32.mrb[0].mxu0
  %v3152 = vadd.f32 %v3075, %v3151
  %v3153 = vpop.f32.mrb[0].mxu0
  %v3154 = vadd.f32 %v3077, %v3153
  %3155 = vmatprep.mubr.f32.mxu0 %v31
  %3156 = vmatmul.mubr.f32.gmra.mrb[0].mxu0 %v30
  %v3157 = vpop.f32.mrb[0].mxu0
  %v3158 = vadd.f32 %v3081, %v3157
  %v3159 = vpop.f32.mrb[0].mxu0
  %v3160 = vadd.f32 %v3083, %v3159
  %3161 = vdwg.mxu0
  %3162 = vmatprep.subr.mxu0 %v1067
  %3163 = vmatpush1.msra.mxu0 %v1066
  %3164 = vmatprep.subr.mxu0 %v1083
  %3165 = vmatpush1.msra.mxu0 %v1082
  %3166 = vmatprep.subr.mxu0 %v1099
  %3167 = vmatpush1.msra.mxu0 %v1098
  %3168 = vmatprep.subr.mxu0 %v1115
  %3169 = vmatpush1.msra.mxu0 %v1114
  %3170 = vmatprep.subr.mxu0 %v1131
  %3171 = vmatpush1.msra.mxu0 %v1130
  %3172 = vmatprep.subr.mxu0 %v1147
  %3173 = vmatpush1.msra.mxu0 %v1146
  %3174 = vmatprep.subr.mxu0 %v1163
  %3175 = vmatpush1.msra.mxu0 %v1162
  %3176 = vmatprep.subr.mxu0 %v1179
  %3177 = vmatpush1.msra.mxu0 %v1178
  %3178 = vmatprep.subr.mxu0 %v1195
  %3179 = vmatpush1.msra.mxu0 %v1194
  %3180 = vmatprep.subr.mxu0 %v1211
  %3181 = vmatpush1.msra.mxu0 %v1210
  %3182 = vmatprep.subr.mxu0 %v1227
  %3183 = vmatpush1.msra.mxu0 %v1226
  %3184 = vmatprep.subr.mxu0 %v1243
  %3185 = vmatpush1.msra.mxu0 %v1242
  %3186 = vmatprep.subr.mxu0 %v1259
  %3187 = vmatpush1.msra.mxu0 %v1258
  %3188 = vmatprep.subr.mxu0 %v1275
  %3189 = vmatpush1.msra.mxu0 %v1274
  %3190 = vmatprep.subr.mxu0 %v1291
  %3191 = vmatpush1.msra.mxu0 %v1290
  %3192 = vmatprep.subr.mxu0 %v1307
  %3193 = vmatpush1.msra.mxu0 %v1306
  %3194 = vmatprep.subr.mxu0 %v1323
  %3195 = vmatpush1.msra.mxu0 %v1322
  %3196 = vmatprep.subr.mxu0 %v1339
  %3197 = vmatpush1.msra.mxu0 %v1338
  %3198 = vmatprep.subr.mxu0 %v1355
  %3199 = vmatpush1.msra.mxu0 %v1354
  %3200 = vmatprep.subr.mxu0 %v1371
  %3201 = vmatpush1.msra.mxu0 %v1370
  %3202 = vmatprep.subr.mxu0 %v1387
  %3203 = vmatpush1.msra.mxu0 %v1386
  %3204 = vmatprep.subr.mxu0 %v1403
  %3205 = vmatpush1.msra.mxu0 %v1402
  %3206 = vmatprep.subr.mxu0 %v1419
  %3207 = vmatpush1.msra.mxu0 %v1418
  %3208 = vmatprep.subr.mxu0 %v1435
  %3209 = vmatpush1.msra.mxu0 %v1434
  %3210 = vmatprep.subr.mxu0 %v1451
  %3211 = vmatpush1.msra.mxu0 %v1450
  %3212 = vmatprep.subr.mxu0 %v1467
  %3213 = vmatpush1.msra.mxu0 %v1466
  %3214 = vmatprep.subr.mxu0 %v1483
  %3215 = vmatpush1.msra.mxu0 %v1482
  %3216 = vmatprep.subr.mxu0 %v1499
  %3217 = vmatpush1.msra.mxu0 %v1498
  %3218 = vmatprep.subr.mxu0 %v1515
  %3219 = vmatpush1.msra.mxu0 %v1514
  %3220 = vmatprep.subr.mxu0 %v1531
  %3221 = vmatpush1.msra.mxu0 %v1530
  %3222 = vmatprep.subr.mxu0 %v1547
  %3223 = vmatpush1.msra.mxu0 %v1546
  %3224 = vmatprep.subr.mxu0 %v1563
  %3225 = vmatpush1.msra.mxu0 %v1562
  %3226 = vmatprep.mubr.f32.mxu0 %v25
  %3227 = vmatmul.mubr.f32.gmra.mrb[0].mxu0 %v24
  %v3228 = vpop.f32.mrb[0].mxu0
  %v3229 = vadd.f32 %v3152, %v3228
  %v3230 = vpop.f32.mrb[0].mxu0
  %v3231 = vadd.f32 %v3154, %v3230
  %3232 = vmatprep.mubr.f32.mxu0 %v33
  %3233 = vmatmul.mubr.f32.gmra.mrb[0].mxu0 %v32
  %v3234 = vpop.f32.mrb[0].mxu0
  %v3235 = vadd.f32 %v3158, %v3234
  %v3236 = vpop.f32.mrb[0].mxu0
  %v3237 = vadd.f32 %v3160, %v3236
  %3238 = vdwg.mxu0
  %3239 = vmatprep.subr.mxu0 %v1579
  %3240 = vmatpush1.msra.mxu0 %v1578
  %3241 = vmatprep.subr.mxu0 %v1595
  %3242 = vmatpush1.msra.mxu0 %v1594
  %3243 = vmatprep.subr.mxu0 %v1611
  %3244 = vmatpush1.msra.mxu0 %v1610
  %3245 = vmatprep.subr.mxu0 %v1627
  %3246 = vmatpush1.msra.mxu0 %v1626
  %3247 = vmatprep.subr.mxu0 %v1643
  %3248 = vmatpush1.msra.mxu0 %v1642
  %3249 = vmatprep.subr.mxu0 %v1659
  %3250 = vmatpush1.msra.mxu0 %v1658
  %3251 = vmatprep.subr.mxu0 %v1675
  %3252 = vmatpush1.msra.mxu0 %v1674
  %3253 = vmatprep.subr.mxu0 %v1691
  %3254 = vmatpush1.msra.mxu0 %v1690
  %3255 = vmatprep.subr.mxu0 %v1707
  %3256 = vmatpush1.msra.mxu0 %v1706
  %3257 = vmatprep.subr.mxu0 %v1723
  %3258 = vmatpush1.msra.mxu0 %v1722
  %3259 = vmatprep.subr.mxu0 %v1739
  %3260 = vmatpush1.msra.mxu0 %v1738
  %3261 = vmatprep.subr.mxu0 %v1755
  %3262 = vmatpush1.msra.mxu0 %v1754
  %3263 = vmatprep.subr.mxu0 %v1771
  %3264 = vmatpush1.msra.mxu0 %v1770
  %3265 = vmatprep.subr.mxu0 %v1787
  %3266 = vmatpush1.msra.mxu0 %v1786
  %3267 = vmatprep.subr.mxu0 %v1803
  %3268 = vmatpush1.msra.mxu0 %v1802
  %3269 = vmatprep.subr.mxu0 %v1819
  %3270 = vmatpush1.msra.mxu0 %v1818
  %3271 = vmatprep.subr.mxu0 %v1835
  %3272 = vmatpush1.msra.mxu0 %v1834
  %3273 = vmatprep.subr.mxu0 %v1851
  %3274 = vmatpush1.msra.mxu0 %v1850
  %3275 = vmatprep.subr.mxu0 %v1867
  %3276 = vmatpush1.msra.mxu0 %v1866
  %3277 = vmatprep.subr.mxu0 %v1883
  %3278 = vmatpush1.msra.mxu0 %v1882
  %3279 = vmatprep.subr.mxu0 %v1899
  %3280 = vmatpush1.msra.mxu0 %v1898
  %3281 = vmatprep.subr.mxu0 %v1915
  %3282 = vmatpush1.msra.mxu0 %v1914
  %3283 = vmatprep.subr.mxu0 %v1931
  %3284 = vmatpush1.msra.mxu0 %v1930
  %3285 = vmatprep.subr.mxu0 %v1947
  %3286 = vmatpush1.msra.mxu0 %v1946
  %3287 = vmatprep.subr.mxu0 %v1963
  %3288 = vmatpush1.msra.mxu0 %v1962
  %3289 = vmatprep.subr.mxu0 %v1979
  %3290 = vmatpush1.msra.mxu0 %v1978
  %3291 = vmatprep.subr.mxu0 %v1995
  %3292 = vmatpush1.msra.mxu0 %v1994
  %3293 = vmatprep.subr.mxu0 %v2011
  %3294 = vmatpush1.msra.mxu0 %v2010
  %3295 = vmatprep.subr.mxu0 %v2027
  %3296 = vmatpush1.msra.mxu0 %v2026
  %3297 = vmatprep.subr.mxu0 %v2043
  %3298 = vmatpush1.msra.mxu0 %v2042
  %3299 = vmatprep.subr.mxu0 %v2059
  %3300 = vmatpush1.msra.mxu0 %v2058
  %3301 = vmatprep.subr.mxu0 %v2075
  %3302 = vmatpush1.msra.mxu0 %v2074
  %3303 = vmatprep.mubr.f32.mxu0 %v27
  %3304 = vmatmul.mubr.f32.gmra.mrb[0].mxu0 %v26
  %v3305 = vpop.f32.mrb[0].mxu0
  %v3306 = vadd.f32 %v3229, %v3305
  %v3307 = vpop.f32.mrb[0].mxu0
  %v3308 = vadd.f32 %v3231, %v3307
  %3309 = vmatprep.mubr.f32.mxu0 %v35
  %3310 = vmatmul.mubr.f32.gmra.mrb[0].mxu0 %v34
  %v3311 = vpop.f32.mrb[0].mxu0
  %v3312 = vadd.f32 %v3235, %v3311
  %v3313 = vpop.f32.mrb[0].mxu0
  %v3314 = vadd.f32 %v3237, %v3313
  %3315 = vdwg.mxu0
  %3316 = vmatprep.subr.mxu0 %v45
  %3317 = vmatpush1.msra.mxu0 %v44
  %3318 = vmatprep.subr.mxu0 %v61
  %3319 = vmatpush1.msra.mxu0 %v60
  %3320 = vmatprep.subr.mxu0 %v77
  %3321 = vmatpush1.msra.mxu0 %v76
  %3322 = vmatprep.subr.mxu0 %v93
  %3323 = vmatpush1.msra.mxu0 %v92
  %3324 = vmatprep.subr.mxu0 %v109
  %3325 = vmatpush1.msra.mxu0 %v108
  %3326 = vmatprep.subr.mxu0 %v125
  %3327 = vmatpush1.msra.mxu0 %v124
  %3328 = vmatprep.subr.mxu0 %v141
  %3329 = vmatpush1.msra.mxu0 %v140
  %3330 = vmatprep.subr.mxu0 %v157
  %3331 = vmatpush1.msra.mxu0 %v156
  %3332 = vmatprep.subr.mxu0 %v173
  %3333 = vmatpush1.msra.mxu0 %v172
  %3334 = vmatprep.subr.mxu0 %v189
  %3335 = vmatpush1.msra.mxu0 %v188
  %3336 = vmatprep.subr.mxu0 %v205
  %3337 = vmatpush1.msra.mxu0 %v204
  %3338 = vmatprep.subr.mxu0 %v221
  %3339 = vmatpush1.msra.mxu0 %v220
  %3340 = vmatprep.subr.mxu0 %v237
  %3341 = vmatpush1.msra.mxu0 %v236
  %3342 = vmatprep.subr.mxu0 %v253
  %3343 = vmatpush1.msra.mxu0 %v252
  %3344 = vmatprep.subr.mxu0 %v269
  %3345 = vmatpush1.msra.mxu0 %v268
  %3346 = vmatprep.subr.mxu0 %v285
  %3347 = vmatpush1.msra.mxu0 %v284
  %3348 = vmatprep.subr.mxu0 %v301
  %3349 = vmatpush1.msra.mxu0 %v300
  %3350 = vmatprep.subr.mxu0 %v317
  %3351 = vmatpush1.msra.mxu0 %v316
  %3352 = vmatprep.subr.mxu0 %v333
  %3353 = vmatpush1.msra.mxu0 %v332
  %3354 = vmatprep.subr.mxu0 %v349
  %3355 = vmatpush1.msra.mxu0 %v348
  %3356 = vmatprep.subr.mxu0 %v365
  %3357 = vmatpush1.msra.mxu0 %v364
  %3358 = vmatprep.subr.mxu0 %v381
  %3359 = vmatpush1.msra.mxu0 %v380
  %3360 = vmatprep.subr.mxu0 %v397
  %3361 = vmatpush1.msra.mxu0 %v396
  %3362 = vmatprep.subr.mxu0 %v413
  %3363 = vmatpush1.msra.mxu0 %v412
  %3364 = vmatprep.subr.mxu0 %v429
  %3365 = vmatpush1.msra.mxu0 %v428
  %3366 = vmatprep.subr.mxu0 %v445
  %3367 = vmatpush1.msra.mxu0 %v444
  %3368 = vmatprep.subr.mxu0 %v461
  %3369 = vmatpush1.msra.mxu0 %v460
  %3370 = vmatprep.subr.mxu0 %v477
  %3371 = vmatpush1.msra.mxu0 %v476
  %3372 = vmatprep.subr.mxu0 %v493
  %3373 = vmatpush1.msra.mxu0 %v492
  %3374 = vmatprep.subr.mxu0 %v509
  %3375 = vmatpush1.msra.mxu0 %v508
  %3376 = vmatprep.subr.mxu0 %v525
  %3377 = vmatpush1.msra.mxu0 %v524
  %3378 = vmatprep.subr.mxu0 %v541
  %3379 = vmatpush1.msra.mxu0 %v540
  %3380 = vmatprep.mubr.f32.mxu0 %v21
  %3381 = vmatmul.mubr.f32.gmra.mrb[0].mxu0 %v20
  %v3382 = vpop.f32.mrb[0].mxu0
  %v3383 = vadd.f32 0.0, %v3382
  %v3384 = vpop.f32.mrb[0].mxu0
  %v3385 = vadd.f32 0.0, %v3384
  %3386 = vmatprep.mubr.f32.mxu0 %v29
  %3387 = vmatmul.mubr.f32.gmra.mrb[0].mxu0 %v28
  %v3388 = vpop.f32.mrb[0].mxu0
  %v3389 = vadd.f32 0.0, %v3388
  %v3390 = vpop.f32.mrb[0].mxu0
  %v3391 = vadd.f32 0.0, %v3390
  %3392 = vdwg.mxu0
  %3393 = vmatprep.subr.mxu0 %v557
  %3394 = vmatpush1.msra.mxu0 %v556
  %3395 = vmatprep.subr.mxu0 %v573
  %3396 = vmatpush1.msra.mxu0 %v572
  %3397 = vmatprep.subr.mxu0 %v589
  %3398 = vmatpush1.msra.mxu0 %v588
  %3399 = vmatprep.subr.mxu0 %v605
  %3400 = vmatpush1.msra.mxu0 %v604
  %3401 = vmatprep.subr.mxu0 %v621
  %3402 = vmatpush1.msra.mxu0 %v620
  %3403 = vmatprep.subr.mxu0 %v637
  %3404 = vmatpush1.msra.mxu0 %v636
  %3405 = vmatprep.subr.mxu0 %v653
  %3406 = vmatpush1.msra.mxu0 %v652
  %3407 = vmatprep.subr.mxu0 %v669
  %3408 = vmatpush1.msra.mxu0 %v668
  %3409 = vmatprep.subr.mxu0 %v685
  %3410 = vmatpush1.msra.mxu0 %v684
  %3411 = vmatprep.subr.mxu0 %v701
  %3412 = vmatpush1.msra.mxu0 %v700
  %3413 = vmatprep.subr.mxu0 %v717
  %3414 = vmatpush1.msra.mxu0 %v716
  %3415 = vmatprep.subr.mxu0 %v733
  %3416 = vmatpush1.msra.mxu0 %v732
  %3417 = vmatprep.subr.mxu0 %v749
  %3418 = vmatpush1.msra.mxu0 %v748
  %3419 = vmatprep.subr.mxu0 %v765
  %3420 = vmatpush1.msra.mxu0 %v764
  %3421 = vmatprep.subr.mxu0 %v781
  %3422 = vmatpush1.msra.mxu0 %v780
  %3423 = vmatprep.subr.mxu0 %v797
  %3424 = vmatpush1.msra.mxu0 %v796
  %3425 = vmatprep.subr.mxu0 %v813
  %3426 = vmatpush1.msra.mxu0 %v812
  %3427 = vmatprep.subr.mxu0 %v829
  %3428 = vmatpush1.msra.mxu0 %v828
  %3429 = vmatprep.subr.mxu0 %v845
  %3430 = vmatpush1.msra.mxu0 %v844
  %3431 = vmatprep.subr.mxu0 %v861
  %3432 = vmatpush1.msra.mxu0 %v860
  %3433 = vmatprep.subr.mxu0 %v877
  %3434 = vmatpush1.msra.mxu0 %v876
  %3435 = vmatprep.subr.mxu0 %v893
  %3436 = vmatpush1.msra.mxu0 %v892
  %3437 = vmatprep.subr.mxu0 %v909
  %3438 = vmatpush1.msra.mxu0 %v908
  %3439 = vmatprep.subr.mxu0 %v925
  %3440 = vmatpush1.msra.mxu0 %v924
  %3441 = vmatprep.subr.mxu0 %v941
  %3442 = vmatpush1.msra.mxu0 %v940
  %3443 = vmatprep.subr.mxu0 %v957
  %3444 = vmatpush1.msra.mxu0 %v956
  %3445 = vmatprep.subr.mxu0 %v973
  %3446 = vmatpush1.msra.mxu0 %v972
  %3447 = vmatprep.subr.mxu0 %v989
  %3448 = vmatpush1.msra.mxu0 %v988
  %3449 = vmatprep.subr.mxu0 %v1005
  %3450 = vmatpush1.msra.mxu0 %v1004
  %3451 = vmatprep.subr.mxu0 %v1021
  %3452 = vmatpush1.msra.mxu0 %v1020
  %3453 = vmatprep.subr.mxu0 %v1037
  %3454 = vmatpush1.msra.mxu0 %v1036
  %3455 = vmatprep.subr.mxu0 %v1053
  %3456 = vmatpush1.msra.mxu0 %v1052
  %3457 = vmatprep.mubr.f32.mxu0 %v23
  %3458 = vmatmul.mubr.f32.gmra.mrb[0].mxu0 %v22
  %v3459 = vpop.f32.mrb[0].mxu0
  %v3460 = vadd.f32 %v3383, %v3459
  %v3461 = vpop.f32.mrb[0].mxu0
  %v3462 = vadd.f32 %v3385, %v3461
  %3463 = vmatprep.mubr.f32.mxu0 %v31
  %3464 = vmatmul.mubr.f32.gmra.mrb[0].mxu0 %v30
  %v3465 = vpop.f32.mrb[0].mxu0
  %v3466 = vadd.f32 %v3389, %v3465
  %v3467 = vpop.f32.mrb[0].mxu0
  %v3468 = vadd.f32 %v3391, %v3467
  %3469 = vdwg.mxu0
  %3470 = vmatprep.subr.mxu0 %v1069
  %3471 = vmatpush1.msra.mxu0 %v1068
  %3472 = vmatprep.subr.mxu0 %v1085
  %3473 = vmatpush1.msra.mxu0 %v1084
  %3474 = vmatprep.subr.mxu0 %v1101
  %3475 = vmatpush1.msra.mxu0 %v1100
  %3476 = vmatprep.subr.mxu0 %v1117
  %3477 = vmatpush1.msra.mxu0 %v1116
  %3478 = vmatprep.subr.mxu0 %v1133
  %3479 = vmatpush1.msra.mxu0 %v1132
  %3480 = vmatprep.subr.mxu0 %v1149
  %3481 = vmatpush1.msra.mxu0 %v1148
  %3482 = vmatprep.subr.mxu0 %v1165
  %3483 = vmatpush1.msra.mxu0 %v1164
  %3484 = vmatprep.subr.mxu0 %v1181
  %3485 = vmatpush1.msra.mxu0 %v1180
  %3486 = vmatprep.subr.mxu0 %v1197
  %3487 = vmatpush1.msra.mxu0 %v1196
  %3488 = vmatprep.subr.mxu0 %v1213
  %3489 = vmatpush1.msra.mxu0 %v1212
  %3490 = vmatprep.subr.mxu0 %v1229
  %3491 = vmatpush1.msra.mxu0 %v1228
  %3492 = vmatprep.subr.mxu0 %v1245
  %3493 = vmatpush1.msra.mxu0 %v1244
  %3494 = vmatprep.subr.mxu0 %v1261
  %3495 = vmatpush1.msra.mxu0 %v1260
  %3496 = vmatprep.subr.mxu0 %v1277
  %3497 = vmatpush1.msra.mxu0 %v1276
  %3498 = vmatprep.subr.mxu0 %v1293
  %3499 = vmatpush1.msra.mxu0 %v1292
  %3500 = vmatprep.subr.mxu0 %v1309
  %3501 = vmatpush1.msra.mxu0 %v1308
  %3502 = vmatprep.subr.mxu0 %v1325
  %3503 = vmatpush1.msra.mxu0 %v1324
  %3504 = vmatprep.subr.mxu0 %v1341
  %3505 = vmatpush1.msra.mxu0 %v1340
  %3506 = vmatprep.subr.mxu0 %v1357
  %3507 = vmatpush1.msra.mxu0 %v1356
  %3508 = vmatprep.subr.mxu0 %v1373
  %3509 = vmatpush1.msra.mxu0 %v1372
  %3510 = vmatprep.subr.mxu0 %v1389
  %3511 = vmatpush1.msra.mxu0 %v1388
  %3512 = vmatprep.subr.mxu0 %v1405
  %3513 = vmatpush1.msra.mxu0 %v1404
  %3514 = vmatprep.subr.mxu0 %v1421
  %3515 = vmatpush1.msra.mxu0 %v1420
  %3516 = vmatprep.subr.mxu0 %v1437
  %3517 = vmatpush1.msra.mxu0 %v1436
  %3518 = vmatprep.subr.mxu0 %v1453
  %3519 = vmatpush1.msra.mxu0 %v1452
  %3520 = vmatprep.subr.mxu0 %v1469
  %3521 = vmatpush1.msra.mxu0 %v1468
  %3522 = vmatprep.subr.mxu0 %v1485
  %3523 = vmatpush1.msra.mxu0 %v1484
  %3524 = vmatprep.subr.mxu0 %v1501
  %3525 = vmatpush1.msra.mxu0 %v1500
  %3526 = vmatprep.subr.mxu0 %v1517
  %3527 = vmatpush1.msra.mxu0 %v1516
  %3528 = vmatprep.subr.mxu0 %v1533
  %3529 = vmatpush1.msra.mxu0 %v1532
  %3530 = vmatprep.subr.mxu0 %v1549
  %3531 = vmatpush1.msra.mxu0 %v1548
  %3532 = vmatprep.subr.mxu0 %v1565
  %3533 = vmatpush1.msra.mxu0 %v1564
  %3534 = vmatprep.mubr.f32.mxu0 %v25
  %3535 = vmatmul.mubr.f32.gmra.mrb[0].mxu0 %v24
  %v3536 = vpop.f32.mrb[0].mxu0
  %v3537 = vadd.f32 %v3460, %v3536
  %v3538 = vpop.f32.mrb[0].mxu0
  %v3539 = vadd.f32 %v3462, %v3538
  %3540 = vmatprep.mubr.f32.mxu0 %v33
  %3541 = vmatmul.mubr.f32.gmra.mrb[0].mxu0 %v32
  %v3542 = vpop.f32.mrb[0].mxu0
  %v3543 = vadd.f32 %v3466, %v3542
  %v3544 = vpop.f32.mrb[0].mxu0
  %v3545 = vadd.f32 %v3468, %v3544
  %3546 = vdwg.mxu0
  %3547 = vmatprep.subr.mxu0 %v1581
  %3548 = vmatpush1.msra.mxu0 %v1580
  %3549 = vmatprep.subr.mxu0 %v1597
  %3550 = vmatpush1.msra.mxu0 %v1596
  %3551 = vmatprep.subr.mxu0 %v1613
  %3552 = vmatpush1.msra.mxu0 %v1612
  %3553 = vmatprep.subr.mxu0 %v1629
  %3554 = vmatpush1.msra.mxu0 %v1628
  %3555 = vmatprep.subr.mxu0 %v1645
  %3556 = vmatpush1.msra.mxu0 %v1644
  %3557 = vmatprep.subr.mxu0 %v1661
  %3558 = vmatpush1.msra.mxu0 %v1660
  %3559 = vmatprep.subr.mxu0 %v1677
  %3560 = vmatpush1.msra.mxu0 %v1676
  %3561 = vmatprep.subr.mxu0 %v1693
  %3562 = vmatpush1.msra.mxu0 %v1692
  %3563 = vmatprep.subr.mxu0 %v1709
  %3564 = vmatpush1.msra.mxu0 %v1708
  %3565 = vmatprep.subr.mxu0 %v1725
  %3566 = vmatpush1.msra.mxu0 %v1724
  %3567 = vmatprep.subr.mxu0 %v1741
  %3568 = vmatpush1.msra.mxu0 %v1740
  %3569 = vmatprep.subr.mxu0 %v1757
  %3570 = vmatpush1.msra.mxu0 %v1756
  %3571 = vmatprep.subr.mxu0 %v1773
  %3572 = vmatpush1.msra.mxu0 %v1772
  %3573 = vmatprep.subr.mxu0 %v1789
  %3574 = vmatpush1.msra.mxu0 %v1788
  %3575 = vmatprep.subr.mxu0 %v1805
  %3576 = vmatpush1.msra.mxu0 %v1804
  %3577 = vmatprep.subr.mxu0 %v1821
  %3578 = vmatpush1.msra.mxu0 %v1820
  %3579 = vmatprep.subr.mxu0 %v1837
  %3580 = vmatpush1.msra.mxu0 %v1836
  %3581 = vmatprep.subr.mxu0 %v1853
  %3582 = vmatpush1.msra.mxu0 %v1852
  %3583 = vmatprep.subr.mxu0 %v1869
  %3584 = vmatpush1.msra.mxu0 %v1868
  %3585 = vmatprep.subr.mxu0 %v1885
  %3586 = vmatpush1.msra.mxu0 %v1884
  %3587 = vmatprep.subr.mxu0 %v1901
  %3588 = vmatpush1.msra.mxu0 %v1900
  %3589 = vmatprep.subr.mxu0 %v1917
  %3590 = vmatpush1.msra.mxu0 %v1916
  %3591 = vmatprep.subr.mxu0 %v1933
  %3592 = vmatpush1.msra.mxu0 %v1932
  %3593 = vmatprep.subr.mxu0 %v1949
  %3594 = vmatpush1.msra.mxu0 %v1948
  %3595 = vmatprep.subr.mxu0 %v1965
  %3596 = vmatpush1.msra.mxu0 %v1964
  %3597 = vmatprep.subr.mxu0 %v1981
  %3598 = vmatpush1.msra.mxu0 %v1980
  %3599 = vmatprep.subr.mxu0 %v1997
  %3600 = vmatpush1.msra.mxu0 %v1996
  %3601 = vmatprep.subr.mxu0 %v2013
  %3602 = vmatpush1.msra.mxu0 %v2012
  %3603 = vmatprep.subr.mxu0 %v2029
  %3604 = vmatpush1.msra.mxu0 %v2028
  %3605 = vmatprep.subr.mxu0 %v2045
  %3606 = vmatpush1.msra.mxu0 %v2044
  %3607 = vmatprep.subr.mxu0 %v2061
  %3608 = vmatpush1.msra.mxu0 %v2060
  %3609 = vmatprep.subr.mxu0 %v2077
  %3610 = vmatpush1.msra.mxu0 %v2076
  %3611 = vmatprep.mubr.f32.mxu0 %v27
  %3612 = vmatmul.mubr.f32.gmra.mrb[0].mxu0 %v26
  %v3613 = vpop.f32.mrb[0].mxu0
  %v3614 = vadd.f32 %v3537, %v3613
  %v3615 = vpop.f32.mrb[0].mxu0
  %v3616 = vadd.f32 %v3539, %v3615
  %3617 = vmatprep.mubr.f32.mxu0 %v35
  %3618 = vmatmul.mubr.f32.gmra.mrb[0].mxu0 %v34
  %v3619 = vpop.f32.mrb[0].mxu0
  %v3620 = vadd.f32 %v3543, %v3619
  %v3621 = vpop.f32.mrb[0].mxu0
  %v3622 = vadd.f32 %v3545, %v3621
  %3623 = vdwg.mxu0
  %3624 = vmatprep.subr.mxu0 %v47
  %3625 = vmatpush1.msra.mxu0 %v46
  %3626 = vmatprep.subr.mxu0 %v63
  %3627 = vmatpush1.msra.mxu0 %v62
  %3628 = vmatprep.subr.mxu0 %v79
  %3629 = vmatpush1.msra.mxu0 %v78
  %3630 = vmatprep.subr.mxu0 %v95
  %3631 = vmatpush1.msra.mxu0 %v94
  %3632 = vmatprep.subr.mxu0 %v111
  %3633 = vmatpush1.msra.mxu0 %v110
  %3634 = vmatprep.subr.mxu0 %v127
  %3635 = vmatpush1.msra.mxu0 %v126
  %3636 = vmatprep.subr.mxu0 %v143
  %3637 = vmatpush1.msra.mxu0 %v142
  %3638 = vmatprep.subr.mxu0 %v159
  %3639 = vmatpush1.msra.mxu0 %v158
  %3640 = vmatprep.subr.mxu0 %v175
  %3641 = vmatpush1.msra.mxu0 %v174
  %3642 = vmatprep.subr.mxu0 %v191
  %3643 = vmatpush1.msra.mxu0 %v190
  %3644 = vmatprep.subr.mxu0 %v207
  %3645 = vmatpush1.msra.mxu0 %v206
  %3646 = vmatprep.subr.mxu0 %v223
  %3647 = vmatpush1.msra.mxu0 %v222
  %3648 = vmatprep.subr.mxu0 %v239
  %3649 = vmatpush1.msra.mxu0 %v238
  %3650 = vmatprep.subr.mxu0 %v255
  %3651 = vmatpush1.msra.mxu0 %v254
  %3652 = vmatprep.subr.mxu0 %v271
  %3653 = vmatpush1.msra.mxu0 %v270
  %3654 = vmatprep.subr.mxu0 %v287
  %3655 = vmatpush1.msra.mxu0 %v286
  %3656 = vmatprep.subr.mxu0 %v303
  %3657 = vmatpush1.msra.mxu0 %v302
  %3658 = vmatprep.subr.mxu0 %v319
  %3659 = vmatpush1.msra.mxu0 %v318
  %3660 = vmatprep.subr.mxu0 %v335
  %3661 = vmatpush1.msra.mxu0 %v334
  %3662 = vmatprep.subr.mxu0 %v351
  %3663 = vmatpush1.msra.mxu0 %v350
  %3664 = vmatprep.subr.mxu0 %v367
  %3665 = vmatpush1.msra.mxu0 %v366
  %3666 = vmatprep.subr.mxu0 %v383
  %3667 = vmatpush1.msra.mxu0 %v382
  %3668 = vmatprep.subr.mxu0 %v399
  %3669 = vmatpush1.msra.mxu0 %v398
  %3670 = vmatprep.subr.mxu0 %v415
  %3671 = vmatpush1.msra.mxu0 %v414
  %3672 = vmatprep.subr.mxu0 %v431
  %3673 = vmatpush1.msra.mxu0 %v430
  %3674 = vmatprep.subr.mxu0 %v447
  %3675 = vmatpush1.msra.mxu0 %v446
  %3676 = vmatprep.subr.mxu0 %v463
  %3677 = vmatpush1.msra.mxu0 %v462
  %3678 = vmatprep.subr.mxu0 %v479
  %3679 = vmatpush1.msra.mxu0 %v478
  %3680 = vmatprep.subr.mxu0 %v495
  %3681 = vmatpush1.msra.mxu0 %v494
  %3682 = vmatprep.subr.mxu0 %v511
  %3683 = vmatpush1.msra.mxu0 %v510
  %3684 = vmatprep.subr.mxu0 %v527
  %3685 = vmatpush1.msra.mxu0 %v526
  %3686 = vmatprep.subr.mxu0 %v543
  %3687 = vmatpush1.msra.mxu0 %v542
  %3688 = vmatprep.mubr.f32.mxu0 %v21
  %3689 = vmatmul.mubr.f32.gmra.mrb[0].mxu0 %v20
  %v3690 = vpop.f32.mrb[0].mxu0
  %v3691 = vadd.f32 0.0, %v3690
  %v3692 = vpop.f32.mrb[0].mxu0
  %v3693 = vadd.f32 0.0, %v3692
  %3694 = vmatprep.mubr.f32.mxu0 %v29
  %3695 = vmatmul.mubr.f32.gmra.mrb[0].mxu0 %v28
  %v3696 = vpop.f32.mrb[0].mxu0
  %v3697 = vadd.f32 0.0, %v3696
  %v3698 = vpop.f32.mrb[0].mxu0
  %v3699 = vadd.f32 0.0, %v3698
  %3700 = vdwg.mxu0
  %3701 = vmatprep.subr.mxu0 %v559
  %3702 = vmatpush1.msra.mxu0 %v558
  %3703 = vmatprep.subr.mxu0 %v575
  %3704 = vmatpush1.msra.mxu0 %v574
  %3705 = vmatprep.subr.mxu0 %v591
  %3706 = vmatpush1.msra.mxu0 %v590
  %3707 = vmatprep.subr.mxu0 %v607
  %3708 = vmatpush1.msra.mxu0 %v606
  %3709 = vmatprep.subr.mxu0 %v623
  %3710 = vmatpush1.msra.mxu0 %v622
  %3711 = vmatprep.subr.mxu0 %v639
  %3712 = vmatpush1.msra.mxu0 %v638
  %3713 = vmatprep.subr.mxu0 %v655
  %3714 = vmatpush1.msra.mxu0 %v654
  %3715 = vmatprep.subr.mxu0 %v671
  %3716 = vmatpush1.msra.mxu0 %v670
  %3717 = vmatprep.subr.mxu0 %v687
  %3718 = vmatpush1.msra.mxu0 %v686
  %3719 = vmatprep.subr.mxu0 %v703
  %3720 = vmatpush1.msra.mxu0 %v702
  %3721 = vmatprep.subr.mxu0 %v719
  %3722 = vmatpush1.msra.mxu0 %v718
  %3723 = vmatprep.subr.mxu0 %v735
  %3724 = vmatpush1.msra.mxu0 %v734
  %3725 = vmatprep.subr.mxu0 %v751
  %3726 = vmatpush1.msra.mxu0 %v750
  %3727 = vmatprep.subr.mxu0 %v767
  %3728 = vmatpush1.msra.mxu0 %v766
  %3729 = vmatprep.subr.mxu0 %v783
  %3730 = vmatpush1.msra.mxu0 %v782
  %3731 = vmatprep.subr.mxu0 %v799
  %3732 = vmatpush1.msra.mxu0 %v798
  %3733 = vmatprep.subr.mxu0 %v815
  %3734 = vmatpush1.msra.mxu0 %v814
  %3735 = vmatprep.subr.mxu0 %v831
  %3736 = vmatpush1.msra.mxu0 %v830
  %3737 = vmatprep.subr.mxu0 %v847
  %3738 = vmatpush1.msra.mxu0 %v846
  %3739 = vmatprep.subr.mxu0 %v863
  %3740 = vmatpush1.msra.mxu0 %v862
  %3741 = vmatprep.subr.mxu0 %v879
  %3742 = vmatpush1.msra.mxu0 %v878
  %3743 = vmatprep.subr.mxu0 %v895
  %3744 = vmatpush1.msra.mxu0 %v894
  %3745 = vmatprep.subr.mxu0 %v911
  %3746 = vmatpush1.msra.mxu0 %v910
  %3747 = vmatprep.subr.mxu0 %v927
  %3748 = vmatpush1.msra.mxu0 %v926
  %3749 = vmatprep.subr.mxu0 %v943
  %3750 = vmatpush1.msra.mxu0 %v942
  %3751 = vmatprep.subr.mxu0 %v959
  %3752 = vmatpush1.msra.mxu0 %v958
  %3753 = vmatprep.subr.mxu0 %v975
  %3754 = vmatpush1.msra.mxu0 %v974
  %3755 = vmatprep.subr.mxu0 %v991
  %3756 = vmatpush1.msra.mxu0 %v990
  %3757 = vmatprep.subr.mxu0 %v1007
  %3758 = vmatpush1.msra.mxu0 %v1006
  %3759 = vmatprep.subr.mxu0 %v1023
  %3760 = vmatpush1.msra.mxu0 %v1022
  %3761 = vmatprep.subr.mxu0 %v1039
  %3762 = vmatpush1.msra.mxu0 %v1038
  %3763 = vmatprep.subr.mxu0 %v1055
  %3764 = vmatpush1.msra.mxu0 %v1054
  %3765 = vmatprep.mubr.f32.mxu0 %v23
  %3766 = vmatmul.mubr.f32.gmra.mrb[0].mxu0 %v22
  %v3767 = vpop.f32.mrb[0].mxu0
  %v3768 = vadd.f32 %v3691, %v3767
  %v3769 = vpop.f32.mrb[0].mxu0
  %v3770 = vadd.f32 %v3693, %v3769
  %3771 = vmatprep.mubr.f32.mxu0 %v31
  %3772 = vmatmul.mubr.f32.gmra.mrb[0].mxu0 %v30
  %v3773 = vpop.f32.mrb[0].mxu0
  %v3774 = vadd.f32 %v3697, %v3773
  %v3775 = vpop.f32.mrb[0].mxu0
  %v3776 = vadd.f32 %v3699, %v3775
  %3777 = vdwg.mxu0
  %3778 = vmatprep.subr.mxu0 %v1071
  %3779 = vmatpush1.msra.mxu0 %v1070
  %3780 = vmatprep.subr.mxu0 %v1087
  %3781 = vmatpush1.msra.mxu0 %v1086
  %3782 = vmatprep.subr.mxu0 %v1103
  %3783 = vmatpush1.msra.mxu0 %v1102
  %3784 = vmatprep.subr.mxu0 %v1119
  %3785 = vmatpush1.msra.mxu0 %v1118
  %3786 = vmatprep.subr.mxu0 %v1135
  %3787 = vmatpush1.msra.mxu0 %v1134
  %3788 = vmatprep.subr.mxu0 %v1151
  %3789 = vmatpush1.msra.mxu0 %v1150
  %3790 = vmatprep.subr.mxu0 %v1167
  %3791 = vmatpush1.msra.mxu0 %v1166
  %3792 = vmatprep.subr.mxu0 %v1183
  %3793 = vmatpush1.msra.mxu0 %v1182
  %3794 = vmatprep.subr.mxu0 %v1199
  %3795 = vmatpush1.msra.mxu0 %v1198
  %3796 = vmatprep.subr.mxu0 %v1215
  %3797 = vmatpush1.msra.mxu0 %v1214
  %3798 = vmatprep.subr.mxu0 %v1231
  %3799 = vmatpush1.msra.mxu0 %v1230
  %3800 = vmatprep.subr.mxu0 %v1247
  %3801 = vmatpush1.msra.mxu0 %v1246
  %3802 = vmatprep.subr.mxu0 %v1263
  %3803 = vmatpush1.msra.mxu0 %v1262
  %3804 = vmatprep.subr.mxu0 %v1279
  %3805 = vmatpush1.msra.mxu0 %v1278
  %3806 = vmatprep.subr.mxu0 %v1295
  %3807 = vmatpush1.msra.mxu0 %v1294
  %3808 = vmatprep.subr.mxu0 %v1311
  %3809 = vmatpush1.msra.mxu0 %v1310
  %3810 = vmatprep.subr.mxu0 %v1327
  %3811 = vmatpush1.msra.mxu0 %v1326
  %3812 = vmatprep.subr.mxu0 %v1343
  %3813 = vmatpush1.msra.mxu0 %v1342
  %3814 = vmatprep.subr.mxu0 %v1359
  %3815 = vmatpush1.msra.mxu0 %v1358
  %3816 = vmatprep.subr.mxu0 %v1375
  %3817 = vmatpush1.msra.mxu0 %v1374
  %3818 = vmatprep.subr.mxu0 %v1391
  %3819 = vmatpush1.msra.mxu0 %v1390
  %3820 = vmatprep.subr.mxu0 %v1407
  %3821 = vmatpush1.msra.mxu0 %v1406
  %3822 = vmatprep.subr.mxu0 %v1423
  %3823 = vmatpush1.msra.mxu0 %v1422
  %3824 = vmatprep.subr.mxu0 %v1439
  %3825 = vmatpush1.msra.mxu0 %v1438
  %3826 = vmatprep.subr.mxu0 %v1455
  %3827 = vmatpush1.msra.mxu0 %v1454
  %3828 = vmatprep.subr.mxu0 %v1471
  %3829 = vmatpush1.msra.mxu0 %v1470
  %3830 = vmatprep.subr.mxu0 %v1487
  %3831 = vmatpush1.msra.mxu0 %v1486
  %3832 = vmatprep.subr.mxu0 %v1503
  %3833 = vmatpush1.msra.mxu0 %v1502
  %3834 = vmatprep.subr.mxu0 %v1519
  %3835 = vmatpush1.msra.mxu0 %v1518
  %3836 = vmatprep.subr.mxu0 %v1535
  %3837 = vmatpush1.msra.mxu0 %v1534
  %3838 = vmatprep.subr.mxu0 %v1551
  %3839 = vmatpush1.msra.mxu0 %v1550
  %3840 = vmatprep.subr.mxu0 %v1567
  %3841 = vmatpush1.msra.mxu0 %v1566
  %3842 = vmatprep.mubr.f32.mxu0 %v25
  %3843 = vmatmul.mubr.f32.gmra.mrb[0].mxu0 %v24
  %v3844 = vpop.f32.mrb[0].mxu0
  %v3845 = vadd.f32 %v3768, %v3844
  %v3846 = vpop.f32.mrb[0].mxu0
  %v3847 = vadd.f32 %v3770, %v3846
  %3848 = vmatprep.mubr.f32.mxu0 %v33
  %3849 = vmatmul.mubr.f32.gmra.mrb[0].mxu0 %v32
  %v3850 = vpop.f32.mrb[0].mxu0
  %v3851 = vadd.f32 %v3774, %v3850
  %v3852 = vpop.f32.mrb[0].mxu0
  %v3853 = vadd.f32 %v3776, %v3852
  %3854 = vdwg.mxu0
  %3855 = vmatprep.subr.mxu0 %v1583
  %3856 = vmatpush1.msra.mxu0 %v1582
  %3857 = vmatprep.subr.mxu0 %v1599
  %3858 = vmatpush1.msra.mxu0 %v1598
  %3859 = vmatprep.subr.mxu0 %v1615
  %3860 = vmatpush1.msra.mxu0 %v1614
  %3861 = vmatprep.subr.mxu0 %v1631
  %3862 = vmatpush1.msra.mxu0 %v1630
  %3863 = vmatprep.subr.mxu0 %v1647
  %3864 = vmatpush1.msra.mxu0 %v1646
  %3865 = vmatprep.subr.mxu0 %v1663
  %3866 = vmatpush1.msra.mxu0 %v1662
  %3867 = vmatprep.subr.mxu0 %v1679
  %3868 = vmatpush1.msra.mxu0 %v1678
  %3869 = vmatprep.subr.mxu0 %v1695
  %3870 = vmatpush1.msra.mxu0 %v1694
  %3871 = vmatprep.subr.mxu0 %v1711
  %3872 = vmatpush1.msra.mxu0 %v1710
  %3873 = vmatprep.subr.mxu0 %v1727
  %3874 = vmatpush1.msra.mxu0 %v1726
  %3875 = vmatprep.subr.mxu0 %v1743
  %3876 = vmatpush1.msra.mxu0 %v1742
  %3877 = vmatprep.subr.mxu0 %v1759
  %3878 = vmatpush1.msra.mxu0 %v1758
  %3879 = vmatprep.subr.mxu0 %v1775
  %3880 = vmatpush1.msra.mxu0 %v1774
  %3881 = vmatprep.subr.mxu0 %v1791
  %3882 = vmatpush1.msra.mxu0 %v1790
  %3883 = vmatprep.subr.mxu0 %v1807
  %3884 = vmatpush1.msra.mxu0 %v1806
  %3885 = vmatprep.subr.mxu0 %v1823
  %3886 = vmatpush1.msra.mxu0 %v1822
  %3887 = vmatprep.subr.mxu0 %v1839
  %3888 = vmatpush1.msra.mxu0 %v1838
  %3889 = vmatprep.subr.mxu0 %v1855
  %3890 = vmatpush1.msra.mxu0 %v1854
  %3891 = vmatprep.subr.mxu0 %v1871
  %3892 = vmatpush1.msra.mxu0 %v1870
  %3893 = vmatprep.subr.mxu0 %v1887
  %3894 = vmatpush1.msra.mxu0 %v1886
  %3895 = vmatprep.subr.mxu0 %v1903
  %3896 = vmatpush1.msra.mxu0 %v1902
  %3897 = vmatprep.subr.mxu0 %v1919
  %3898 = vmatpush1.msra.mxu0 %v1918
  %3899 = vmatprep.subr.mxu0 %v1935
  %3900 = vmatpush1.msra.mxu0 %v1934
  %3901 = vmatprep.subr.mxu0 %v1951
  %3902 = vmatpush1.msra.mxu0 %v1950
  %3903 = vmatprep.subr.mxu0 %v1967
  %3904 = vmatpush1.msra.mxu0 %v1966
  %3905 = vmatprep.subr.mxu0 %v1983
  %3906 = vmatpush1.msra.mxu0 %v1982
  %3907 = vmatprep.subr.mxu0 %v1999
  %3908 = vmatpush1.msra.mxu0 %v1998
  %3909 = vmatprep.subr.mxu0 %v2015
  %3910 = vmatpush1.msra.mxu0 %v2014
  %3911 = vmatprep.subr.mxu0 %v2031
  %3912 = vmatpush1.msra.mxu0 %v2030
  %3913 = vmatprep.subr.mxu0 %v2047
  %3914 = vmatpush1.msra.mxu0 %v2046
  %3915 = vmatprep.subr.mxu0 %v2063
  %3916 = vmatpush1.msra.mxu0 %v2062
  %3917 = vmatprep.subr.mxu0 %v2079
  %3918 = vmatpush1.msra.mxu0 %v2078
  %3919 = vmatprep.mubr.f32.mxu0 %v27
  %3920 = vmatmul.mubr.f32.gmra.mrb[0].mxu0 %v26
  %v3921 = vpop.f32.mrb[0].mxu0
  %v3922 = vadd.f32 %v3845, %v3921
  %v3923 = vpop.f32.mrb[0].mxu0
  %v3924 = vadd.f32 %v3847, %v3923
  %3925 = vmatprep.mubr.f32.mxu0 %v35
  %3926 = vmatmul.mubr.f32.gmra.mrb[0].mxu0 %v34
  %v3927 = vpop.f32.mrb[0].mxu0
  %v3928 = vadd.f32 %v3851, %v3927
  %v3929 = vpop.f32.mrb[0].mxu0
  %v3930 = vadd.f32 %v3853, %v3929
  %3931 = vdwg.mxu0
  %3932 = vmatprep.subr.mxu0 %v49
  %3933 = vmatpush1.msra.mxu0 %v48
  %3934 = vmatprep.subr.mxu0 %v65
  %3935 = vmatpush1.msra.mxu0 %v64
  %3936 = vmatprep.subr.mxu0 %v81
  %3937 = vmatpush1.msra.mxu0 %v80
  %3938 = vmatprep.subr.mxu0 %v97
  %3939 = vmatpush1.msra.mxu0 %v96
  %3940 = vmatprep.subr.mxu0 %v113
  %3941 = vmatpush1.msra.mxu0 %v112
  %3942 = vmatprep.subr.mxu0 %v129
  %3943 = vmatpush1.msra.mxu0 %v128
  %3944 = vmatprep.subr.mxu0 %v145
  %3945 = vmatpush1.msra.mxu0 %v144
  %3946 = vmatprep.subr.mxu0 %v161
  %3947 = vmatpush1.msra.mxu0 %v160
  %3948 = vmatprep.subr.mxu0 %v177
  %3949 = vmatpush1.msra.mxu0 %v176
  %3950 = vmatprep.subr.mxu0 %v193
  %3951 = vmatpush1.msra.mxu0 %v192
  %3952 = vmatprep.subr.mxu0 %v209
  %3953 = vmatpush1.msra.mxu0 %v208
  %3954 = vmatprep.subr.mxu0 %v225
  %3955 = vmatpush1.msra.mxu0 %v224
  %3956 = vmatprep.subr.mxu0 %v241
  %3957 = vmatpush1.msra.mxu0 %v240
  %3958 = vmatprep.subr.mxu0 %v257
  %3959 = vmatpush1.msra.mxu0 %v256
  %3960 = vmatprep.subr.mxu0 %v273
  %3961 = vmatpush1.msra.mxu0 %v272
  %3962 = vmatprep.subr.mxu0 %v289
  %3963 = vmatpush1.msra.mxu0 %v288
  %3964 = vmatprep.subr.mxu0 %v305
  %3965 = vmatpush1.msra.mxu0 %v304
  %3966 = vmatprep.subr.mxu0 %v321
  %3967 = vmatpush1.msra.mxu0 %v320
  %3968 = vmatprep.subr.mxu0 %v337
  %3969 = vmatpush1.msra.mxu0 %v336
  %3970 = vmatprep.subr.mxu0 %v353
  %3971 = vmatpush1.msra.mxu0 %v352
  %3972 = vmatprep.subr.mxu0 %v369
  %3973 = vmatpush1.msra.mxu0 %v368
  %3974 = vmatprep.subr.mxu0 %v385
  %3975 = vmatpush1.msra.mxu0 %v384
  %3976 = vmatprep.subr.mxu0 %v401
  %3977 = vmatpush1.msra.mxu0 %v400
  %3978 = vmatprep.subr.mxu0 %v417
  %3979 = vmatpush1.msra.mxu0 %v416
  %3980 = vmatprep.subr.mxu0 %v433
  %3981 = vmatpush1.msra.mxu0 %v432
  %3982 = vmatprep.subr.mxu0 %v449
  %3983 = vmatpush1.msra.mxu0 %v448
  %3984 = vmatprep.subr.mxu0 %v465
  %3985 = vmatpush1.msra.mxu0 %v464
  %3986 = vmatprep.subr.mxu0 %v481
  %3987 = vmatpush1.msra.mxu0 %v480
  %3988 = vmatprep.subr.mxu0 %v497
  %3989 = vmatpush1.msra.mxu0 %v496
  %3990 = vmatprep.subr.mxu0 %v513
  %3991 = vmatpush1.msra.mxu0 %v512
  %3992 = vmatprep.subr.mxu0 %v529
  %3993 = vmatpush1.msra.mxu0 %v528
  %3994 = vmatprep.subr.mxu0 %v545
  %3995 = vmatpush1.msra.mxu0 %v544
  %3996 = vmatprep.mubr.f32.mxu0 %v21
  %3997 = vmatmul.mubr.f32.gmra.mrb[0].mxu0 %v20
  %v3998 = vpop.f32.mrb[0].mxu0
  %v3999 = vadd.f32 0.0, %v3998
  %v4000 = vpop.f32.mrb[0].mxu0
  %v4001 = vadd.f32 0.0, %v4000
  %4002 = vmatprep.mubr.f32.mxu0 %v29
  %4003 = vmatmul.mubr.f32.gmra.mrb[0].mxu0 %v28
  %v4004 = vpop.f32.mrb[0].mxu0
  %v4005 = vadd.f32 0.0, %v4004
  %v4006 = vpop.f32.mrb[0].mxu0
  %v4007 = vadd.f32 0.0, %v4006
  %4008 = vdwg.mxu0
  %4009 = vmatprep.subr.mxu0 %v561
  %4010 = vmatpush1.msra.mxu0 %v560
  %4011 = vmatprep.subr.mxu0 %v577
  %4012 = vmatpush1.msra.mxu0 %v576
  %4013 = vmatprep.subr.mxu0 %v593
  %4014 = vmatpush1.msra.mxu0 %v592
  %4015 = vmatprep.subr.mxu0 %v609
  %4016 = vmatpush1.msra.mxu0 %v608
  %4017 = vmatprep.subr.mxu0 %v625
  %4018 = vmatpush1.msra.mxu0 %v624
  %4019 = vmatprep.subr.mxu0 %v641
  %4020 = vmatpush1.msra.mxu0 %v640
  %4021 = vmatprep.subr.mxu0 %v657
  %4022 = vmatpush1.msra.mxu0 %v656
  %4023 = vmatprep.subr.mxu0 %v673
  %4024 = vmatpush1.msra.mxu0 %v672
  %4025 = vmatprep.subr.mxu0 %v689
  %4026 = vmatpush1.msra.mxu0 %v688
  %4027 = vmatprep.subr.mxu0 %v705
  %4028 = vmatpush1.msra.mxu0 %v704
  %4029 = vmatprep.subr.mxu0 %v721
  %4030 = vmatpush1.msra.mxu0 %v720
  %4031 = vmatprep.subr.mxu0 %v737
  %4032 = vmatpush1.msra.mxu0 %v736
  %4033 = vmatprep.subr.mxu0 %v753
  %4034 = vmatpush1.msra.mxu0 %v752
  %4035 = vmatprep.subr.mxu0 %v769
  %4036 = vmatpush1.msra.mxu0 %v768
  %4037 = vmatprep.subr.mxu0 %v785
  %4038 = vmatpush1.msra.mxu0 %v784
  %4039 = vmatprep.subr.mxu0 %v801
  %4040 = vmatpush1.msra.mxu0 %v800
  %4041 = vmatprep.subr.mxu0 %v817
  %4042 = vmatpush1.msra.mxu0 %v816
  %4043 = vmatprep.subr.mxu0 %v833
  %4044 = vmatpush1.msra.mxu0 %v832
  %4045 = vmatprep.subr.mxu0 %v849
  %4046 = vmatpush1.msra.mxu0 %v848
  %4047 = vmatprep.subr.mxu0 %v865
  %4048 = vmatpush1.msra.mxu0 %v864
  %4049 = vmatprep.subr.mxu0 %v881
  %4050 = vmatpush1.msra.mxu0 %v880
  %4051 = vmatprep.subr.mxu0 %v897
  %4052 = vmatpush1.msra.mxu0 %v896
  %4053 = vmatprep.subr.mxu0 %v913
  %4054 = vmatpush1.msra.mxu0 %v912
  %4055 = vmatprep.subr.mxu0 %v929
  %4056 = vmatpush1.msra.mxu0 %v928
  %4057 = vmatprep.subr.mxu0 %v945
  %4058 = vmatpush1.msra.mxu0 %v944
  %4059 = vmatprep.subr.mxu0 %v961
  %4060 = vmatpush1.msra.mxu0 %v960
  %4061 = vmatprep.subr.mxu0 %v977
  %4062 = vmatpush1.msra.mxu0 %v976
  %4063 = vmatprep.subr.mxu0 %v993
  %4064 = vmatpush1.msra.mxu0 %v992
  %4065 = vmatprep.subr.mxu0 %v1009
  %4066 = vmatpush1.msra.mxu0 %v1008
  %4067 = vmatprep.subr.mxu0 %v1025
  %4068 = vmatpush1.msra.mxu0 %v1024
  %4069 = vmatprep.subr.mxu0 %v1041
  %4070 = vmatpush1.msra.mxu0 %v1040
  %4071 = vmatprep.subr.mxu0 %v1057
  %4072 = vmatpush1.msra.mxu0 %v1056
  %4073 = vmatprep.mubr.f32.mxu0 %v23
  %4074 = vmatmul.mubr.f32.gmra.mrb[0].mxu0 %v22
  %v4075 = vpop.f32.mrb[0].mxu0
  %v4076 = vadd.f32 %v3999, %v4075
  %v4077 = vpop.f32.mrb[0].mxu0
  %v4078 = vadd.f32 %v4001, %v4077
  %4079 = vmatprep.mubr.f32.mxu0 %v31
  %4080 = vmatmul.mubr.f32.gmra.mrb[0].mxu0 %v30
  %v4081 = vpop.f32.mrb[0].mxu0
  %v4082 = vadd.f32 %v4005, %v4081
  %v4083 = vpop.f32.mrb[0].mxu0
  %v4084 = vadd.f32 %v4007, %v4083
  %4085 = vdwg.mxu0
  %4086 = vmatprep.subr.mxu0 %v1073
  %4087 = vmatpush1.msra.mxu0 %v1072
  %4088 = vmatprep.subr.mxu0 %v1089
  %4089 = vmatpush1.msra.mxu0 %v1088
  %4090 = vmatprep.subr.mxu0 %v1105
  %4091 = vmatpush1.msra.mxu0 %v1104
  %4092 = vmatprep.subr.mxu0 %v1121
  %4093 = vmatpush1.msra.mxu0 %v1120
  %4094 = vmatprep.subr.mxu0 %v1137
  %4095 = vmatpush1.msra.mxu0 %v1136
  %4096 = vmatprep.subr.mxu0 %v1153
  %4097 = vmatpush1.msra.mxu0 %v1152
  %4098 = vmatprep.subr.mxu0 %v1169
  %4099 = vmatpush1.msra.mxu0 %v1168
  %4100 = vmatprep.subr.mxu0 %v1185
  %4101 = vmatpush1.msra.mxu0 %v1184
  %4102 = vmatprep.subr.mxu0 %v1201
  %4103 = vmatpush1.msra.mxu0 %v1200
  %4104 = vmatprep.subr.mxu0 %v1217
  %4105 = vmatpush1.msra.mxu0 %v1216
  %4106 = vmatprep.subr.mxu0 %v1233
  %4107 = vmatpush1.msra.mxu0 %v1232
  %4108 = vmatprep.subr.mxu0 %v1249
  %4109 = vmatpush1.msra.mxu0 %v1248
  %4110 = vmatprep.subr.mxu0 %v1265
  %4111 = vmatpush1.msra.mxu0 %v1264
  %4112 = vmatprep.subr.mxu0 %v1281
  %4113 = vmatpush1.msra.mxu0 %v1280
  %4114 = vmatprep.subr.mxu0 %v1297
  %4115 = vmatpush1.msra.mxu0 %v1296
  %4116 = vmatprep.subr.mxu0 %v1313
  %4117 = vmatpush1.msra.mxu0 %v1312
  %4118 = vmatprep.subr.mxu0 %v1329
  %4119 = vmatpush1.msra.mxu0 %v1328
  %4120 = vmatprep.subr.mxu0 %v1345
  %4121 = vmatpush1.msra.mxu0 %v1344
  %4122 = vmatprep.subr.mxu0 %v1361
  %4123 = vmatpush1.msra.mxu0 %v1360
  %4124 = vmatprep.subr.mxu0 %v1377
  %4125 = vmatpush1.msra.mxu0 %v1376
  %4126 = vmatprep.subr.mxu0 %v1393
  %4127 = vmatpush1.msra.mxu0 %v1392
  %4128 = vmatprep.subr.mxu0 %v1409
  %4129 = vmatpush1.msra.mxu0 %v1408
  %4130 = vmatprep.subr.mxu0 %v1425
  %4131 = vmatpush1.msra.mxu0 %v1424
  %4132 = vmatprep.subr.mxu0 %v1441
  %4133 = vmatpush1.msra.mxu0 %v1440
  %4134 = vmatprep.subr.mxu0 %v1457
  %4135 = vmatpush1.msra.mxu0 %v1456
  %4136 = vmatprep.subr.mxu0 %v1473
  %4137 = vmatpush1.msra.mxu0 %v1472
  %4138 = vmatprep.subr.mxu0 %v1489
  %4139 = vmatpush1.msra.mxu0 %v1488
  %4140 = vmatprep.subr.mxu0 %v1505
  %4141 = vmatpush1.msra.mxu0 %v1504
  %4142 = vmatprep.subr.mxu0 %v1521
  %4143 = vmatpush1.msra.mxu0 %v1520
  %4144 = vmatprep.subr.mxu0 %v1537
  %4145 = vmatpush1.msra.mxu0 %v1536
  %4146 = vmatprep.subr.mxu0 %v1553
  %4147 = vmatpush1.msra.mxu0 %v1552
  %4148 = vmatprep.subr.mxu0 %v1569
  %4149 = vmatpush1.msra.mxu0 %v1568
  %4150 = vmatprep.mubr.f32.mxu0 %v25
  %4151 = vmatmul.mubr.f32.gmra.mrb[0].mxu0 %v24
  %v4152 = vpop.f32.mrb[0].mxu0
  %v4153 = vadd.f32 %v4076, %v4152
  %v4154 = vpop.f32.mrb[0].mxu0
  %v4155 = vadd.f32 %v4078, %v4154
  %4156 = vmatprep.mubr.f32.mxu0 %v33
  %4157 = vmatmul.mubr.f32.gmra.mrb[0].mxu0 %v32
  %v4158 = vpop.f32.mrb[0].mxu0
  %v4159 = vadd.f32 %v4082, %v4158
  %v4160 = vpop.f32.mrb[0].mxu0
  %v4161 = vadd.f32 %v4084, %v4160
  %4162 = vdwg.mxu0
  %4163 = vmatprep.subr.mxu0 %v1585
  %4164 = vmatpush1.msra.mxu0 %v1584
  %4165 = vmatprep.subr.mxu0 %v1601
  %4166 = vmatpush1.msra.mxu0 %v1600
  %4167 = vmatprep.subr.mxu0 %v1617
  %4168 = vmatpush1.msra.mxu0 %v1616
  %4169 = vmatprep.subr.mxu0 %v1633
  %4170 = vmatpush1.msra.mxu0 %v1632
  %4171 = vmatprep.subr.mxu0 %v1649
  %4172 = vmatpush1.msra.mxu0 %v1648
  %4173 = vmatprep.subr.mxu0 %v1665
  %4174 = vmatpush1.msra.mxu0 %v1664
  %4175 = vmatprep.subr.mxu0 %v1681
  %4176 = vmatpush1.msra.mxu0 %v1680
  %4177 = vmatprep.subr.mxu0 %v1697
  %4178 = vmatpush1.msra.mxu0 %v1696
  %4179 = vmatprep.subr.mxu0 %v1713
  %4180 = vmatpush1.msra.mxu0 %v1712
  %4181 = vmatprep.subr.mxu0 %v1729
  %4182 = vmatpush1.msra.mxu0 %v1728
  %4183 = vmatprep.subr.mxu0 %v1745
  %4184 = vmatpush1.msra.mxu0 %v1744
  %4185 = vmatprep.subr.mxu0 %v1761
  %4186 = vmatpush1.msra.mxu0 %v1760
  %4187 = vmatprep.subr.mxu0 %v1777
  %4188 = vmatpush1.msra.mxu0 %v1776
  %4189 = vmatprep.subr.mxu0 %v1793
  %4190 = vmatpush1.msra.mxu0 %v1792
  %4191 = vmatprep.subr.mxu0 %v1809
  %4192 = vmatpush1.msra.mxu0 %v1808
  %4193 = vmatprep.subr.mxu0 %v1825
  %4194 = vmatpush1.msra.mxu0 %v1824
  %4195 = vmatprep.subr.mxu0 %v1841
  %4196 = vmatpush1.msra.mxu0 %v1840
  %4197 = vmatprep.subr.mxu0 %v1857
  %4198 = vmatpush1.msra.mxu0 %v1856
  %4199 = vmatprep.subr.mxu0 %v1873
  %4200 = vmatpush1.msra.mxu0 %v1872
  %4201 = vmatprep.subr.mxu0 %v1889
  %4202 = vmatpush1.msra.mxu0 %v1888
  %4203 = vmatprep.subr.mxu0 %v1905
  %4204 = vmatpush1.msra.mxu0 %v1904
  %4205 = vmatprep.subr.mxu0 %v1921
  %4206 = vmatpush1.msra.mxu0 %v1920
  %4207 = vmatprep.subr.mxu0 %v1937
  %4208 = vmatpush1.msra.mxu0 %v1936
  %4209 = vmatprep.subr.mxu0 %v1953
  %4210 = vmatpush1.msra.mxu0 %v1952
  %4211 = vmatprep.subr.mxu0 %v1969
  %4212 = vmatpush1.msra.mxu0 %v1968
  %4213 = vmatprep.subr.mxu0 %v1985
  %4214 = vmatpush1.msra.mxu0 %v1984
  %4215 = vmatprep.subr.mxu0 %v2001
  %4216 = vmatpush1.msra.mxu0 %v2000
  %4217 = vmatprep.subr.mxu0 %v2017
  %4218 = vmatpush1.msra.mxu0 %v2016
  %4219 = vmatprep.subr.mxu0 %v2033
  %4220 = vmatpush1.msra.mxu0 %v2032
  %4221 = vmatprep.subr.mxu0 %v2049
  %4222 = vmatpush1.msra.mxu0 %v2048
  %4223 = vmatprep.subr.mxu0 %v2065
  %4224 = vmatpush1.msra.mxu0 %v2064
  %4225 = vmatprep.subr.mxu0 %v2081
  %4226 = vmatpush1.msra.mxu0 %v2080
  %4227 = vmatprep.mubr.f32.mxu0 %v27
  %4228 = vmatmul.mubr.f32.gmra.mrb[0].mxu0 %v26
  %v4229 = vpop.f32.mrb[0].mxu0
  %v4230 = vadd.f32 %v4153, %v4229
  %v4231 = vpop.f32.mrb[0].mxu0
  %v4232 = vadd.f32 %v4155, %v4231
  %4233 = vmatprep.mubr.f32.mxu0 %v35
  %4234 = vmatmul.mubr.f32.gmra.mrb[0].mxu0 %v34
  %v4235 = vpop.f32.mrb[0].mxu0
  %v4236 = vadd.f32 %v4159, %v4235
  %v4237 = vpop.f32.mrb[0].mxu0
  %v4238 = vadd.f32 %v4161, %v4237
  %4239 = vdwg.mxu0
  %4240 = vmatprep.subr.mxu0 %v51
  %4241 = vmatpush1.msra.mxu0 %v50
  %4242 = vmatprep.subr.mxu0 %v67
  %4243 = vmatpush1.msra.mxu0 %v66
  %4244 = vmatprep.subr.mxu0 %v83
  %4245 = vmatpush1.msra.mxu0 %v82
  %4246 = vmatprep.subr.mxu0 %v99
  %4247 = vmatpush1.msra.mxu0 %v98
  %4248 = vmatprep.subr.mxu0 %v115
  %4249 = vmatpush1.msra.mxu0 %v114
  %4250 = vmatprep.subr.mxu0 %v131
  %4251 = vmatpush1.msra.mxu0 %v130
  %4252 = vmatprep.subr.mxu0 %v147
  %4253 = vmatpush1.msra.mxu0 %v146
  %4254 = vmatprep.subr.mxu0 %v163
  %4255 = vmatpush1.msra.mxu0 %v162
  %4256 = vmatprep.subr.mxu0 %v179
  %4257 = vmatpush1.msra.mxu0 %v178
  %4258 = vmatprep.subr.mxu0 %v195
  %4259 = vmatpush1.msra.mxu0 %v194
  %4260 = vmatprep.subr.mxu0 %v211
  %4261 = vmatpush1.msra.mxu0 %v210
  %4262 = vmatprep.subr.mxu0 %v227
  %4263 = vmatpush1.msra.mxu0 %v226
  %4264 = vmatprep.subr.mxu0 %v243
  %4265 = vmatpush1.msra.mxu0 %v242
  %4266 = vmatprep.subr.mxu0 %v259
  %4267 = vmatpush1.msra.mxu0 %v258
  %4268 = vmatprep.subr.mxu0 %v275
  %4269 = vmatpush1.msra.mxu0 %v274
  %4270 = vmatprep.subr.mxu0 %v291
  %4271 = vmatpush1.msra.mxu0 %v290
  %4272 = vmatprep.subr.mxu0 %v307
  %4273 = vmatpush1.msra.mxu0 %v306
  %4274 = vmatprep.subr.mxu0 %v323
  %4275 = vmatpush1.msra.mxu0 %v322
  %4276 = vmatprep.subr.mxu0 %v339
  %4277 = vmatpush1.msra.mxu0 %v338
  %4278 = vmatprep.subr.mxu0 %v355
  %4279 = vmatpush1.msra.mxu0 %v354
  %4280 = vmatprep.subr.mxu0 %v371
  %4281 = vmatpush1.msra.mxu0 %v370
  %4282 = vmatprep.subr.mxu0 %v387
  %4283 = vmatpush1.msra.mxu0 %v386
  %4284 = vmatprep.subr.mxu0 %v403
  %4285 = vmatpush1.msra.mxu0 %v402
  %4286 = vmatprep.subr.mxu0 %v419
  %4287 = vmatpush1.msra.mxu0 %v418
  %4288 = vmatprep.subr.mxu0 %v435
  %4289 = vmatpush1.msra.mxu0 %v434
  %4290 = vmatprep.subr.mxu0 %v451
  %4291 = vmatpush1.msra.mxu0 %v450
  %4292 = vmatprep.subr.mxu0 %v467
  %4293 = vmatpush1.msra.mxu0 %v466
  %4294 = vmatprep.subr.mxu0 %v483
  %4295 = vmatpush1.msra.mxu0 %v482
  %4296 = vmatprep.subr.mxu0 %v499
  %4297 = vmatpush1.msra.mxu0 %v498
  %4298 = vmatprep.subr.mxu0 %v515
  %4299 = vmatpush1.msra.mxu0 %v514
  %4300 = vmatprep.subr.mxu0 %v531
  %4301 = vmatpush1.msra.mxu0 %v530
  %4302 = vmatprep.subr.mxu0 %v547
  %4303 = vmatpush1.msra.mxu0 %v546
  %4304 = vmatprep.mubr.f32.mxu0 %v21
  %4305 = vmatmul.mubr.f32.gmra.mrb[0].mxu0 %v20
  %v4306 = vpop.f32.mrb[0].mxu0
  %v4307 = vadd.f32 0.0, %v4306
  %v4308 = vpop.f32.mrb[0].mxu0
  %v4309 = vadd.f32 0.0, %v4308
  %4310 = vmatprep.mubr.f32.mxu0 %v29
  %4311 = vmatmul.mubr.f32.gmra.mrb[0].mxu0 %v28
  %v4312 = vpop.f32.mrb[0].mxu0
  %v4313 = vadd.f32 0.0, %v4312
  %v4314 = vpop.f32.mrb[0].mxu0
  %v4315 = vadd.f32 0.0, %v4314
  %4316 = vdwg.mxu0
  %4317 = vmatprep.subr.mxu0 %v563
  %4318 = vmatpush1.msra.mxu0 %v562
  %4319 = vmatprep.subr.mxu0 %v579
  %4320 = vmatpush1.msra.mxu0 %v578
  %4321 = vmatprep.subr.mxu0 %v595
  %4322 = vmatpush1.msra.mxu0 %v594
  %4323 = vmatprep.subr.mxu0 %v611
  %4324 = vmatpush1.msra.mxu0 %v610
  %4325 = vmatprep.subr.mxu0 %v627
  %4326 = vmatpush1.msra.mxu0 %v626
  %4327 = vmatprep.subr.mxu0 %v643
  %4328 = vmatpush1.msra.mxu0 %v642
  %4329 = vmatprep.subr.mxu0 %v659
  %4330 = vmatpush1.msra.mxu0 %v658
  %4331 = vmatprep.subr.mxu0 %v675
  %4332 = vmatpush1.msra.mxu0 %v674
  %4333 = vmatprep.subr.mxu0 %v691
  %4334 = vmatpush1.msra.mxu0 %v690
  %4335 = vmatprep.subr.mxu0 %v707
  %4336 = vmatpush1.msra.mxu0 %v706
  %4337 = vmatprep.subr.mxu0 %v723
  %4338 = vmatpush1.msra.mxu0 %v722
  %4339 = vmatprep.subr.mxu0 %v739
  %4340 = vmatpush1.msra.mxu0 %v738
  %4341 = vmatprep.subr.mxu0 %v755
  %4342 = vmatpush1.msra.mxu0 %v754
  %4343 = vmatprep.subr.mxu0 %v771
  %4344 = vmatpush1.msra.mxu0 %v770
  %4345 = vmatprep.subr.mxu0 %v787
  %4346 = vmatpush1.msra.mxu0 %v786
  %4347 = vmatprep.subr.mxu0 %v803
  %4348 = vmatpush1.msra.mxu0 %v802
  %4349 = vmatprep.subr.mxu0 %v819
  %4350 = vmatpush1.msra.mxu0 %v818
  %4351 = vmatprep.subr.mxu0 %v835
  %4352 = vmatpush1.msra.mxu0 %v834
  %4353 = vmatprep.subr.mxu0 %v851
  %4354 = vmatpush1.msra.mxu0 %v850
  %4355 = vmatprep.subr.mxu0 %v867
  %4356 = vmatpush1.msra.mxu0 %v866
  %4357 = vmatprep.subr.mxu0 %v883
  %4358 = vmatpush1.msra.mxu0 %v882
  %4359 = vmatprep.subr.mxu0 %v899
  %4360 = vmatpush1.msra.mxu0 %v898
  %4361 = vmatprep.subr.mxu0 %v915
  %4362 = vmatpush1.msra.mxu0 %v914
  %4363 = vmatprep.subr.mxu0 %v931
  %4364 = vmatpush1.msra.mxu0 %v930
  %4365 = vmatprep.subr.mxu0 %v947
  %4366 = vmatpush1.msra.mxu0 %v946
  %4367 = vmatprep.subr.mxu0 %v963
  %4368 = vmatpush1.msra.mxu0 %v962
  %4369 = vmatprep.subr.mxu0 %v979
  %4370 = vmatpush1.msra.mxu0 %v978
  %4371 = vmatprep.subr.mxu0 %v995
  %4372 = vmatpush1.msra.mxu0 %v994
  %4373 = vmatprep.subr.mxu0 %v1011
  %4374 = vmatpush1.msra.mxu0 %v1010
  %4375 = vmatprep.subr.mxu0 %v1027
  %4376 = vmatpush1.msra.mxu0 %v1026
  %4377 = vmatprep.subr.mxu0 %v1043
  %4378 = vmatpush1.msra.mxu0 %v1042
  %4379 = vmatprep.subr.mxu0 %v1059
  %4380 = vmatpush1.msra.mxu0 %v1058
  %4381 = vmatprep.mubr.f32.mxu0 %v23
  %4382 = vmatmul.mubr.f32.gmra.mrb[0].mxu0 %v22
  %v4383 = vpop.f32.mrb[0].mxu0
  %v4384 = vadd.f32 %v4307, %v4383
  %v4385 = vpop.f32.mrb[0].mxu0
  %v4386 = vadd.f32 %v4309, %v4385
  %4387 = vmatprep.mubr.f32.mxu0 %v31
  %4388 = vmatmul.mubr.f32.gmra.mrb[0].mxu0 %v30
  %v4389 = vpop.f32.mrb[0].mxu0
  %v4390 = vadd.f32 %v4313, %v4389
  %v4391 = vpop.f32.mrb[0].mxu0
  %v4392 = vadd.f32 %v4315, %v4391
  %4393 = vdwg.mxu0
  %4394 = vmatprep.subr.mxu0 %v1075
  %4395 = vmatpush1.msra.mxu0 %v1074
  %4396 = vmatprep.subr.mxu0 %v1091
  %4397 = vmatpush1.msra.mxu0 %v1090
  %4398 = vmatprep.subr.mxu0 %v1107
  %4399 = vmatpush1.msra.mxu0 %v1106
  %4400 = vmatprep.subr.mxu0 %v1123
  %4401 = vmatpush1.msra.mxu0 %v1122
  %4402 = vmatprep.subr.mxu0 %v1139
  %4403 = vmatpush1.msra.mxu0 %v1138
  %4404 = vmatprep.subr.mxu0 %v1155
  %4405 = vmatpush1.msra.mxu0 %v1154
  %4406 = vmatprep.subr.mxu0 %v1171
  %4407 = vmatpush1.msra.mxu0 %v1170
  %4408 = vmatprep.subr.mxu0 %v1187
  %4409 = vmatpush1.msra.mxu0 %v1186
  %4410 = vmatprep.subr.mxu0 %v1203
  %4411 = vmatpush1.msra.mxu0 %v1202
  %4412 = vmatprep.subr.mxu0 %v1219
  %4413 = vmatpush1.msra.mxu0 %v1218
  %4414 = vmatprep.subr.mxu0 %v1235
  %4415 = vmatpush1.msra.mxu0 %v1234
  %4416 = vmatprep.subr.mxu0 %v1251
  %4417 = vmatpush1.msra.mxu0 %v1250
  %4418 = vmatprep.subr.mxu0 %v1267
  %4419 = vmatpush1.msra.mxu0 %v1266
  %4420 = vmatprep.subr.mxu0 %v1283
  %4421 = vmatpush1.msra.mxu0 %v1282
  %4422 = vmatprep.subr.mxu0 %v1299
  %4423 = vmatpush1.msra.mxu0 %v1298
  %4424 = vmatprep.subr.mxu0 %v1315
  %4425 = vmatpush1.msra.mxu0 %v1314
  %4426 = vmatprep.subr.mxu0 %v1331
  %4427 = vmatpush1.msra.mxu0 %v1330
  %4428 = vmatprep.subr.mxu0 %v1347
  %4429 = vmatpush1.msra.mxu0 %v1346
  %4430 = vmatprep.subr.mxu0 %v1363
  %4431 = vmatpush1.msra.mxu0 %v1362
  %4432 = vmatprep.subr.mxu0 %v1379
  %4433 = vmatpush1.msra.mxu0 %v1378
  %4434 = vmatprep.subr.mxu0 %v1395
  %4435 = vmatpush1.msra.mxu0 %v1394
  %4436 = vmatprep.subr.mxu0 %v1411
  %4437 = vmatpush1.msra.mxu0 %v1410
  %4438 = vmatprep.subr.mxu0 %v1427
  %4439 = vmatpush1.msra.mxu0 %v1426
  %4440 = vmatprep.subr.mxu0 %v1443
  %4441 = vmatpush1.msra.mxu0 %v1442
  %4442 = vmatprep.subr.mxu0 %v1459
  %4443 = vmatpush1.msra.mxu0 %v1458
  %4444 = vmatprep.subr.mxu0 %v1475
  %4445 = vmatpush1.msra.mxu0 %v1474
  %4446 = vmatprep.subr.mxu0 %v1491
  %4447 = vmatpush1.msra.mxu0 %v1490
  %4448 = vmatprep.subr.mxu0 %v1507
  %4449 = vmatpush1.msra.mxu0 %v1506
  %4450 = vmatprep.subr.mxu0 %v1523
  %4451 = vmatpush1.msra.mxu0 %v1522
  %4452 = vmatprep.subr.mxu0 %v1539
  %4453 = vmatpush1.msra.mxu0 %v1538
  %4454 = vmatprep.subr.mxu0 %v1555
  %4455 = vmatpush1.msra.mxu0 %v1554
  %4456 = vmatprep.subr.mxu0 %v1571
  %4457 = vmatpush1.msra.mxu0 %v1570
  %4458 = vmatprep.mubr.f32.mxu0 %v25
  %4459 = vmatmul.mubr.f32.gmra.mrb[0].mxu0 %v24
  %v4460 = vpop.f32.mrb[0].mxu0
  %v4461 = vadd.f32 %v4384, %v4460
  %v4462 = vpop.f32.mrb[0].mxu0
  %v4463 = vadd.f32 %v4386, %v4462
  %4464 = vmatprep.mubr.f32.mxu0 %v33
  %4465 = vmatmul.mubr.f32.gmra.mrb[0].mxu0 %v32
  %v4466 = vpop.f32.mrb[0].mxu0
  %v4467 = vadd.f32 %v4390, %v4466
  %v4468 = vpop.f32.mrb[0].mxu0
  %v4469 = vadd.f32 %v4392, %v4468
  %4470 = vdwg.mxu0
  %4471 = vmatprep.subr.mxu0 %v1587
  %4472 = vmatpush1.msra.mxu0 %v1586
  %4473 = vmatprep.subr.mxu0 %v1603
  %4474 = vmatpush1.msra.mxu0 %v1602
  %4475 = vmatprep.subr.mxu0 %v1619
  %4476 = vmatpush1.msra.mxu0 %v1618
  %4477 = vmatprep.subr.mxu0 %v1635
  %4478 = vmatpush1.msra.mxu0 %v1634
  %4479 = vmatprep.subr.mxu0 %v1651
  %4480 = vmatpush1.msra.mxu0 %v1650
  %4481 = vmatprep.subr.mxu0 %v1667
  %4482 = vmatpush1.msra.mxu0 %v1666
  %4483 = vmatprep.subr.mxu0 %v1683
  %4484 = vmatpush1.msra.mxu0 %v1682
  %4485 = vmatprep.subr.mxu0 %v1699
  %4486 = vmatpush1.msra.mxu0 %v1698
  %4487 = vmatprep.subr.mxu0 %v1715
  %4488 = vmatpush1.msra.mxu0 %v1714
  %4489 = vmatprep.subr.mxu0 %v1731
  %4490 = vmatpush1.msra.mxu0 %v1730
  %4491 = vmatprep.subr.mxu0 %v1747
  %4492 = vmatpush1.msra.mxu0 %v1746
  %4493 = vmatprep.subr.mxu0 %v1763
  %4494 = vmatpush1.msra.mxu0 %v1762
  %4495 = vmatprep.subr.mxu0 %v1779
  %4496 = vmatpush1.msra.mxu0 %v1778
  %4497 = vmatprep.subr.mxu0 %v1795
  %4498 = vmatpush1.msra.mxu0 %v1794
  %4499 = vmatprep.subr.mxu0 %v1811
  %4500 = vmatpush1.msra.mxu0 %v1810
  %4501 = vmatprep.subr.mxu0 %v1827
  %4502 = vmatpush1.msra.mxu0 %v1826
  %4503 = vmatprep.subr.mxu0 %v1843
  %4504 = vmatpush1.msra.mxu0 %v1842
  %4505 = vmatprep.subr.mxu0 %v1859
  %4506 = vmatpush1.msra.mxu0 %v1858
  %4507 = vmatprep.subr.mxu0 %v1875
  %4508 = vmatpush1.msra.mxu0 %v1874
  %4509 = vmatprep.subr.mxu0 %v1891
  %4510 = vmatpush1.msra.mxu0 %v1890
  %4511 = vmatprep.subr.mxu0 %v1907
  %4512 = vmatpush1.msra.mxu0 %v1906
  %4513 = vmatprep.subr.mxu0 %v1923
  %4514 = vmatpush1.msra.mxu0 %v1922
  %4515 = vmatprep.subr.mxu0 %v1939
  %4516 = vmatpush1.msra.mxu0 %v1938
  %4517 = vmatprep.subr.mxu0 %v1955
  %4518 = vmatpush1.msra.mxu0 %v1954
  %4519 = vmatprep.subr.mxu0 %v1971
  %4520 = vmatpush1.msra.mxu0 %v1970
  %4521 = vmatprep.subr.mxu0 %v1987
  %4522 = vmatpush1.msra.mxu0 %v1986
  %4523 = vmatprep.subr.mxu0 %v2003
  %4524 = vmatpush1.msra.mxu0 %v2002
  %4525 = vmatprep.subr.mxu0 %v2019
  %4526 = vmatpush1.msra.mxu0 %v2018
  %4527 = vmatprep.subr.mxu0 %v2035
  %4528 = vmatpush1.msra.mxu0 %v2034
  %4529 = vmatprep.subr.mxu0 %v2051
  %4530 = vmatpush1.msra.mxu0 %v2050
  %4531 = vmatprep.subr.mxu0 %v2067
  %4532 = vmatpush1.msra.mxu0 %v2066
  %4533 = vmatprep.subr.mxu0 %v2083
  %4534 = vmatpush1.msra.mxu0 %v2082
  %4535 = vmatprep.mubr.f32.mxu0 %v27
  %4536 = vmatmul.mubr.f32.gmra.mrb[0].mxu0 %v26
  %v4537 = vpop.f32.mrb[0].mxu0
  %v4538 = vadd.f32 %v4461, %v4537
  %v4539 = vpop.f32.mrb[0].mxu0
  %v4540 = vadd.f32 %v4463, %v4539
  %4541 = vmatprep.mubr.f32.mxu0 %v35
  %4542 = vmatmul.mubr.f32.gmra.mrb[0].mxu0 %v34
  %v4543 = vpop.f32.mrb[0].mxu0
  %v4544 = vadd.f32 %v4467, %v4543
  %v4545 = vpop.f32.mrb[0].mxu0
  %v4546 = vadd.f32 %v4469, %v4545
  %4547 = vdwg.mxu0
  %v4548 = vmax.f32 %v2382, %v2998
  %v4549 = vmax.f32 %v2384, %v3000
  %v4550 = vmax.f32 %v2690, %v3306
  %v4551 = vmax.f32 %v2692, %v3308
  %v4552 = vmax.f32 %v2388, %v3004
  %v4553 = vmax.f32 %v2390, %v3006
  %v4554 = vmax.f32 %v2696, %v3312
  %v4555 = vmax.f32 %v2698, %v3314
  %v4556 = vmax.f32 %v4548, %v3614
  %v4557 = vmax.f32 %v4549, %v3616
  %v4558 = vmax.f32 %v4550, %v3922
  %v4559 = vmax.f32 %v4551, %v3924
  %v4560 = vmax.f32 %v4552, %v3620
  %v4561 = vmax.f32 %v4553, %v3622
  %v4562 = vmax.f32 %v4554, %v3928
  %v4563 = vmax.f32 %v4555, %v3930
  %v4564 = vmax.f32 %v4556, %v4230
  %v4565 = vmax.f32 %v4557, %v4232
  %v4566 = vmax.f32 %v4558, %v4538
  %v4567 = vmax.f32 %v4559, %v4540
  %v4568 = vmax.f32 %v4560, %v4236
  %v4569 = vmax.f32 %v4561, %v4238
  %v4570 = vmax.f32 %v4562, %v4544
  %v4571 = vmax.f32 %v4563, %v4546
  %v4572 = vld [vmem:[%s2] sm:$0xf]
  %v4574 = vlaneseq
  %v4575 = vshrl.u32 %v4574, 7
  %v4576 = vsub.s32 0, %v4575
  %v4577 = vrot.slane %v4572, %v4576
  %v4578 = vlaneseq
  %v4579 = vshrl.u32 %v4578, 7
  %v4580 = vsub.s32 1, %v4579
  %v4581 = vrot.slane %v4572, %v4580
  %v4582 = vlaneseq
  %v4583 = vshrl.u32 %v4582, 7
  %v4584 = vsub.s32 2, %v4583
  %v4585 = vrot.slane %v4572, %v4584
  %v4586 = vlaneseq
  %v4587 = vshrl.u32 %v4586, 7
  %v4588 = vsub.s32 3, %v4587
  %v4589 = vrot.slane %v4572, %v4588
  %v4594 = vadd.f32 %v4564, %v4577
  %v4595 = vadd.f32 %v4565, %v4581
  %v4596 = vadd.f32 %v4566, %v4585
  %v4597 = vadd.f32 %v4567, %v4589
  %v4598 = vadd.f32 %v4568, %v4577
  %v4599 = vadd.f32 %v4569, %v4581
  %v4600 = vadd.f32 %v4570, %v4585
  %v4601 = vadd.f32 %v4571, %v4589
  %v4602 = vmax.f32 %v4594, 0.0
  %v4603 = vmax.f32 %v4595, 0.0
  %v4604 = vmax.f32 %v4596, 0.0
  %v4605 = vmax.f32 %v4597, 0.0
  %v4606 = vmax.f32 %v4598, 0.0
  %v4607 = vmax.f32 %v4599, 0.0
  %v4608 = vmax.f32 %v4600, 0.0
  %v4609 = vmax.f32 %v4601, 0.0
  %v4610 = vld [vmem:[%s3] sm:$0xff]
  %v4611 = vld [vmem:[%s3 + $0x8] sm:$0xff]
  %v4612 = vld [vmem:[%s3 + $0x10] sm:$0xff]
  %v4613 = vld [vmem:[%s3 + $0x18] sm:$0xff]
  %v4614 = vld [vmem:[%s3 + $0x20] sm:$0xff]
  %v4615 = vld [vmem:[%s3 + $0x28] sm:$0xff]
  %v4616 = vld [vmem:[%s3 + $0x30] sm:$0xff]
  %v4617 = vld [vmem:[%s3 + $0x38] sm:$0xff]
  %v4618 = vld [vmem:[%s3 + $0x40] sm:$0xff]
  %v4619 = vld [vmem:[%s3 + $0x48] sm:$0xff]
  %v4620 = vld [vmem:[%s3 + $0x50] sm:$0xff]
  %v4621 = vld [vmem:[%s3 + $0x58] sm:$0xff]
  %v4622 = vld [vmem:[%s3 + $0x60] sm:$0xff]
  %v4623 = vld [vmem:[%s3 + $0x68] sm:$0xff]
  %v4624 = vld [vmem:[%s3 + $0x70] sm:$0xff]
  %v4625 = vld [vmem:[%s3 + $0x78] sm:$0xff]
  %v4626 = vld [vmem:[%s3 + $0x80] sm:$0xff]
  %v4627 = vld [vmem:[%s3 + $0x88] sm:$0xff]
  %v4628 = vld [vmem:[%s3 + $0x90] sm:$0xff]
  %v4629 = vld [vmem:[%s3 + $0x98] sm:$0xff]
  %v4630 = vld [vmem:[%s3 + $0xa0] sm:$0xff]
  %v4631 = vld [vmem:[%s3 + $0xa8] sm:$0xff]
  %v4632 = vld [vmem:[%s3 + $0xb0] sm:$0xff]
  %v4633 = vld [vmem:[%s3 + $0xb8] sm:$0xff]
  %v4634 = vld [vmem:[%s3 + $0xc0] sm:$0xff]
  %v4635 = vld [vmem:[%s3 + $0xc8] sm:$0xff]
  %v4636 = vld [vmem:[%s3 + $0xd0] sm:$0xff]
  %v4637 = vld [vmem:[%s3 + $0xd8] sm:$0xff]
  %v4638 = vld [vmem:[%s3 + $0xe0] sm:$0xff]
  %v4639 = vld [vmem:[%s3 + $0xe8] sm:$0xff]
  %v4640 = vld [vmem:[%s3 + $0xf0] sm:$0xff]
  %v4641 = vld [vmem:[%s3 + $0xf8] sm:$0xff]
  %v4642 = vld [vmem:[%s3 + $0x100] sm:$0xff]
  %v4643 = vld [vmem:[%s3 + $0x108] sm:$0xff]
  %v4644 = vld [vmem:[%s3 + $0x110] sm:$0xff]
  %v4645 = vld [vmem:[%s3 + $0x118] sm:$0xff]
  %v4646 = vld [vmem:[%s3 + $0x120] sm:$0xff]
  %v4647 = vld [vmem:[%s3 + $0x128] sm:$0xff]
  %v4648 = vld [vmem:[%s3 + $0x130] sm:$0xff]
  %v4649 = vld [vmem:[%s3 + $0x138] sm:$0xff]
  %v4650 = vld [vmem:[%s3 + $0x140] sm:$0xff]
  %v4651 = vld [vmem:[%s3 + $0x148] sm:$0xff]
  %v4652 = vld [vmem:[%s3 + $0x150] sm:$0xff]
  %v4653 = vld [vmem:[%s3 + $0x158] sm:$0xff]
  %v4654 = vld [vmem:[%s3 + $0x160] sm:$0xff]
  %v4655 = vld [vmem:[%s3 + $0x168] sm:$0xff]
  %v4656 = vld [vmem:[%s3 + $0x170] sm:$0xff]
  %v4657 = vld [vmem:[%s3 + $0x178] sm:$0xff]
  %v4658 = vld [vmem:[%s3 + $0x180] sm:$0xff]
  %v4659 = vld [vmem:[%s3 + $0x188] sm:$0xff]
  %v4660 = vld [vmem:[%s3 + $0x190] sm:$0xff]
  %v4661 = vld [vmem:[%s3 + $0x198] sm:$0xff]
  %v4662 = vld [vmem:[%s3 + $0x1a0] sm:$0xff]
  %v4663 = vld [vmem:[%s3 + $0x1a8] sm:$0xff]
  %v4664 = vld [vmem:[%s3 + $0x1b0] sm:$0xff]
  %v4665 = vld [vmem:[%s3 + $0x1b8] sm:$0xff]
  %v4666 = vld [vmem:[%s3 + $0x1c0] sm:$0xff]
  %v4667 = vld [vmem:[%s3 + $0x1c8] sm:$0xff]
  %v4668 = vld [vmem:[%s3 + $0x1d0] sm:$0xff]
  %v4669 = vld [vmem:[%s3 + $0x1d8] sm:$0xff]
  %v4670 = vld [vmem:[%s3 + $0x1e0] sm:$0xff]
  %v4671 = vld [vmem:[%s3 + $0x1e8] sm:$0xff]
  %v4672 = vld [vmem:[%s3 + $0x1f0] sm:$0xff]
  %v4673 = vld [vmem:[%s3 + $0x1f8] sm:$0xff]
  %v4674 = vld [vmem:[%s4] sm:$0x1]
  %v4676 = vlaneseq
  %v4677 = vshrl.u32 %v4676, 7
  %v4678 = vsub.s32 0, %v4677
  %v4679 = vrot.slane %v4674, %v4678
  %4681 = vmatprep.subr.mxu0 0.0
  %4682 = vmatpush1.msra.mxu0 %v4610
  %4683 = vmatprep.subr.mxu0 0.0
  %4684 = vmatpush1.msra.mxu0 %v4611
  %4685 = vmatprep.subr.mxu0 0.0
  %4686 = vmatpush1.msra.mxu0 %v4612
  %4687 = vmatprep.subr.mxu0 0.0
  %4688 = vmatpush1.msra.mxu0 %v4613
  %4689 = vmatprep.subr.mxu0 0.0
  %4690 = vmatpush1.msra.mxu0 %v4614
  %4691 = vmatprep.subr.mxu0 0.0
  %4692 = vmatpush1.msra.mxu0 %v4615
  %4693 = vmatprep.subr.mxu0 0.0
  %4694 = vmatpush1.msra.mxu0 %v4616
  %4695 = vmatprep.subr.mxu0 0.0
  %4696 = vmatpush1.msra.mxu0 %v4617
  %4697 = vmatprep.subr.mxu0 0.0
  %4698 = vmatpush1.msra.mxu0 %v4618
  %4699 = vmatprep.subr.mxu0 0.0
  %4700 = vmatpush1.msra.mxu0 %v4619
  %4701 = vmatprep.subr.mxu0 0.0
  %4702 = vmatpush1.msra.mxu0 %v4620
  %4703 = vmatprep.subr.mxu0 0.0
  %4704 = vmatpush1.msra.mxu0 %v4621
  %4705 = vmatprep.subr.mxu0 0.0
  %4706 = vmatpush1.msra.mxu0 %v4622
  %4707 = vmatprep.subr.mxu0 0.0
  %4708 = vmatpush1.msra.mxu0 %v4623
  %4709 = vmatprep.subr.mxu0 0.0
  %4710 = vmatpush1.msra.mxu0 %v4624
  %4711 = vmatprep.subr.mxu0 0.0
  %4712 = vmatpush1.msra.mxu0 %v4625
  %4713 = vmatprep.subr.mxu0 0.0
  %4714 = vmatpush1.msra.mxu0 %v4626
  %4715 = vmatprep.subr.mxu0 0.0
  %4716 = vmatpush1.msra.mxu0 %v4627
  %4717 = vmatprep.subr.mxu0 0.0
  %4718 = vmatpush1.msra.mxu0 %v4628
  %4719 = vmatprep.subr.mxu0 0.0
  %4720 = vmatpush1.msra.mxu0 %v4629
  %4721 = vmatprep.subr.mxu0 0.0
  %4722 = vmatpush1.msra.mxu0 %v4630
  %4723 = vmatprep.subr.mxu0 0.0
  %4724 = vmatpush1.msra.mxu0 %v4631
  %4725 = vmatprep.subr.mxu0 0.0
  %4726 = vmatpush1.msra.mxu0 %v4632
  %4727 = vmatprep.subr.mxu0 0.0
  %4728 = vmatpush1.msra.mxu0 %v4633
  %4729 = vmatprep.subr.mxu0 0.0
  %4730 = vmatpush1.msra.mxu0 %v4634
  %4731 = vmatprep.subr.mxu0 0.0
  %4732 = vmatpush1.msra.mxu0 %v4635
  %4733 = vmatprep.subr.mxu0 0.0
  %4734 = vmatpush1.msra.mxu0 %v4636
  %4735 = vmatprep.subr.mxu0 0.0
  %4736 = vmatpush1.msra.mxu0 %v4637
  %4737 = vmatprep.subr.mxu0 0.0
  %4738 = vmatpush1.msra.mxu0 %v4638
  %4739 = vmatprep.subr.mxu0 0.0
  %4740 = vmatpush1.msra.mxu0 %v4639
  %4741 = vmatprep.subr.mxu0 0.0
  %4742 = vmatpush1.msra.mxu0 %v4640
  %4743 = vmatprep.subr.mxu0 0.0
  %4744 = vmatpush1.msra.mxu0 %v4641
  %4745 = vmatprep.mubr.f32.mxu0 %v4603
  %4746 = vmatmul.mubr.f32.gmra.mrb[0].mxu0 %v4602
  %v4747 = vpop.f32.mrb[0].mxu0
  %v4748 = vadd.f32 %v4679, %v4747
  %v4749 = vpop.f32.mrb[0].mxu0
  %4750 = vmatprep.mubr.f32.mxu0 %v4607
  %4751 = vmatmul.mubr.f32.gmra.mrb[0].mxu0 %v4606
  %v4752 = vpop.f32.mrb[0].mxu0
  %v4753 = vadd.f32 %v4679, %v4752
  %v4754 = vpop.f32.mrb[0].mxu0
  %4755 = vdwg.mxu0
  %4756 = vmatprep.subr.mxu0 0.0
  %4757 = vmatpush1.msra.mxu0 %v4642
  %4758 = vmatprep.subr.mxu0 0.0
  %4759 = vmatpush1.msra.mxu0 %v4643
  %4760 = vmatprep.subr.mxu0 0.0
  %4761 = vmatpush1.msra.mxu0 %v4644
  %4762 = vmatprep.subr.mxu0 0.0
  %4763 = vmatpush1.msra.mxu0 %v4645
  %4764 = vmatprep.subr.mxu0 0.0
  %4765 = vmatpush1.msra.mxu0 %v4646
  %4766 = vmatprep.subr.mxu0 0.0
  %4767 = vmatpush1.msra.mxu0 %v4647
  %4768 = vmatprep.subr.mxu0 0.0
  %4769 = vmatpush1.msra.mxu0 %v4648
  %4770 = vmatprep.subr.mxu0 0.0
  %4771 = vmatpush1.msra.mxu0 %v4649
  %4772 = vmatprep.subr.mxu0 0.0
  %4773 = vmatpush1.msra.mxu0 %v4650
  %4774 = vmatprep.subr.mxu0 0.0
  %4775 = vmatpush1.msra.mxu0 %v4651
  %4776 = vmatprep.subr.mxu0 0.0
  %4777 = vmatpush1.msra.mxu0 %v4652
  %4778 = vmatprep.subr.mxu0 0.0
  %4779 = vmatpush1.msra.mxu0 %v4653
  %4780 = vmatprep.subr.mxu0 0.0
  %4781 = vmatpush1.msra.mxu0 %v4654
  %4782 = vmatprep.subr.mxu0 0.0
  %4783 = vmatpush1.msra.mxu0 %v4655
  %4784 = vmatprep.subr.mxu0 0.0
  %4785 = vmatpush1.msra.mxu0 %v4656
  %4786 = vmatprep.subr.mxu0 0.0
  %4787 = vmatpush1.msra.mxu0 %v4657
  %4788 = vmatprep.subr.mxu0 0.0
  %4789 = vmatpush1.msra.mxu0 %v4658
  %4790 = vmatprep.subr.mxu0 0.0
  %4791 = vmatpush1.msra.mxu0 %v4659
  %4792 = vmatprep.subr.mxu0 0.0
  %4793 = vmatpush1.msra.mxu0 %v4660
  %4794 = vmatprep.subr.mxu0 0.0
  %4795 = vmatpush1.msra.mxu0 %v4661
  %4796 = vmatprep.subr.mxu0 0.0
  %4797 = vmatpush1.msra.mxu0 %v4662
  %4798 = vmatprep.subr.mxu0 0.0
  %4799 = vmatpush1.msra.mxu0 %v4663
  %4800 = vmatprep.subr.mxu0 0.0
  %4801 = vmatpush1.msra.mxu0 %v4664
  %4802 = vmatprep.subr.mxu0 0.0
  %4803 = vmatpush1.msra.mxu0 %v4665
  %4804 = vmatprep.subr.mxu0 0.0
  %4805 = vmatpush1.msra.mxu0 %v4666
  %4806 = vmatprep.subr.mxu0 0.0
  %4807 = vmatpush1.msra.mxu0 %v4667
  %4808 = vmatprep.subr.mxu0 0.0
  %4809 = vmatpush1.msra.mxu0 %v4668
  %4810 = vmatprep.subr.mxu0 0.0
  %4811 = vmatpush1.msra.mxu0 %v4669
  %4812 = vmatprep.subr.mxu0 0.0
  %4813 = vmatpush1.msra.mxu0 %v4670
  %4814 = vmatprep.subr.mxu0 0.0
  %4815 = vmatpush1.msra.mxu0 %v4671
  %4816 = vmatprep.subr.mxu0 0.0
  %4817 = vmatpush1.msra.mxu0 %v4672
  %4818 = vmatprep.subr.mxu0 0.0
  %4819 = vmatpush1.msra.mxu0 %v4673
  %4820 = vmatprep.mubr.f32.mxu0 %v4605
  %4821 = vmatmul.mubr.f32.gmra.mrb[0].mxu0 %v4604
  %v4822 = vpop.f32.mrb[0].mxu0
  %v4823 = vadd.f32 %v4748, %v4822
  %v4824 = vpop.f32.mrb[0].mxu0
  %4825 = vmatprep.mubr.f32.mxu0 %v4609
  %4826 = vmatmul.mubr.f32.gmra.mrb[0].mxu0 %v4608
  %v4827 = vpop.f32.mrb[0].mxu0
  %v4828 = vadd.f32 %v4753, %v4827
  %v4829 = vpop.f32.mrb[0].mxu0
  %4830 = vdwg.mxu0
  %4831 = vst [vmem:[%s5] sm:$0xff] %v4823
  %4832 = vst [vmem:[%s5 + $0x8] sm:$0xff] %v4828
  // Predicated region
  $region22: #{_lambda_.1} parent=0 // pred_check
    _
  $region23: #{_lambda_.1} parent=0 // pred_check_branch
    %4834 = sbr.rel (0) target = $region25
  $region24: #{_lambda_.1} parent=0 // pred_region
    _
  $region25: #{_lambda_.1} parent=0 // pred_fallthru
    _
  // Predicated region
  $region26: #{_lambda_.1} parent=0 // pred_check
    _
  $region27: #{_lambda_.1} parent=0 // pred_check_branch
    %4836 = sbr.rel (0) target = $region29
  $region28: #{_lambda_.1} parent=0 // pred_region
    _
  $region29: #{_lambda_.1} parent=0 // pred_fallthru
    _

</llo_original>
